<compile_context>
chip_gen: v7x
topology: tpu7x:2x2x1
jax: 0.10.0
libtpu: 0.0.40
codegen_flags: <defaults>
</compile_context>

<pallas_src>
import jax
import jax.numpy as jnp
from jax.experimental import pallas as pl
from jax.experimental.pallas import tpu as pltpu


def _sym_res_kernel(x_ref, w0_ref, b01_ref, w1_ref, w2_ref, b2_ref, o_ref):
    F = x_ref.shape[0] // 2       # static
    H0 = w0_ref.shape[0]          # 1024 (static)

    x = x_ref[...]                # [2F, tb] f32 (batch on lanes)
    v = x[:F].astype(jnp.bfloat16)
    lg = x[F:].astype(jnp.bfloat16)
    a = jnp.abs(x[:F] - x[F:]).astype(jnp.bfloat16)

    # Fused layer 0: single K=3F matmul on the (sublane-)concatenated input.
    xt = jnp.concatenate([v, lg, a], axis=0)          # [3F, tb] bf16

    b0 = b01_ref[:H0]             # [1024, 1] f32
    b1 = b01_ref[H0:]             # [512, 1]  f32

    h0 = jnp.dot(w0_ref[...], xt, preferred_element_type=jnp.float32) + b0
    h0 = jnp.maximum(h0, 0.0)     # [1024, tb] f32

    h1 = jnp.dot(w1_ref[...], h0.astype(jnp.bfloat16),
                 preferred_element_type=jnp.float32) + b1
    h1 = jnp.maximum(h1, 0.0)     # [512, tb] f32

    # Layer 2: VPU multiply + sublane reduction -> lane-dense [1, tb] row.
    o_ref[...] = jnp.sum(h1 * w2_ref[...], axis=0, keepdims=True) + b2_ref[0]


def _pick_tile(B):
    # Largest tile in {1024, 512, 256, 128} that divides B and leaves >= 2
    # grid steps (so both v7x TensorCores get work); otherwise one full tile.
    for cand in (1024, 512, 256, 128):
        if B % cand == 0 and B // cand >= 2:
            return cand
    return B


def symmetric_res_estimator(visual, language, kernel_params, *, tb=None):
    """visual, language: [B, F] float32. Returns [B, 1] float32."""
    B, F = visual.shape
    w0t, b01, w1t, w2col, b2 = kernel_params
    H0, K0 = w0t.shape            # 1024, 3F
    H1 = w1t.shape[0]             # 512
    assert K0 == 3 * F and w1t.shape[1] == H0 and w2col.shape == (H1, 1)

    if tb is None:
        tb = _pick_tile(B)
    assert B % tb == 0 and (tb == B or tb % 128 == 0), (B, tb)
    grid = (B // tb,)

    # One packed, transposed activation slab: [2F, B] (batch on lanes).
    xT = jnp.concatenate([visual.T, language.T], axis=0)

    resident = lambda shape: pl.BlockSpec(shape, lambda i: (0, 0))

    flops = 2 * B * (3 * F * H0 + H0 * H1 + H1)
    bytes_accessed = (B * 2 * F * 4 + B * 4                     # acts in/out
                      + (3 * F * H0 + H0 * H1) * 2              # bf16 weights
                      + (H0 + H1 + H1 + 1) * 4)                 # biases + w2 + b2

    out_row = pl.pallas_call(
        _sym_res_kernel,
        out_shape=jax.ShapeDtypeStruct((1, B), jnp.float32),
        grid=grid,
        in_specs=[
            pl.BlockSpec((2 * F, tb), lambda i: (0, i)),         # xT activations
            resident((H0, 3 * F)),                               # W0 (bf16, resident)
            resident((H0 + H1, 1)),                              # packed [b0; b1] column
            resident((H1, H0)),                                  # W1 (bf16, resident)
            resident((H1, 1)),                                   # w2 column (f32)
            pl.BlockSpec(memory_space=pltpu.MemorySpace.SMEM),   # b2 scalar
        ],
        out_specs=pl.BlockSpec((1, tb), lambda i: (0, i)),       # lane-dense output
        compiler_params=pltpu.CompilerParams(
            dimension_semantics=("parallel",),
            vmem_limit_bytes=32 << 20,
        ),
        cost_estimate=pl.CostEstimate(
            flops=flops, transcendentals=0, bytes_accessed=bytes_accessed),
    )(xT, w0t, b01, w1t, w2col, b2)

    return out_row.reshape(B, 1)


def init_params(key, in_feature):
    """Deterministic synthetic parameters in native nn.Linear ([out, in]) layout."""
    ks = jax.random.split(key, 6)
    s0 = 1.0 / jnp.sqrt(3.0 * in_feature)
    s1 = 1.0 / jnp.sqrt(1024.0)
    s2 = 1.0 / jnp.sqrt(512.0)
    W0 = jax.random.uniform(ks[0], (1024, 3 * in_feature), jnp.float32, -s0, s0)
    b0 = jax.random.uniform(ks[1], (1024,), jnp.float32, -s0, s0)
    W1 = jax.random.uniform(ks[2], (512, 1024), jnp.float32, -s1, s1)
    b1 = jax.random.uniform(ks[3], (512,), jnp.float32, -s1, s1)
    W2 = jax.random.uniform(ks[4], (1, 512), jnp.float32, -s2, s2)
    b2 = jax.random.uniform(ks[5], (1,), jnp.float32, -s2, s2)
    return W0, b0, W1, b1, W2, b2


def pack_params(raw):
    """Repack nn.Linear params into the kernel-friendly (transposed) layout."""
    W0, b0, W1, b1, W2, b2 = raw
    return (
        W0.astype(jnp.bfloat16),                        # [1024, 3F]  bf16
        jnp.concatenate([b0, b1]).reshape(-1, 1),       # [1536, 1]   f32 ([b0; b1])
        W1.astype(jnp.bfloat16),                        # [512, 1024] bf16
        W2.reshape(-1, 1),                              # [512, 1]    f32 column
        b2.reshape(1),                                  # (1,)        f32 (SMEM)
    )


def reference(visual, language, raw, *, quantize_weights=True):
    """Pure-JAX reference replicating the PyTorch forward.

    With quantize_weights=True the weights are rounded to bf16 (same
    quantization the kernel uses) so the comparison isolates matmul rounding.
    """
    W0, b0, W1, b1, W2, b2 = raw
    if quantize_weights:
        W0 = W0.astype(jnp.bfloat16).astype(jnp.float32)
        W1 = W1.astype(jnp.bfloat16).astype(jnp.float32)
    x = jnp.concatenate([visual, language, jnp.abs(visual - language)], axis=-1)
    h0 = jax.nn.relu(x @ W0.T + b0)
    h1 = jax.nn.relu(h0 @ W1.T + b1)
    return h1 @ W2.T + b2


if __name__ == "__main__":
    key = jax.random.PRNGKey(0)
    k_v, k_l, k_p = jax.random.split(key, 3)

    # Small shapes: batch=256, in_feature=32 -> tb=128, grid=(2,), which
    # exercises the tiled "parallel" batch axis and the lane-dense output.
    B, F = 256, 32
    visual = jax.random.normal(k_v, (B, F), jnp.float32)
    language = jax.random.normal(k_l, (B, F), jnp.float32)

    raw_params = init_params(k_p, F)
    kernel_params = pack_params(raw_params)

    out = symmetric_res_estimator(visual, language, kernel_params)
    out = jax.block_until_ready(out)

    ref = reference(visual, language, raw_params, quantize_weights=True)
    assert out.shape == (B, 1)
    max_err = jnp.max(jnp.abs(out - ref))
    assert jnp.allclose(out, ref, atol=2e-2, rtol=2e-2), ("max_abs_err", max_err)

    print("KERNEL_OK")
</pallas_src>

<mosaic_0001>
module attributes {stable_mosaic.version = 11 : i64} {
  func.func @_sym_res_kernel(%arg0: i32, %arg1: memref<64x128xf32, #tpu.memory_space<vmem>>, %arg2: memref<1024x96xbf16, #tpu.memory_space<vmem>>, %arg3: memref<1536x1xf32, #tpu.memory_space<vmem>>, %arg4: memref<512x1024xbf16, #tpu.memory_space<vmem>>, %arg5: memref<512x1xf32, #tpu.memory_space<vmem>>, %arg6: memref<1xf32, #tpu.memory_space<smem>>, %arg7: memref<1x128xf32, #tpu.memory_space<vmem>>) attributes {dimension_semantics = [#tpu.dimension_semantics<parallel>], iteration_bounds = array<i64: 2>, scalar_prefetch = 0 : i64, scratch_operands = 0 : i64, tpu.core_type = #tpu.core_type<tc>, window_params = [{transform_indices = @transform_0, window_bounds = array<i64: 64, 128>}, {pipeline_mode = #tpu.pipeline_mode<synchronous>, transform_indices = @transform_1, window_bounds = array<i64: 1024, 96>}, {pipeline_mode = #tpu.pipeline_mode<synchronous>, transform_indices = @transform_2, window_bounds = array<i64: 1536, 1>}, {pipeline_mode = #tpu.pipeline_mode<synchronous>, transform_indices = @transform_3, window_bounds = array<i64: 512, 1024>}, {pipeline_mode = #tpu.pipeline_mode<synchronous>, transform_indices = @transform_4, window_bounds = array<i64: 512, 1>}, {transform_indices = @transform_5, window_bounds = array<i64: 1>}, {transform_indices = @transform_6, window_bounds = array<i64: 1, 128>}]} {
    %c0 = arith.constant 0 : index
    %c0_0 = arith.constant 0 : index
    %0 = vector.load %arg1[%c0, %c0_0] : memref<64x128xf32, #tpu.memory_space<vmem>>, vector<64x128xf32>
    %1 = vector.extract_strided_slice %0 {offsets = [0, 0], sizes = [32, 128], strides = [1, 1]} : vector<64x128xf32> to vector<32x128xf32>
    %2 = arith.truncf %1 : vector<32x128xf32> to vector<32x128xbf16>
    %3 = vector.extract_strided_slice %0 {offsets = [32, 0], sizes = [32, 128], strides = [1, 1]} : vector<64x128xf32> to vector<32x128xf32>
    %4 = arith.truncf %3 : vector<32x128xf32> to vector<32x128xbf16>
    %5 = vector.extract_strided_slice %0 {offsets = [0, 0], sizes = [32, 128], strides = [1, 1]} : vector<64x128xf32> to vector<32x128xf32>
    %6 = vector.extract_strided_slice %0 {offsets = [32, 0], sizes = [32, 128], strides = [1, 1]} : vector<64x128xf32> to vector<32x128xf32>
    %7 = arith.subf %5, %6 : vector<32x128xf32>
    %8 = math.absf %7 : vector<32x128xf32>
    %9 = arith.truncf %8 : vector<32x128xf32> to vector<32x128xbf16>
    %10 = tpu.concatenate %2, %4, %9 in 0 : vector<32x128xbf16>, vector<32x128xbf16>, vector<32x128xbf16> -> vector<96x128xbf16>
    %c0_1 = arith.constant 0 : index
    %c0_2 = arith.constant 0 : index
    %11 = vector.load %arg3[%c0_1, %c0_2] : memref<1536x1xf32, #tpu.memory_space<vmem>>, vector<1024x1xf32>
    %c1024 = arith.constant 1024 : index
    %c0_3 = arith.constant 0 : index
    %12 = vector.load %arg3[%c1024, %c0_3] : memref<1536x1xf32, #tpu.memory_space<vmem>>, vector<512x1xf32>
    %c0_4 = arith.constant 0 : index
    %c0_5 = arith.constant 0 : index
    %13 = vector.load %arg2[%c0_4, %c0_5] : memref<1024x96xbf16, #tpu.memory_space<vmem>>, vector<1024x96xbf16>
    %cst = arith.constant dense<0.000000e+00> : vector<1024x128xf32>
    %14 = tpu.matmul %13, %10, %cst {dimension_numbers = #tpu.dot_dimension_numbers<[1], [0], [0], [1], [0, 0, 1, 1], [], []>} : vector<1024x96xbf16>, vector<96x128xbf16>, vector<1024x128xf32> -> vector<1024x128xf32>
    %15 = vector.broadcast %11 : vector<1024x1xf32> to vector<1024x128xf32>
    %16 = arith.addf %14, %15 : vector<1024x128xf32>
    %cst_6 = arith.constant 0.000000e+00 : f32
    %17 = vector.broadcast %cst_6 : f32 to vector<1024x128xf32>
    %18 = arith.maximumf %16, %17 : vector<1024x128xf32>
    %c0_7 = arith.constant 0 : index
    %c0_8 = arith.constant 0 : index
    %19 = vector.load %arg4[%c0_7, %c0_8] : memref<512x1024xbf16, #tpu.memory_space<vmem>>, vector<512x1024xbf16>
    %20 = arith.truncf %18 : vector<1024x128xf32> to vector<1024x128xbf16>
    %cst_9 = arith.constant dense<0.000000e+00> : vector<512x128xf32>
    %21 = tpu.matmul %19, %20, %cst_9 {dimension_numbers = #tpu.dot_dimension_numbers<[1], [0], [0], [1], [0, 0, 1, 1], [], []>} : vector<512x1024xbf16>, vector<1024x128xbf16>, vector<512x128xf32> -> vector<512x128xf32>
    %22 = vector.broadcast %12 : vector<512x1xf32> to vector<512x128xf32>
    %23 = arith.addf %21, %22 : vector<512x128xf32>
    %cst_10 = arith.constant 0.000000e+00 : f32
    %24 = vector.broadcast %cst_10 : f32 to vector<512x128xf32>
    %25 = arith.maximumf %23, %24 : vector<512x128xf32>
    %c0_11 = arith.constant 0 : index
    %c0_12 = arith.constant 0 : index
    %26 = vector.load %arg5[%c0_11, %c0_12] : memref<512x1xf32, #tpu.memory_space<vmem>>, vector<512x1xf32>
    %27 = vector.broadcast %26 : vector<512x1xf32> to vector<512x128xf32>
    %28 = arith.mulf %25, %27 : vector<512x128xf32>
    %cst_13 = arith.constant dense<0.000000e+00> : vector<128xf32>
    %29 = vector.multi_reduction <add>, %28, %cst_13 [0] : vector<512x128xf32> to vector<128xf32>
    %30 = vector.shape_cast %29 : vector<128xf32> to vector<1x128xf32>
    %c0_14 = arith.constant 0 : index
    %31 = memref.load %arg6[%c0_14] : memref<1xf32, #tpu.memory_space<smem>>
    %32 = vector.broadcast %31 : f32 to vector<1x128xf32>
    %33 = arith.addf %30, %32 : vector<1x128xf32>
    %c0_15 = arith.constant 0 : index
    %c0_16 = arith.constant 0 : index
    %34 = vector.load %arg7[%c0_15, %c0_16] : memref<1x128xf32, #tpu.memory_space<vmem>>, vector<1x128xf32>
    tpu.vector_store %arg7[%c0_15, %c0_16], %33 {strides = array<i32>} : memref<1x128xf32, #tpu.memory_space<vmem>>, vector<1x128xf32>,
    return
  }
  func.func @transform_0(%arg0: i32) -> (i32, i32) {
    %c0_i32 = arith.constant 0 : i32
    %c0_i32_0 = arith.constant 0 : i32
    return %c0_i32, %arg0 : i32, i32
  }
  func.func @transform_1(%arg0: i32) -> (i32, i32) {
    %c0_i32 = arith.constant 0 : i32
    %c0_i32_0 = arith.constant 0 : i32
    %c0_i32_1 = arith.constant 0 : i32
    return %c0_i32, %c0_i32_0 : i32, i32
  }
  func.func @transform_2(%arg0: i32) -> (i32, i32) {
    %c0_i32 = arith.constant 0 : i32
    %c0_i32_0 = arith.constant 0 : i32
    %c0_i32_1 = arith.constant 0 : i32
    return %c0_i32, %c0_i32_0 : i32, i32
  }
  func.func @transform_3(%arg0: i32) -> (i32, i32) {
    %c0_i32 = arith.constant 0 : i32
    %c0_i32_0 = arith.constant 0 : i32
    %c0_i32_1 = arith.constant 0 : i32
    return %c0_i32, %c0_i32_0 : i32, i32
  }
  func.func @transform_4(%arg0: i32) -> (i32, i32) {
    %c0_i32 = arith.constant 0 : i32
    %c0_i32_0 = arith.constant 0 : i32
    %c0_i32_1 = arith.constant 0 : i32
    return %c0_i32, %c0_i32_0 : i32, i32
  }
  func.func @transform_5(%arg0: i32) -> i32 {
    %c0_i32 = arith.constant 0 : i32
    %c0_i32_0 = arith.constant 0 : i32
    return %c0_i32 : i32
  }
  func.func @transform_6(%arg0: i32) -> (i32, i32) {
    %c0_i32 = arith.constant 0 : i32
    %c0_i32_0 = arith.constant 0 : i32
    return %c0_i32, %arg0 : i32, i32
  }
}

</mosaic_0001>

<llo_original>
// kernel: tpu_custom_call.1
$region0: #{tpu_custom_call.1}
  #allocation0 [shape = 'u32[]', space=smem, size = 0x4, offset = 0x4, fixed_abs, tag = 'smem constant byte address 0x4 - core index']
  #allocation1 [shape = 'u32[144,128]{1,0:T(1,128)}', space=vmem, size = 0x12000, scoped, tag = 'internal scratch']
  #allocation2 [shape = 'f32[1]{0:T(128)S(6)}', space=smem, size = 0x200, scoped, tag = 'scoped memory for tpu_custom_call.1']
  %s0 = inlined_call_operand.vmem [shape: f32[64,256], index: 0, kind: input, shape index: {}]
  %s1 = inlined_call_operand.vmem [shape: bf16[1024,96], index: 1, kind: input, shape index: {}]
  %s2 = inlined_call_operand.vmem [shape: f32[1536,1], index: 2, kind: input, shape index: {}]
  %s3 = inlined_call_operand.vmem [shape: bf16[512,1024], index: 3, kind: input, shape index: {}]
  %s4 = inlined_call_operand.vmem [shape: f32[512,1], index: 4, kind: input, shape index: {}]
  %s5 = inlined_call_operand.<no memory space> [shape: f32[1], index: 5, kind: input, shape index: {}]
  %s6 = inlined_call_operand.hbm [shape: f32[1,256], index: 6, kind: output, shape index: {}]
  %s7 = sld [smem:[#allocation0]]
  $region95: #{tpu_custom_call.1} parent=0
    _
  %s9 = ssub.s32 1, %s7
  %s10 = scalar_select 0, %s9, %s7
  %11 = sst [smem:[#allocation2]] %s5
  $region1: #{tpu_custom_call.1} parent=0
    #allocation3 [shape = 'u8[65536]{0}', space=vmem, size = 0x10000, scoped, tag = 'input window, operand 0']
    #allocation4 [shape = 'u8[1024]{0}', space=vmem, size = 0x400, scoped, tag = 'output window, operand 0']
    #allocation5 [shape = 's32[2]{0}', space=sflag, size = 0x8, scoped, tag = 'scoped memory for tpu_custom_call.1']
    %12 = vsyncpa [#allocation5], 0
    %s13 = scalar_lea.sflag [#allocation5], 1
    %14 = vsyncpa %s13, 0
    loop: start=0, step=1, limit=4
    $region2: #{tpu_custom_call.1} parent=1 // loop_pre_header
      _
    $region3: #{tpu_custom_call.1} parent=1 // loop_header
      %s16 = sphi 0, %s20
      %p17 = scmp.ge.s32.totalorder %s16, 4
      %s26 = sphi 0, %s28
      %s29 = sphi 0, %s26
      %s30 = sphi 0, %s29
      %s46 = sphi 0, %s30
      %s50 = sphi 0, %s50
      %s52 = sphi 0, %s50
      %s53 = sphi 0, %s52
      %s67 = sphi 0, %s53
      %s71 = sphi 0, %s71
      %s73 = sphi 0, %s71
      %s74 = sphi 0, %s73
      %s88 = sphi 0, %s74
      %s92 = sphi 0, %s92
      %s94 = sphi 0, %s92
      %s95 = sphi 0, %s94
      %s109 = sphi 0, %s95
      %s113 = sphi 0, %s113
      %s115 = sphi 0, %s113
      %s116 = sphi 0, %s115
      %s130 = sphi 0, %s116
      %s134 = sphi 0, %s134
      %s136 = sphi 0, %s134
      %s137 = sphi 0, %s136
      %s151 = sphi 0, %s137
      %s157 = sphi 0, %s159
      %s160 = sphi 0, %s157
      %s161 = sphi 0, %s160
      %s177 = sphi 0, %s161
    $region4: #{tpu_custom_call.1} parent=1 // loop_header_branch
      %19 = sbr.rel (%p17) target = $region8
    $region5: #{tpu_custom_call.1} parent=1 // loop_body
      %s21 = ssub.s32 %s16, 1
      %s22 = ssub.s32 %s16, 2
      %s23 = sadd.s32 %s16, 1
      %s24 = ssub.s32 %s16, %s23
      %p25 = scmp.eq.s32.totalorder %s24, 0
      %s27 = sadd.s32 %s26, 1
      %s28 = scalar_select %p25, %s26, %s27
      %p31 = pneg %p25
      %p32 = scmp.eq.s32.totalorder %s16, 1
      %p33 = por %p31, %p32
      %p34 = scmp.ne.s32.totalorder %s26, %s29
      %p35 = scmp.eq.s32.totalorder %s16, 0
      %p36 = por %p34, %p35
      %p37 = scmp.ne.s32.totalorder %s26, %s29
      %p38 = scmp.eq.s32.totalorder %s21, 1
      %p39 = por %p37, %p38
      %p40 = scmp.ne.s32.totalorder %s29, %s30
      %p41 = scmp.eq.s32.totalorder %s21, 0
      %p42 = por %p40, %p41
      %p43 = scmp.ne.s32.totalorder %s29, %s30
      %p44 = scmp.eq.s32.totalorder %s22, 1
      %p45 = por %p43, %p44
      %p47 = scmp.ne.s32.totalorder %s30, %s46
      %p48 = scmp.eq.s32.totalorder %s22, 0
      %p49 = por %p47, %p48
      %s51 = sadd.s32 %s50, 1
      %p54 = scmp.eq.s32.totalorder %s16, 1
      %p55 = scmp.ne.s32.totalorder %s50, %s52
      %p56 = scmp.eq.s32.totalorder %s16, 0
      %p57 = por %p55, %p56
      %p58 = scmp.ne.s32.totalorder %s50, %s52
      %p59 = scmp.eq.s32.totalorder %s21, 1
      %p60 = por %p58, %p59
      %p61 = scmp.ne.s32.totalorder %s52, %s53
      %p62 = scmp.eq.s32.totalorder %s21, 0
      %p63 = por %p61, %p62
      %p64 = scmp.ne.s32.totalorder %s52, %s53
      %p65 = scmp.eq.s32.totalorder %s22, 1
      %p66 = por %p64, %p65
      %p68 = scmp.ne.s32.totalorder %s53, %s67
      %p69 = scmp.eq.s32.totalorder %s22, 0
      %p70 = por %p68, %p69
      %s72 = sadd.s32 %s71, 1
      %p75 = scmp.eq.s32.totalorder %s16, 1
      %p76 = scmp.ne.s32.totalorder %s71, %s73
      %p77 = scmp.eq.s32.totalorder %s16, 0
      %p78 = por %p76, %p77
      %p79 = scmp.ne.s32.totalorder %s71, %s73
      %p80 = scmp.eq.s32.totalorder %s21, 1
      %p81 = por %p79, %p80
      %p82 = scmp.ne.s32.totalorder %s73, %s74
      %p83 = scmp.eq.s32.totalorder %s21, 0
      %p84 = por %p82, %p83
      %p85 = scmp.ne.s32.totalorder %s73, %s74
      %p86 = scmp.eq.s32.totalorder %s22, 1
      %p87 = por %p85, %p86
      %p89 = scmp.ne.s32.totalorder %s74, %s88
      %p90 = scmp.eq.s32.totalorder %s22, 0
      %p91 = por %p89, %p90
      %s93 = sadd.s32 %s92, 1
      %p96 = scmp.eq.s32.totalorder %s16, 1
      %p97 = scmp.ne.s32.totalorder %s92, %s94
      %p98 = scmp.eq.s32.totalorder %s16, 0
      %p99 = por %p97, %p98
      %p100 = scmp.ne.s32.totalorder %s92, %s94
      %p101 = scmp.eq.s32.totalorder %s21, 1
      %p102 = por %p100, %p101
      %p103 = scmp.ne.s32.totalorder %s94, %s95
      %p104 = scmp.eq.s32.totalorder %s21, 0
      %p105 = por %p103, %p104
      %p106 = scmp.ne.s32.totalorder %s94, %s95
      %p107 = scmp.eq.s32.totalorder %s22, 1
      %p108 = por %p106, %p107
      %p110 = scmp.ne.s32.totalorder %s95, %s109
      %p111 = scmp.eq.s32.totalorder %s22, 0
      %p112 = por %p110, %p111
      %s114 = sadd.s32 %s113, 1
      %p117 = scmp.eq.s32.totalorder %s16, 1
      %p118 = scmp.ne.s32.totalorder %s113, %s115
      %p119 = scmp.eq.s32.totalorder %s16, 0
      %p120 = por %p118, %p119
      %p121 = scmp.ne.s32.totalorder %s113, %s115
      %p122 = scmp.eq.s32.totalorder %s21, 1
      %p123 = por %p121, %p122
      %p124 = scmp.ne.s32.totalorder %s115, %s116
      %p125 = scmp.eq.s32.totalorder %s21, 0
      %p126 = por %p124, %p125
      %p127 = scmp.ne.s32.totalorder %s115, %s116
      %p128 = scmp.eq.s32.totalorder %s22, 1
      %p129 = por %p127, %p128
      %p131 = scmp.ne.s32.totalorder %s116, %s130
      %p132 = scmp.eq.s32.totalorder %s22, 0
      %p133 = por %p131, %p132
      %s135 = sadd.s32 %s134, 1
      %p138 = scmp.eq.s32.totalorder %s16, 1
      %p139 = scmp.ne.s32.totalorder %s134, %s136
      %p140 = scmp.eq.s32.totalorder %s16, 0
      %p141 = por %p139, %p140
      %p142 = scmp.ne.s32.totalorder %s134, %s136
      %p143 = scmp.eq.s32.totalorder %s21, 1
      %p144 = por %p142, %p143
      %p145 = scmp.ne.s32.totalorder %s136, %s137
      %p146 = scmp.eq.s32.totalorder %s21, 0
      %p147 = por %p145, %p146
      %p148 = scmp.ne.s32.totalorder %s136, %s137
      %p149 = scmp.eq.s32.totalorder %s22, 1
      %p150 = por %p148, %p149
      %p152 = scmp.ne.s32.totalorder %s137, %s151
      %p153 = scmp.eq.s32.totalorder %s22, 0
      %p154 = por %p152, %p153
      %s155 = ssub.s32 %s16, %s23
      %p156 = scmp.eq.s32.totalorder %s155, 0
      %s158 = sadd.s32 %s157, 1
      %s159 = scalar_select %p156, %s157, %s158
      %p162 = pneg %p156
      %p163 = scmp.eq.s32.totalorder %s16, 1
      %p164 = por %p162, %p163
      %p165 = scmp.ne.s32.totalorder %s157, %s160
      %p166 = scmp.eq.s32.totalorder %s16, 0
      %p167 = por %p165, %p166
      %p168 = scmp.ne.s32.totalorder %s157, %s160
      %p169 = scmp.eq.s32.totalorder %s21, 1
      %p170 = por %p168, %p169
      %p171 = scmp.ne.s32.totalorder %s160, %s161
      %p172 = scmp.eq.s32.totalorder %s21, 0
      %p173 = por %p171, %p172
      %p174 = scmp.ne.s32.totalorder %s160, %s161
      %p175 = scmp.eq.s32.totalorder %s22, 1
      %p176 = por %p174, %p175
      %p178 = scmp.ne.s32.totalorder %s161, %s177
      %p179 = scmp.eq.s32.totalorder %s22, 0
      %p180 = por %p178, %p179
      %p181 = scmp.le.s32.totalorder 1, %s16
      %p182 = scmp.lt.s32.totalorder %s16, 3
      %p183 = pnand %p181, %p182
      %p184 = pneg %p183
      // Predicated region
      $region9: #{tpu_custom_call.1} parent=5 // pred_check
        _
      $region10: #{tpu_custom_call.1} parent=5 // pred_check_branch
        %186 = sbr.rel (%p183) target = $region12
      $region11: #{tpu_custom_call.1} parent=5 // pred_region
        %s187 = ssub.s32 %s16, 1
        // Predicated region
        $region13: #{tpu_custom_call.1} parent=11 // pred_check
          %p188 = pneg %p63
        $region14: #{tpu_custom_call.1} parent=11 // pred_check_branch
          %190 = sbr.rel (%p188) target = $region16
        $region15: #{tpu_custom_call.1} parent=11 // pred_region
          _
        $region16: #{tpu_custom_call.1} parent=11 // pred_fallthru
          _
        // Predicated region
        $region17: #{tpu_custom_call.1} parent=11 // pred_check
          %p191 = pneg %p84
        $region18: #{tpu_custom_call.1} parent=11 // pred_check_branch
          %193 = sbr.rel (%p191) target = $region20
        $region19: #{tpu_custom_call.1} parent=11 // pred_region
          _
        $region20: #{tpu_custom_call.1} parent=11 // pred_fallthru
          _
        // Predicated region
        $region21: #{tpu_custom_call.1} parent=11 // pred_check
          %p194 = pneg %p105
        $region22: #{tpu_custom_call.1} parent=11 // pred_check_branch
          %196 = sbr.rel (%p194) target = $region24
        $region23: #{tpu_custom_call.1} parent=11 // pred_region
          _
        $region24: #{tpu_custom_call.1} parent=11 // pred_fallthru
          _
        // Predicated region
        $region25: #{tpu_custom_call.1} parent=11 // pred_check
          %p197 = pneg %p126
        $region26: #{tpu_custom_call.1} parent=11 // pred_check_branch
          %199 = sbr.rel (%p197) target = $region28
        $region27: #{tpu_custom_call.1} parent=11 // pred_region
          _
        $region28: #{tpu_custom_call.1} parent=11 // pred_fallthru
          _
        // Predicated region
        $region29: #{tpu_custom_call.1} parent=11 // pred_check
          %p200 = pneg %p147
        $region30: #{tpu_custom_call.1} parent=11 // pred_check_branch
          %202 = sbr.rel (%p200) target = $region32
        $region31: #{tpu_custom_call.1} parent=11 // pred_region
          _
        $region32: #{tpu_custom_call.1} parent=11 // pred_fallthru
          _
      $region12: #{tpu_custom_call.1} parent=5 // pred_fallthru
        _
      %p203 = scmp.lt.s32.totalorder %s16, 2
      // Predicated region
      $region33: #{tpu_custom_call.1} parent=5 // pred_check
        %p204 = pneg %p203
      $region34: #{tpu_custom_call.1} parent=5 // pred_check_branch
        %206 = sbr.rel (%p204) target = $region36
      $region35: #{tpu_custom_call.1} parent=5 // pred_region
        // Predicated region
        $region37: #{tpu_custom_call.1} parent=35 // pred_check
          %p207 = pneg %p36
        $region38: #{tpu_custom_call.1} parent=35 // pred_check_branch
          %209 = sbr.rel (%p207) target = $region40
        $region39: #{tpu_custom_call.1} parent=35 // pred_region
          %s210 = sand.u32 %s26, 1
          %s211 = sand.u32 %s26, 1
          %s212 = smul.addr %s211, 64
          %s213 = scalar_lea.vmem [#allocation3], %s212
          %s214 = smul.addr %s16, 8
          %s215 = scalar_lea.vmem %s0, %s214
          // Predicated region
          $region41: #{tpu_custom_call.1} parent=39 // pred_check
            _
          $region42: #{tpu_custom_call.1} parent=39 // pred_check_branch
            %217 = sbr.rel (0) target = $region44
          $region43: #{tpu_custom_call.1} parent=39 // pred_region
            // Predicated region
            $region45: #{tpu_custom_call.1} parent=43 // pred_check
              _
            $region46: #{tpu_custom_call.1} parent=43 // pred_check_branch
              %219 = sbr.rel (0) target = $region48
            $region47: #{tpu_custom_call.1} parent=43 // pred_region
              // Predicated region
              $region60: #{tpu_custom_call.1} parent=47 // pred_check
                _
              $region61: #{tpu_custom_call.1} parent=47 // pred_check_branch
                %248 = sbr.rel (0) target = $region63
              $region62: #{tpu_custom_call.1} parent=47 // pred_region
                loop: start=0, step=1, limit=1
                $region64: #{tpu_custom_call.1} parent=62 // loop_pre_header
                  _
                $region65: #{tpu_custom_call.1} parent=62 // loop_header
                  %s250 = sphi 0, %s254
                  %p251 = scmp.ge.s32.totalorder %s250, 1
                  %s255 = sphi %s215, %s215
                  %s256 = sphi %s213, %s213
                $region66: #{tpu_custom_call.1} parent=62 // loop_header_branch
                  %253 = sbr.rel (%p251) target = $region70
                $region67: #{tpu_custom_call.1} parent=62 // loop_body
                  %v257 = vld [vmem:[%s255] sm:$0xff]
                  %258 = vst [vmem:[%s256] sm:$0xff] %v257
                  %v259 = vld [vmem:[%s255 + $0x10] sm:$0xff]
                  %260 = vst [vmem:[%s256 + $0x8] sm:$0xff] %v259
                  %v261 = vld [vmem:[%s255 + $0x20] sm:$0xff]
                  %262 = vst [vmem:[%s256 + $0x10] sm:$0xff] %v261
                  %v263 = vld [vmem:[%s255 + $0x30] sm:$0xff]
                  %264 = vst [vmem:[%s256 + $0x18] sm:$0xff] %v263
                  %v265 = vld [vmem:[%s255 + $0x40] sm:$0xff]
                  %266 = vst [vmem:[%s256 + $0x20] sm:$0xff] %v265
                  %v267 = vld [vmem:[%s255 + $0x50] sm:$0xff]
                  %268 = vst [vmem:[%s256 + $0x28] sm:$0xff] %v267
                  %v269 = vld [vmem:[%s255 + $0x60] sm:$0xff]
                  %270 = vst [vmem:[%s256 + $0x30] sm:$0xff] %v269
                  %v271 = vld [vmem:[%s255 + $0x70] sm:$0xff]
                  %272 = vst [vmem:[%s256 + $0x38] sm:$0xff] %v271
                $region68: #{tpu_custom_call.1} parent=62 // loop_footer
                  %s254 = sadd.s32 1, %s250
                $region69: #{tpu_custom_call.1} parent=62 // loop_footer_branch
                  %249 = sbr.rel target = $region65
                $region70: #{tpu_custom_call.1} parent=62 // loop_exit
                  _
              $region63: #{tpu_custom_call.1} parent=47 // pred_fallthru
                _
              // Predicated region
              $region71: #{tpu_custom_call.1} parent=47 // pred_check
                _
              $region72: #{tpu_custom_call.1} parent=47 // pred_check_branch
                %274 = sbr.rel target = $region74
              $region73: #{tpu_custom_call.1} parent=47 // pred_region
                _
              $region74: #{tpu_custom_call.1} parent=47 // pred_fallthru
                _
            $region48: #{tpu_custom_call.1} parent=43 // pred_fallthru
              _
            // Predicated region
            $region49: #{tpu_custom_call.1} parent=43 // pred_check
              _
            $region50: #{tpu_custom_call.1} parent=43 // pred_check_branch
              %221 = sbr.rel target = $region52
            $region51: #{tpu_custom_call.1} parent=43 // pred_region
              loop: start=0, step=1, limit=1
              $region53: #{tpu_custom_call.1} parent=51 // loop_pre_header
                _
              $region54: #{tpu_custom_call.1} parent=51 // loop_header
                %s224 = sphi 0, %s228
                %p225 = scmp.ge.s32.totalorder %s224, 1
                %s229 = sphi %s215, %s215
                %s230 = sphi %s213, %s213
              $region55: #{tpu_custom_call.1} parent=51 // loop_header_branch
                %227 = sbr.rel (%p225) target = $region59
              $region56: #{tpu_custom_call.1} parent=51 // loop_body
                %v231 = vld [vmem:[%s229] sm:$0xff]
                %232 = vst [vmem:[%s230] sm:$0xff] %v231
                %v233 = vld [vmem:[%s229 + $0x10] sm:$0xff]
                %234 = vst [vmem:[%s230 + $0x8] sm:$0xff] %v233
                %v235 = vld [vmem:[%s229 + $0x20] sm:$0xff]
                %236 = vst [vmem:[%s230 + $0x10] sm:$0xff] %v235
                %v237 = vld [vmem:[%s229 + $0x30] sm:$0xff]
                %238 = vst [vmem:[%s230 + $0x18] sm:$0xff] %v237
                %v239 = vld [vmem:[%s229 + $0x40] sm:$0xff]
                %240 = vst [vmem:[%s230 + $0x20] sm:$0xff] %v239
                %v241 = vld [vmem:[%s229 + $0x50] sm:$0xff]
                %242 = vst [vmem:[%s230 + $0x28] sm:$0xff] %v241
                %v243 = vld [vmem:[%s229 + $0x60] sm:$0xff]
                %244 = vst [vmem:[%s230 + $0x30] sm:$0xff] %v243
                %v245 = vld [vmem:[%s229 + $0x70] sm:$0xff]
                %246 = vst [vmem:[%s230 + $0x38] sm:$0xff] %v245
              $region57: #{tpu_custom_call.1} parent=51 // loop_footer
                %s228 = sadd.s32 1, %s224
              $region58: #{tpu_custom_call.1} parent=51 // loop_footer_branch
                %223 = sbr.rel target = $region54
              $region59: #{tpu_custom_call.1} parent=51 // loop_exit
                _
            $region52: #{tpu_custom_call.1} parent=43 // pred_fallthru
              _
          $region44: #{tpu_custom_call.1} parent=39 // pred_fallthru
            _
          %275 = vnop
        $region40: #{tpu_custom_call.1} parent=35 // pred_fallthru
          _
      $region36: #{tpu_custom_call.1} parent=5 // pred_fallthru
        _
      %p276 = scmp.le.s32.totalorder 1, %s16
      %p277 = scmp.lt.s32.totalorder %s16, 3
      %p278 = pnand %p276, %p277
      %p279 = pneg %p278
      // Predicated region
      $region75: #{tpu_custom_call.1} parent=5 // pred_check
        _
      $region76: #{tpu_custom_call.1} parent=5 // pred_check_branch
        %281 = sbr.rel (%p278) target = $region78
      $region77: #{tpu_custom_call.1} parent=5 // pred_region
        %s282 = ssub.s32 %s16, 1
        %s283 = sand.u32 %s29, 1
        %s284 = sand.u32 %s29, 1
        %s285 = smul.addr %s284, 64
        %s286 = scalar_lea.vmem [#allocation3], %s285
        // Predicated region
        $region79: #{tpu_custom_call.1} parent=77 // pred_check
          %p287 = pneg %p42
        $region80: #{tpu_custom_call.1} parent=77 // pred_check_branch
          %289 = sbr.rel (%p287) target = $region82
        $region81: #{tpu_custom_call.1} parent=77 // pred_region
          _
        $region82: #{tpu_custom_call.1} parent=77 // pred_fallthru
          _
        %s290 = sand.u32 %s29, 1
        %s291 = sand.u32 %s29, 1
        %s292 = smul.addr %s291, 64
        %s293 = scalar_lea.vmem [#allocation3], %s292
        %p294 = pneg %p42
        %p295 = pneg %p39
        %p296 = pneg %p63
        %p297 = pneg %p60
        %p298 = pneg %p84
        %p299 = pneg %p81
        %p300 = pneg %p105
        %p301 = pneg %p102
        %p302 = pneg %p126
        %p303 = pneg %p123
        %p304 = pneg %p147
        %p305 = pneg %p144
        %p306 = pneg %p173
        %p307 = pneg %p170
        %s308 = sand.u32 %s160, 1
        %s309 = scalar_lea.sflag [#allocation5], %s308
        %s310 = sand.u32 %s160, 1
        %s311 = scalar_lea.vmem [#allocation4], %s310
        %v313 = vld [vmem:[%s286] sm:$0xff]
        %v314 = vld [vmem:[%s286 + $0x8] sm:$0xff]
        %v315 = vld [vmem:[%s286 + $0x10] sm:$0xff]
        %v316 = vld [vmem:[%s286 + $0x18] sm:$0xff]
        %v317 = vld [vmem:[%s286 + $0x20] sm:$0xff]
        %v318 = vld [vmem:[%s286 + $0x28] sm:$0xff]
        %v319 = vld [vmem:[%s286 + $0x30] sm:$0xff]
        %v320 = vld [vmem:[%s286 + $0x38] sm:$0xff]
        %v321 = vpack.c.bf16 %v314, %v313
        %v322 = vpack.c.bf16 %v316, %v315
        %v323 = vpack.c.bf16 %v318, %v317
        %v324 = vpack.c.bf16 %v320, %v319
        %v325 = vsub.f32 %v313, %v317
        %v326 = vsub.f32 %v314, %v318
        %v327 = vsub.f32 %v315, %v319
        %v328 = vsub.f32 %v316, %v320
        %v329 = vand.u32 2147483647, %v325
        %v330 = vand.u32 2147483647, %v326
        %v331 = vand.u32 2147483647, %v327
        %v332 = vand.u32 2147483647, %v328
        %v333 = vpack.c.bf16 %v330, %v329
        %v334 = vpack.c.bf16 %v332, %v331
        %v335 = vld [vmem:[%s2] sm:$0xff]
        %v336 = vld [vmem:[%s2 + $0x8] sm:$0xff]
        %v337 = vld [vmem:[%s2 + $0x10] sm:$0xff]
        %v338 = vld [vmem:[%s2 + $0x18] sm:$0xff]
        %v339 = vld [vmem:[%s2 + $0x20] sm:$0xff]
        %v340 = vld [vmem:[%s2 + $0x28] sm:$0xff]
        %v341 = vld [vmem:[%s2 + $0x30] sm:$0xff]
        %v342 = vld [vmem:[%s2 + $0x38] sm:$0xff]
        %v343 = vld [vmem:[%s2 + $0x40] sm:$0xff]
        %v344 = vld [vmem:[%s2 + $0x48] sm:$0xff]
        %v345 = vld [vmem:[%s2 + $0x50] sm:$0xff]
        %v346 = vld [vmem:[%s2 + $0x58] sm:$0xff]
        %v347 = vld [vmem:[%s2 + $0x60] sm:$0xff]
        %v348 = vld [vmem:[%s2 + $0x68] sm:$0xff]
        %v349 = vld [vmem:[%s2 + $0x70] sm:$0xff]
        %v350 = vld [vmem:[%s2 + $0x78] sm:$0xff]
        %v351 = vld [vmem:[%s2 + $0x80] sm:$0xff]
        %v352 = vld [vmem:[%s2 + $0x88] sm:$0xff]
        %v353 = vld [vmem:[%s2 + $0x90] sm:$0xff]
        %v354 = vld [vmem:[%s2 + $0x98] sm:$0xff]
        %v355 = vld [vmem:[%s2 + $0xa0] sm:$0xff]
        %v356 = vld [vmem:[%s2 + $0xa8] sm:$0xff]
        %v357 = vld [vmem:[%s2 + $0xb0] sm:$0xff]
        %v358 = vld [vmem:[%s2 + $0xb8] sm:$0xff]
        %v359 = vld [vmem:[%s2 + $0xc0] sm:$0xff]
        %v360 = vld [vmem:[%s2 + $0xc8] sm:$0xff]
        %v361 = vld [vmem:[%s2 + $0xd0] sm:$0xff]
        %v362 = vld [vmem:[%s2 + $0xd8] sm:$0xff]
        %v363 = vld [vmem:[%s2 + $0xe0] sm:$0xff]
        %v364 = vld [vmem:[%s2 + $0xe8] sm:$0xff]
        %v365 = vld [vmem:[%s2 + $0xf0] sm:$0xff]
        %v366 = vld [vmem:[%s2 + $0xf8] sm:$0xff]
        %v367 = vld [vmem:[%s2 + $0x100] sm:$0xff]
        %v368 = vld [vmem:[%s2 + $0x108] sm:$0xff]
        %v369 = vld [vmem:[%s2 + $0x110] sm:$0xff]
        %v370 = vld [vmem:[%s2 + $0x118] sm:$0xff]
        %v371 = vld [vmem:[%s2 + $0x120] sm:$0xff]
        %v372 = vld [vmem:[%s2 + $0x128] sm:$0xff]
        %v373 = vld [vmem:[%s2 + $0x130] sm:$0xff]
        %v374 = vld [vmem:[%s2 + $0x138] sm:$0xff]
        %v375 = vld [vmem:[%s2 + $0x140] sm:$0xff]
        %v376 = vld [vmem:[%s2 + $0x148] sm:$0xff]
        %v377 = vld [vmem:[%s2 + $0x150] sm:$0xff]
        %v378 = vld [vmem:[%s2 + $0x158] sm:$0xff]
        %v379 = vld [vmem:[%s2 + $0x160] sm:$0xff]
        %v380 = vld [vmem:[%s2 + $0x168] sm:$0xff]
        %v381 = vld [vmem:[%s2 + $0x170] sm:$0xff]
        %v382 = vld [vmem:[%s2 + $0x178] sm:$0xff]
        %v383 = vld [vmem:[%s2 + $0x180] sm:$0xff]
        %v384 = vld [vmem:[%s2 + $0x188] sm:$0xff]
        %v385 = vld [vmem:[%s2 + $0x190] sm:$0xff]
        %v386 = vld [vmem:[%s2 + $0x198] sm:$0xff]
        %v387 = vld [vmem:[%s2 + $0x1a0] sm:$0xff]
        %v388 = vld [vmem:[%s2 + $0x1a8] sm:$0xff]
        %v389 = vld [vmem:[%s2 + $0x1b0] sm:$0xff]
        %v390 = vld [vmem:[%s2 + $0x1b8] sm:$0xff]
        %v391 = vld [vmem:[%s2 + $0x1c0] sm:$0xff]
        %v392 = vld [vmem:[%s2 + $0x1c8] sm:$0xff]
        %v393 = vld [vmem:[%s2 + $0x1d0] sm:$0xff]
        %v394 = vld [vmem:[%s2 + $0x1d8] sm:$0xff]
        %v395 = vld [vmem:[%s2 + $0x1e0] sm:$0xff]
        %v396 = vld [vmem:[%s2 + $0x1e8] sm:$0xff]
        %v397 = vld [vmem:[%s2 + $0x1f0] sm:$0xff]
        %v398 = vld [vmem:[%s2 + $0x1f8] sm:$0xff]
        %v399 = vld [vmem:[%s2 + $0x200] sm:$0xff]
        %v400 = vld [vmem:[%s2 + $0x208] sm:$0xff]
        %v401 = vld [vmem:[%s2 + $0x210] sm:$0xff]
        %v402 = vld [vmem:[%s2 + $0x218] sm:$0xff]
        %v403 = vld [vmem:[%s2 + $0x220] sm:$0xff]
        %v404 = vld [vmem:[%s2 + $0x228] sm:$0xff]
        %v405 = vld [vmem:[%s2 + $0x230] sm:$0xff]
        %v406 = vld [vmem:[%s2 + $0x238] sm:$0xff]
        %v407 = vld [vmem:[%s2 + $0x240] sm:$0xff]
        %v408 = vld [vmem:[%s2 + $0x248] sm:$0xff]
        %v409 = vld [vmem:[%s2 + $0x250] sm:$0xff]
        %v410 = vld [vmem:[%s2 + $0x258] sm:$0xff]
        %v411 = vld [vmem:[%s2 + $0x260] sm:$0xff]
        %v412 = vld [vmem:[%s2 + $0x268] sm:$0xff]
        %v413 = vld [vmem:[%s2 + $0x270] sm:$0xff]
        %v414 = vld [vmem:[%s2 + $0x278] sm:$0xff]
        %v415 = vld [vmem:[%s2 + $0x280] sm:$0xff]
        %v416 = vld [vmem:[%s2 + $0x288] sm:$0xff]
        %v417 = vld [vmem:[%s2 + $0x290] sm:$0xff]
        %v418 = vld [vmem:[%s2 + $0x298] sm:$0xff]
        %v419 = vld [vmem:[%s2 + $0x2a0] sm:$0xff]
        %v420 = vld [vmem:[%s2 + $0x2a8] sm:$0xff]
        %v421 = vld [vmem:[%s2 + $0x2b0] sm:$0xff]
        %v422 = vld [vmem:[%s2 + $0x2b8] sm:$0xff]
        %v423 = vld [vmem:[%s2 + $0x2c0] sm:$0xff]
        %v424 = vld [vmem:[%s2 + $0x2c8] sm:$0xff]
        %v425 = vld [vmem:[%s2 + $0x2d0] sm:$0xff]
        %v426 = vld [vmem:[%s2 + $0x2d8] sm:$0xff]
        %v427 = vld [vmem:[%s2 + $0x2e0] sm:$0xff]
        %v428 = vld [vmem:[%s2 + $0x2e8] sm:$0xff]
        %v429 = vld [vmem:[%s2 + $0x2f0] sm:$0xff]
        %v430 = vld [vmem:[%s2 + $0x2f8] sm:$0xff]
        %v431 = vld [vmem:[%s2 + $0x300] sm:$0xff]
        %v432 = vld [vmem:[%s2 + $0x308] sm:$0xff]
        %v433 = vld [vmem:[%s2 + $0x310] sm:$0xff]
        %v434 = vld [vmem:[%s2 + $0x318] sm:$0xff]
        %v435 = vld [vmem:[%s2 + $0x320] sm:$0xff]
        %v436 = vld [vmem:[%s2 + $0x328] sm:$0xff]
        %v437 = vld [vmem:[%s2 + $0x330] sm:$0xff]
        %v438 = vld [vmem:[%s2 + $0x338] sm:$0xff]
        %v439 = vld [vmem:[%s2 + $0x340] sm:$0xff]
        %v440 = vld [vmem:[%s2 + $0x348] sm:$0xff]
        %v441 = vld [vmem:[%s2 + $0x350] sm:$0xff]
        %v442 = vld [vmem:[%s2 + $0x358] sm:$0xff]
        %v443 = vld [vmem:[%s2 + $0x360] sm:$0xff]
        %v444 = vld [vmem:[%s2 + $0x368] sm:$0xff]
        %v445 = vld [vmem:[%s2 + $0x370] sm:$0xff]
        %v446 = vld [vmem:[%s2 + $0x378] sm:$0xff]
        %v447 = vld [vmem:[%s2 + $0x380] sm:$0xff]
        %v448 = vld [vmem:[%s2 + $0x388] sm:$0xff]
        %v449 = vld [vmem:[%s2 + $0x390] sm:$0xff]
        %v450 = vld [vmem:[%s2 + $0x398] sm:$0xff]
        %v451 = vld [vmem:[%s2 + $0x3a0] sm:$0xff]
        %v452 = vld [vmem:[%s2 + $0x3a8] sm:$0xff]
        %v453 = vld [vmem:[%s2 + $0x3b0] sm:$0xff]
        %v454 = vld [vmem:[%s2 + $0x3b8] sm:$0xff]
        %v455 = vld [vmem:[%s2 + $0x3c0] sm:$0xff]
        %v456 = vld [vmem:[%s2 + $0x3c8] sm:$0xff]
        %v457 = vld [vmem:[%s2 + $0x3d0] sm:$0xff]
        %v458 = vld [vmem:[%s2 + $0x3d8] sm:$0xff]
        %v459 = vld [vmem:[%s2 + $0x3e0] sm:$0xff]
        %v460 = vld [vmem:[%s2 + $0x3e8] sm:$0xff]
        %v461 = vld [vmem:[%s2 + $0x3f0] sm:$0xff]
        %v462 = vld [vmem:[%s2 + $0x3f8] sm:$0xff]
        %v463 = vld [vmem:[%s2 + $0x400] sm:$0xff]
        %v464 = vld [vmem:[%s2 + $0x408] sm:$0xff]
        %v465 = vld [vmem:[%s2 + $0x410] sm:$0xff]
        %v466 = vld [vmem:[%s2 + $0x418] sm:$0xff]
        %v467 = vld [vmem:[%s2 + $0x420] sm:$0xff]
        %v468 = vld [vmem:[%s2 + $0x428] sm:$0xff]
        %v469 = vld [vmem:[%s2 + $0x430] sm:$0xff]
        %v470 = vld [vmem:[%s2 + $0x438] sm:$0xff]
        %v471 = vld [vmem:[%s2 + $0x440] sm:$0xff]
        %v472 = vld [vmem:[%s2 + $0x448] sm:$0xff]
        %v473 = vld [vmem:[%s2 + $0x450] sm:$0xff]
        %v474 = vld [vmem:[%s2 + $0x458] sm:$0xff]
        %v475 = vld [vmem:[%s2 + $0x460] sm:$0xff]
        %v476 = vld [vmem:[%s2 + $0x468] sm:$0xff]
        %v477 = vld [vmem:[%s2 + $0x470] sm:$0xff]
        %v478 = vld [vmem:[%s2 + $0x478] sm:$0xff]
        %v479 = vld [vmem:[%s2 + $0x480] sm:$0xff]
        %v480 = vld [vmem:[%s2 + $0x488] sm:$0xff]
        %v481 = vld [vmem:[%s2 + $0x490] sm:$0xff]
        %v482 = vld [vmem:[%s2 + $0x498] sm:$0xff]
        %v483 = vld [vmem:[%s2 + $0x4a0] sm:$0xff]
        %v484 = vld [vmem:[%s2 + $0x4a8] sm:$0xff]
        %v485 = vld [vmem:[%s2 + $0x4b0] sm:$0xff]
        %v486 = vld [vmem:[%s2 + $0x4b8] sm:$0xff]
        %v487 = vld [vmem:[%s2 + $0x4c0] sm:$0xff]
        %v488 = vld [vmem:[%s2 + $0x4c8] sm:$0xff]
        %v489 = vld [vmem:[%s2 + $0x4d0] sm:$0xff]
        %v490 = vld [vmem:[%s2 + $0x4d8] sm:$0xff]
        %v491 = vld [vmem:[%s2 + $0x4e0] sm:$0xff]
        %v492 = vld [vmem:[%s2 + $0x4e8] sm:$0xff]
        %v493 = vld [vmem:[%s2 + $0x4f0] sm:$0xff]
        %v494 = vld [vmem:[%s2 + $0x4f8] sm:$0xff]
        %v495 = vld [vmem:[%s2 + $0x500] sm:$0xff]
        %v496 = vld [vmem:[%s2 + $0x508] sm:$0xff]
        %v497 = vld [vmem:[%s2 + $0x510] sm:$0xff]
        %v498 = vld [vmem:[%s2 + $0x518] sm:$0xff]
        %v499 = vld [vmem:[%s2 + $0x520] sm:$0xff]
        %v500 = vld [vmem:[%s2 + $0x528] sm:$0xff]
        %v501 = vld [vmem:[%s2 + $0x530] sm:$0xff]
        %v502 = vld [vmem:[%s2 + $0x538] sm:$0xff]
        %v503 = vld [vmem:[%s2 + $0x540] sm:$0xff]
        %v504 = vld [vmem:[%s2 + $0x548] sm:$0xff]
        %v505 = vld [vmem:[%s2 + $0x550] sm:$0xff]
        %v506 = vld [vmem:[%s2 + $0x558] sm:$0xff]
        %v507 = vld [vmem:[%s2 + $0x560] sm:$0xff]
        %v508 = vld [vmem:[%s2 + $0x568] sm:$0xff]
        %v509 = vld [vmem:[%s2 + $0x570] sm:$0xff]
        %v510 = vld [vmem:[%s2 + $0x578] sm:$0xff]
        %v511 = vld [vmem:[%s2 + $0x580] sm:$0xff]
        %v512 = vld [vmem:[%s2 + $0x588] sm:$0xff]
        %v513 = vld [vmem:[%s2 + $0x590] sm:$0xff]
        %v514 = vld [vmem:[%s2 + $0x598] sm:$0xff]
        %v515 = vld [vmem:[%s2 + $0x5a0] sm:$0xff]
        %v516 = vld [vmem:[%s2 + $0x5a8] sm:$0xff]
        %v517 = vld [vmem:[%s2 + $0x5b0] sm:$0xff]
        %v518 = vld [vmem:[%s2 + $0x5b8] sm:$0xff]
        %v519 = vld [vmem:[%s2 + $0x5c0] sm:$0xff]
        %v520 = vld [vmem:[%s2 + $0x5c8] sm:$0xff]
        %v521 = vld [vmem:[%s2 + $0x5d0] sm:$0xff]
        %v522 = vld [vmem:[%s2 + $0x5d8] sm:$0xff]
        %v523 = vld [vmem:[%s2 + $0x5e0] sm:$0xff]
        %v524 = vld [vmem:[%s2 + $0x5e8] sm:$0xff]
        %v525 = vld [vmem:[%s2 + $0x5f0] sm:$0xff]
        %v526 = vld [vmem:[%s2 + $0x5f8] sm:$0xff]
        %v527 = vld [vmem:[%s1] sm:$0xf]
        %v528 = vld [vmem:[%s1 + $0x4] sm:$0xf]
        %v529 = vld [vmem:[%s1 + $0x8] sm:$0xf]
        %v530 = vld [vmem:[%s1 + $0xc] sm:$0xf]
        %v531 = vld [vmem:[%s1 + $0x10] sm:$0xf]
        %v532 = vld [vmem:[%s1 + $0x14] sm:$0xf]
        %v533 = vld [vmem:[%s1 + $0x18] sm:$0xf]
        %v534 = vld [vmem:[%s1 + $0x1c] sm:$0xf]
        %v535 = vld [vmem:[%s1 + $0x20] sm:$0xf]
        %v536 = vld [vmem:[%s1 + $0x24] sm:$0xf]
        %v537 = vld [vmem:[%s1 + $0x28] sm:$0xf]
        %v538 = vld [vmem:[%s1 + $0x2c] sm:$0xf]
        %v539 = vld [vmem:[%s1 + $0x30] sm:$0xf]
        %v540 = vld [vmem:[%s1 + $0x34] sm:$0xf]
        %v541 = vld [vmem:[%s1 + $0x38] sm:$0xf]
        %v542 = vld [vmem:[%s1 + $0x3c] sm:$0xf]
        %v543 = vld [vmem:[%s1 + $0x40] sm:$0xf]
        %v544 = vld [vmem:[%s1 + $0x44] sm:$0xf]
        %v545 = vld [vmem:[%s1 + $0x48] sm:$0xf]
        %v546 = vld [vmem:[%s1 + $0x4c] sm:$0xf]
        %v547 = vld [vmem:[%s1 + $0x50] sm:$0xf]
        %v548 = vld [vmem:[%s1 + $0x54] sm:$0xf]
        %v549 = vld [vmem:[%s1 + $0x58] sm:$0xf]
        %v550 = vld [vmem:[%s1 + $0x5c] sm:$0xf]
        %v551 = vld [vmem:[%s1 + $0x60] sm:$0xf]
        %v552 = vld [vmem:[%s1 + $0x64] sm:$0xf]
        %v553 = vld [vmem:[%s1 + $0x68] sm:$0xf]
        %v554 = vld [vmem:[%s1 + $0x6c] sm:$0xf]
        %v555 = vld [vmem:[%s1 + $0x70] sm:$0xf]
        %v556 = vld [vmem:[%s1 + $0x74] sm:$0xf]
        %v557 = vld [vmem:[%s1 + $0x78] sm:$0xf]
        %v558 = vld [vmem:[%s1 + $0x7c] sm:$0xf]
        %v559 = vld [vmem:[%s1 + $0x80] sm:$0xf]
        %v560 = vld [vmem:[%s1 + $0x84] sm:$0xf]
        %v561 = vld [vmem:[%s1 + $0x88] sm:$0xf]
        %v562 = vld [vmem:[%s1 + $0x8c] sm:$0xf]
        %v563 = vld [vmem:[%s1 + $0x90] sm:$0xf]
        %v564 = vld [vmem:[%s1 + $0x94] sm:$0xf]
        %v565 = vld [vmem:[%s1 + $0x98] sm:$0xf]
        %v566 = vld [vmem:[%s1 + $0x9c] sm:$0xf]
        %v567 = vld [vmem:[%s1 + $0xa0] sm:$0xf]
        %v568 = vld [vmem:[%s1 + $0xa4] sm:$0xf]
        %v569 = vld [vmem:[%s1 + $0xa8] sm:$0xf]
        %v570 = vld [vmem:[%s1 + $0xac] sm:$0xf]
        %v571 = vld [vmem:[%s1 + $0xb0] sm:$0xf]
        %v572 = vld [vmem:[%s1 + $0xb4] sm:$0xf]
        %v573 = vld [vmem:[%s1 + $0xb8] sm:$0xf]
        %v574 = vld [vmem:[%s1 + $0xbc] sm:$0xf]
        %v575 = vld [vmem:[%s1 + $0xc0] sm:$0xf]
        %v576 = vld [vmem:[%s1 + $0xc4] sm:$0xf]
        %v577 = vld [vmem:[%s1 + $0xc8] sm:$0xf]
        %v578 = vld [vmem:[%s1 + $0xcc] sm:$0xf]
        %v579 = vld [vmem:[%s1 + $0xd0] sm:$0xf]
        %v580 = vld [vmem:[%s1 + $0xd4] sm:$0xf]
        %v581 = vld [vmem:[%s1 + $0xd8] sm:$0xf]
        %v582 = vld [vmem:[%s1 + $0xdc] sm:$0xf]
        %v583 = vld [vmem:[%s1 + $0xe0] sm:$0xf]
        %v584 = vld [vmem:[%s1 + $0xe4] sm:$0xf]
        %v585 = vld [vmem:[%s1 + $0xe8] sm:$0xf]
        %v586 = vld [vmem:[%s1 + $0xec] sm:$0xf]
        %v587 = vld [vmem:[%s1 + $0xf0] sm:$0xf]
        %v588 = vld [vmem:[%s1 + $0xf4] sm:$0xf]
        %v589 = vld [vmem:[%s1 + $0xf8] sm:$0xf]
        %v590 = vld [vmem:[%s1 + $0xfc] sm:$0xf]
        %v591 = vld [vmem:[%s1 + $0x100] sm:$0xf]
        %v592 = vld [vmem:[%s1 + $0x104] sm:$0xf]
        %v593 = vld [vmem:[%s1 + $0x108] sm:$0xf]
        %v594 = vld [vmem:[%s1 + $0x10c] sm:$0xf]
        %v595 = vld [vmem:[%s1 + $0x110] sm:$0xf]
        %v596 = vld [vmem:[%s1 + $0x114] sm:$0xf]
        %v597 = vld [vmem:[%s1 + $0x118] sm:$0xf]
        %v598 = vld [vmem:[%s1 + $0x11c] sm:$0xf]
        %v599 = vld [vmem:[%s1 + $0x120] sm:$0xf]
        %v600 = vld [vmem:[%s1 + $0x124] sm:$0xf]
        %v601 = vld [vmem:[%s1 + $0x128] sm:$0xf]
        %v602 = vld [vmem:[%s1 + $0x12c] sm:$0xf]
        %v603 = vld [vmem:[%s1 + $0x130] sm:$0xf]
        %v604 = vld [vmem:[%s1 + $0x134] sm:$0xf]
        %v605 = vld [vmem:[%s1 + $0x138] sm:$0xf]
        %v606 = vld [vmem:[%s1 + $0x13c] sm:$0xf]
        %v607 = vld [vmem:[%s1 + $0x140] sm:$0xf]
        %v608 = vld [vmem:[%s1 + $0x144] sm:$0xf]
        %v609 = vld [vmem:[%s1 + $0x148] sm:$0xf]
        %v610 = vld [vmem:[%s1 + $0x14c] sm:$0xf]
        %v611 = vld [vmem:[%s1 + $0x150] sm:$0xf]
        %v612 = vld [vmem:[%s1 + $0x154] sm:$0xf]
        %v613 = vld [vmem:[%s1 + $0x158] sm:$0xf]
        %v614 = vld [vmem:[%s1 + $0x15c] sm:$0xf]
        %v615 = vld [vmem:[%s1 + $0x160] sm:$0xf]
        %v616 = vld [vmem:[%s1 + $0x164] sm:$0xf]
        %v617 = vld [vmem:[%s1 + $0x168] sm:$0xf]
        %v618 = vld [vmem:[%s1 + $0x16c] sm:$0xf]
        %v619 = vld [vmem:[%s1 + $0x170] sm:$0xf]
        %v620 = vld [vmem:[%s1 + $0x174] sm:$0xf]
        %v621 = vld [vmem:[%s1 + $0x178] sm:$0xf]
        %v622 = vld [vmem:[%s1 + $0x17c] sm:$0xf]
        %v623 = vld [vmem:[%s1 + $0x180] sm:$0xf]
        %v624 = vld [vmem:[%s1 + $0x184] sm:$0xf]
        %v625 = vld [vmem:[%s1 + $0x188] sm:$0xf]
        %v626 = vld [vmem:[%s1 + $0x18c] sm:$0xf]
        %v627 = vld [vmem:[%s1 + $0x190] sm:$0xf]
        %v628 = vld [vmem:[%s1 + $0x194] sm:$0xf]
        %v629 = vld [vmem:[%s1 + $0x198] sm:$0xf]
        %v630 = vld [vmem:[%s1 + $0x19c] sm:$0xf]
        %v631 = vld [vmem:[%s1 + $0x1a0] sm:$0xf]
        %v632 = vld [vmem:[%s1 + $0x1a4] sm:$0xf]
        %v633 = vld [vmem:[%s1 + $0x1a8] sm:$0xf]
        %v634 = vld [vmem:[%s1 + $0x1ac] sm:$0xf]
        %v635 = vld [vmem:[%s1 + $0x1b0] sm:$0xf]
        %v636 = vld [vmem:[%s1 + $0x1b4] sm:$0xf]
        %v637 = vld [vmem:[%s1 + $0x1b8] sm:$0xf]
        %v638 = vld [vmem:[%s1 + $0x1bc] sm:$0xf]
        %v639 = vld [vmem:[%s1 + $0x1c0] sm:$0xf]
        %v640 = vld [vmem:[%s1 + $0x1c4] sm:$0xf]
        %v641 = vld [vmem:[%s1 + $0x1c8] sm:$0xf]
        %v642 = vld [vmem:[%s1 + $0x1cc] sm:$0xf]
        %v643 = vld [vmem:[%s1 + $0x1d0] sm:$0xf]
        %v644 = vld [vmem:[%s1 + $0x1d4] sm:$0xf]
        %v645 = vld [vmem:[%s1 + $0x1d8] sm:$0xf]
        %v646 = vld [vmem:[%s1 + $0x1dc] sm:$0xf]
        %v647 = vld [vmem:[%s1 + $0x1e0] sm:$0xf]
        %v648 = vld [vmem:[%s1 + $0x1e4] sm:$0xf]
        %v649 = vld [vmem:[%s1 + $0x1e8] sm:$0xf]
        %v650 = vld [vmem:[%s1 + $0x1ec] sm:$0xf]
        %v651 = vld [vmem:[%s1 + $0x1f0] sm:$0xf]
        %v652 = vld [vmem:[%s1 + $0x1f4] sm:$0xf]
        %v653 = vld [vmem:[%s1 + $0x1f8] sm:$0xf]
        %v654 = vld [vmem:[%s1 + $0x1fc] sm:$0xf]
        %656 = vset.pattern.permute.xlu0 0
        %657 = vperm.xlu0 %656, %v335
        %v658 = vpop.permute.xlu0 %657
        %661 = vset.pattern.permute.xlu0 0
        %662 = vperm.xlu0 %661, %v336
        %v663 = vpop.permute.xlu0 %662
        %666 = vset.pattern.permute.xlu0 0
        %667 = vperm.xlu0 %666, %v337
        %v668 = vpop.permute.xlu0 %667
        %671 = vset.pattern.permute.xlu0 0
        %672 = vperm.xlu0 %671, %v338
        %v673 = vpop.permute.xlu0 %672
        %676 = vset.pattern.permute.xlu0 0
        %677 = vperm.xlu0 %676, %v339
        %v678 = vpop.permute.xlu0 %677
        %681 = vset.pattern.permute.xlu0 0
        %682 = vperm.xlu0 %681, %v340
        %v683 = vpop.permute.xlu0 %682
        %686 = vset.pattern.permute.xlu0 0
        %687 = vperm.xlu0 %686, %v341
        %v688 = vpop.permute.xlu0 %687
        %691 = vset.pattern.permute.xlu0 0
        %692 = vperm.xlu0 %691, %v342
        %v693 = vpop.permute.xlu0 %692
        %696 = vset.pattern.permute.xlu0 0
        %697 = vperm.xlu0 %696, %v343
        %v698 = vpop.permute.xlu0 %697
        %701 = vset.pattern.permute.xlu0 0
        %702 = vperm.xlu0 %701, %v344
        %v703 = vpop.permute.xlu0 %702
        %706 = vset.pattern.permute.xlu0 0
        %707 = vperm.xlu0 %706, %v345
        %v708 = vpop.permute.xlu0 %707
        %711 = vset.pattern.permute.xlu0 0
        %712 = vperm.xlu0 %711, %v346
        %v713 = vpop.permute.xlu0 %712
        %716 = vset.pattern.permute.xlu0 0
        %717 = vperm.xlu0 %716, %v347
        %v718 = vpop.permute.xlu0 %717
        %721 = vset.pattern.permute.xlu0 0
        %722 = vperm.xlu0 %721, %v348
        %v723 = vpop.permute.xlu0 %722
        %726 = vset.pattern.permute.xlu0 0
        %727 = vperm.xlu0 %726, %v349
        %v728 = vpop.permute.xlu0 %727
        %731 = vset.pattern.permute.xlu0 0
        %732 = vperm.xlu0 %731, %v350
        %v733 = vpop.permute.xlu0 %732
        %736 = vset.pattern.permute.xlu0 0
        %737 = vperm.xlu0 %736, %v351
        %v738 = vpop.permute.xlu0 %737
        %741 = vset.pattern.permute.xlu0 0
        %742 = vperm.xlu0 %741, %v352
        %v743 = vpop.permute.xlu0 %742
        %746 = vset.pattern.permute.xlu0 0
        %747 = vperm.xlu0 %746, %v353
        %v748 = vpop.permute.xlu0 %747
        %751 = vset.pattern.permute.xlu0 0
        %752 = vperm.xlu0 %751, %v354
        %v753 = vpop.permute.xlu0 %752
        %756 = vset.pattern.permute.xlu0 0
        %757 = vperm.xlu0 %756, %v355
        %v758 = vpop.permute.xlu0 %757
        %761 = vset.pattern.permute.xlu0 0
        %762 = vperm.xlu0 %761, %v356
        %v763 = vpop.permute.xlu0 %762
        %766 = vset.pattern.permute.xlu0 0
        %767 = vperm.xlu0 %766, %v357
        %v768 = vpop.permute.xlu0 %767
        %771 = vset.pattern.permute.xlu0 0
        %772 = vperm.xlu0 %771, %v358
        %v773 = vpop.permute.xlu0 %772
        %776 = vset.pattern.permute.xlu0 0
        %777 = vperm.xlu0 %776, %v359
        %v778 = vpop.permute.xlu0 %777
        %781 = vset.pattern.permute.xlu0 0
        %782 = vperm.xlu0 %781, %v360
        %v783 = vpop.permute.xlu0 %782
        %786 = vset.pattern.permute.xlu0 0
        %787 = vperm.xlu0 %786, %v361
        %v788 = vpop.permute.xlu0 %787
        %791 = vset.pattern.permute.xlu0 0
        %792 = vperm.xlu0 %791, %v362
        %v793 = vpop.permute.xlu0 %792
        %796 = vset.pattern.permute.xlu0 0
        %797 = vperm.xlu0 %796, %v363
        %v798 = vpop.permute.xlu0 %797
        %801 = vset.pattern.permute.xlu0 0
        %802 = vperm.xlu0 %801, %v364
        %v803 = vpop.permute.xlu0 %802
        %806 = vset.pattern.permute.xlu0 0
        %807 = vperm.xlu0 %806, %v365
        %v808 = vpop.permute.xlu0 %807
        %811 = vset.pattern.permute.xlu0 0
        %812 = vperm.xlu0 %811, %v366
        %v813 = vpop.permute.xlu0 %812
        %816 = vset.pattern.permute.xlu0 0
        %817 = vperm.xlu0 %816, %v367
        %v818 = vpop.permute.xlu0 %817
        %821 = vset.pattern.permute.xlu0 0
        %822 = vperm.xlu0 %821, %v368
        %v823 = vpop.permute.xlu0 %822
        %826 = vset.pattern.permute.xlu0 0
        %827 = vperm.xlu0 %826, %v369
        %v828 = vpop.permute.xlu0 %827
        %831 = vset.pattern.permute.xlu0 0
        %832 = vperm.xlu0 %831, %v370
        %v833 = vpop.permute.xlu0 %832
        %836 = vset.pattern.permute.xlu0 0
        %837 = vperm.xlu0 %836, %v371
        %v838 = vpop.permute.xlu0 %837
        %841 = vset.pattern.permute.xlu0 0
        %842 = vperm.xlu0 %841, %v372
        %v843 = vpop.permute.xlu0 %842
        %846 = vset.pattern.permute.xlu0 0
        %847 = vperm.xlu0 %846, %v373
        %v848 = vpop.permute.xlu0 %847
        %851 = vset.pattern.permute.xlu0 0
        %852 = vperm.xlu0 %851, %v374
        %v853 = vpop.permute.xlu0 %852
        %856 = vset.pattern.permute.xlu0 0
        %857 = vperm.xlu0 %856, %v375
        %v858 = vpop.permute.xlu0 %857
        %861 = vset.pattern.permute.xlu0 0
        %862 = vperm.xlu0 %861, %v376
        %v863 = vpop.permute.xlu0 %862
        %866 = vset.pattern.permute.xlu0 0
        %867 = vperm.xlu0 %866, %v377
        %v868 = vpop.permute.xlu0 %867
        %871 = vset.pattern.permute.xlu0 0
        %872 = vperm.xlu0 %871, %v378
        %v873 = vpop.permute.xlu0 %872
        %876 = vset.pattern.permute.xlu0 0
        %877 = vperm.xlu0 %876, %v379
        %v878 = vpop.permute.xlu0 %877
        %881 = vset.pattern.permute.xlu0 0
        %882 = vperm.xlu0 %881, %v380
        %v883 = vpop.permute.xlu0 %882
        %886 = vset.pattern.permute.xlu0 0
        %887 = vperm.xlu0 %886, %v381
        %v888 = vpop.permute.xlu0 %887
        %891 = vset.pattern.permute.xlu0 0
        %892 = vperm.xlu0 %891, %v382
        %v893 = vpop.permute.xlu0 %892
        %896 = vset.pattern.permute.xlu0 0
        %897 = vperm.xlu0 %896, %v383
        %v898 = vpop.permute.xlu0 %897
        %901 = vset.pattern.permute.xlu0 0
        %902 = vperm.xlu0 %901, %v384
        %v903 = vpop.permute.xlu0 %902
        %906 = vset.pattern.permute.xlu0 0
        %907 = vperm.xlu0 %906, %v385
        %v908 = vpop.permute.xlu0 %907
        %911 = vset.pattern.permute.xlu0 0
        %912 = vperm.xlu0 %911, %v386
        %v913 = vpop.permute.xlu0 %912
        %916 = vset.pattern.permute.xlu0 0
        %917 = vperm.xlu0 %916, %v387
        %v918 = vpop.permute.xlu0 %917
        %921 = vset.pattern.permute.xlu0 0
        %922 = vperm.xlu0 %921, %v388
        %v923 = vpop.permute.xlu0 %922
        %926 = vset.pattern.permute.xlu0 0
        %927 = vperm.xlu0 %926, %v389
        %v928 = vpop.permute.xlu0 %927
        %931 = vset.pattern.permute.xlu0 0
        %932 = vperm.xlu0 %931, %v390
        %v933 = vpop.permute.xlu0 %932
        %936 = vset.pattern.permute.xlu0 0
        %937 = vperm.xlu0 %936, %v391
        %v938 = vpop.permute.xlu0 %937
        %941 = vset.pattern.permute.xlu0 0
        %942 = vperm.xlu0 %941, %v392
        %v943 = vpop.permute.xlu0 %942
        %946 = vset.pattern.permute.xlu0 0
        %947 = vperm.xlu0 %946, %v393
        %v948 = vpop.permute.xlu0 %947
        %951 = vset.pattern.permute.xlu0 0
        %952 = vperm.xlu0 %951, %v394
        %v953 = vpop.permute.xlu0 %952
        %956 = vset.pattern.permute.xlu0 0
        %957 = vperm.xlu0 %956, %v395
        %v958 = vpop.permute.xlu0 %957
        %961 = vset.pattern.permute.xlu0 0
        %962 = vperm.xlu0 %961, %v396
        %v963 = vpop.permute.xlu0 %962
        %966 = vset.pattern.permute.xlu0 0
        %967 = vperm.xlu0 %966, %v397
        %v968 = vpop.permute.xlu0 %967
        %971 = vset.pattern.permute.xlu0 0
        %972 = vperm.xlu0 %971, %v398
        %v973 = vpop.permute.xlu0 %972
        %976 = vset.pattern.permute.xlu0 0
        %977 = vperm.xlu0 %976, %v399
        %v978 = vpop.permute.xlu0 %977
        %981 = vset.pattern.permute.xlu0 0
        %982 = vperm.xlu0 %981, %v400
        %v983 = vpop.permute.xlu0 %982
        %986 = vset.pattern.permute.xlu0 0
        %987 = vperm.xlu0 %986, %v401
        %v988 = vpop.permute.xlu0 %987
        %991 = vset.pattern.permute.xlu0 0
        %992 = vperm.xlu0 %991, %v402
        %v993 = vpop.permute.xlu0 %992
        %996 = vset.pattern.permute.xlu0 0
        %997 = vperm.xlu0 %996, %v403
        %v998 = vpop.permute.xlu0 %997
        %1001 = vset.pattern.permute.xlu0 0
        %1002 = vperm.xlu0 %1001, %v404
        %v1003 = vpop.permute.xlu0 %1002
        %1006 = vset.pattern.permute.xlu0 0
        %1007 = vperm.xlu0 %1006, %v405
        %v1008 = vpop.permute.xlu0 %1007
        %1011 = vset.pattern.permute.xlu0 0
        %1012 = vperm.xlu0 %1011, %v406
        %v1013 = vpop.permute.xlu0 %1012
        %1016 = vset.pattern.permute.xlu0 0
        %1017 = vperm.xlu0 %1016, %v407
        %v1018 = vpop.permute.xlu0 %1017
        %1021 = vset.pattern.permute.xlu0 0
        %1022 = vperm.xlu0 %1021, %v408
        %v1023 = vpop.permute.xlu0 %1022
        %1026 = vset.pattern.permute.xlu0 0
        %1027 = vperm.xlu0 %1026, %v409
        %v1028 = vpop.permute.xlu0 %1027
        %1031 = vset.pattern.permute.xlu0 0
        %1032 = vperm.xlu0 %1031, %v410
        %v1033 = vpop.permute.xlu0 %1032
        %1036 = vset.pattern.permute.xlu0 0
        %1037 = vperm.xlu0 %1036, %v411
        %v1038 = vpop.permute.xlu0 %1037
        %1041 = vset.pattern.permute.xlu0 0
        %1042 = vperm.xlu0 %1041, %v412
        %v1043 = vpop.permute.xlu0 %1042
        %1046 = vset.pattern.permute.xlu0 0
        %1047 = vperm.xlu0 %1046, %v413
        %v1048 = vpop.permute.xlu0 %1047
        %1051 = vset.pattern.permute.xlu0 0
        %1052 = vperm.xlu0 %1051, %v414
        %v1053 = vpop.permute.xlu0 %1052
        %1056 = vset.pattern.permute.xlu0 0
        %1057 = vperm.xlu0 %1056, %v415
        %v1058 = vpop.permute.xlu0 %1057
        %1061 = vset.pattern.permute.xlu0 0
        %1062 = vperm.xlu0 %1061, %v416
        %v1063 = vpop.permute.xlu0 %1062
        %1066 = vset.pattern.permute.xlu0 0
        %1067 = vperm.xlu0 %1066, %v417
        %v1068 = vpop.permute.xlu0 %1067
        %1071 = vset.pattern.permute.xlu0 0
        %1072 = vperm.xlu0 %1071, %v418
        %v1073 = vpop.permute.xlu0 %1072
        %1076 = vset.pattern.permute.xlu0 0
        %1077 = vperm.xlu0 %1076, %v419
        %v1078 = vpop.permute.xlu0 %1077
        %1081 = vset.pattern.permute.xlu0 0
        %1082 = vperm.xlu0 %1081, %v420
        %v1083 = vpop.permute.xlu0 %1082
        %1086 = vset.pattern.permute.xlu0 0
        %1087 = vperm.xlu0 %1086, %v421
        %v1088 = vpop.permute.xlu0 %1087
        %1091 = vset.pattern.permute.xlu0 0
        %1092 = vperm.xlu0 %1091, %v422
        %v1093 = vpop.permute.xlu0 %1092
        %1096 = vset.pattern.permute.xlu0 0
        %1097 = vperm.xlu0 %1096, %v423
        %v1098 = vpop.permute.xlu0 %1097
        %1101 = vset.pattern.permute.xlu0 0
        %1102 = vperm.xlu0 %1101, %v424
        %v1103 = vpop.permute.xlu0 %1102
        %1106 = vset.pattern.permute.xlu0 0
        %1107 = vperm.xlu0 %1106, %v425
        %v1108 = vpop.permute.xlu0 %1107
        %1111 = vset.pattern.permute.xlu0 0
        %1112 = vperm.xlu0 %1111, %v426
        %v1113 = vpop.permute.xlu0 %1112
        %1116 = vset.pattern.permute.xlu0 0
        %1117 = vperm.xlu0 %1116, %v427
        %v1118 = vpop.permute.xlu0 %1117
        %1121 = vset.pattern.permute.xlu0 0
        %1122 = vperm.xlu0 %1121, %v428
        %v1123 = vpop.permute.xlu0 %1122
        %1126 = vset.pattern.permute.xlu0 0
        %1127 = vperm.xlu0 %1126, %v429
        %v1128 = vpop.permute.xlu0 %1127
        %1131 = vset.pattern.permute.xlu0 0
        %1132 = vperm.xlu0 %1131, %v430
        %v1133 = vpop.permute.xlu0 %1132
        %1136 = vset.pattern.permute.xlu0 0
        %1137 = vperm.xlu0 %1136, %v431
        %v1138 = vpop.permute.xlu0 %1137
        %1141 = vset.pattern.permute.xlu0 0
        %1142 = vperm.xlu0 %1141, %v432
        %v1143 = vpop.permute.xlu0 %1142
        %1146 = vset.pattern.permute.xlu0 0
        %1147 = vperm.xlu0 %1146, %v433
        %v1148 = vpop.permute.xlu0 %1147
        %1151 = vset.pattern.permute.xlu0 0
        %1152 = vperm.xlu0 %1151, %v434
        %v1153 = vpop.permute.xlu0 %1152
        %1156 = vset.pattern.permute.xlu0 0
        %1157 = vperm.xlu0 %1156, %v435
        %v1158 = vpop.permute.xlu0 %1157
        %1161 = vset.pattern.permute.xlu0 0
        %1162 = vperm.xlu0 %1161, %v436
        %v1163 = vpop.permute.xlu0 %1162
        %1166 = vset.pattern.permute.xlu0 0
        %1167 = vperm.xlu0 %1166, %v437
        %v1168 = vpop.permute.xlu0 %1167
        %1171 = vset.pattern.permute.xlu0 0
        %1172 = vperm.xlu0 %1171, %v438
        %v1173 = vpop.permute.xlu0 %1172
        %1176 = vset.pattern.permute.xlu0 0
        %1177 = vperm.xlu0 %1176, %v439
        %v1178 = vpop.permute.xlu0 %1177
        %1181 = vset.pattern.permute.xlu0 0
        %1182 = vperm.xlu0 %1181, %v440
        %v1183 = vpop.permute.xlu0 %1182
        %1186 = vset.pattern.permute.xlu0 0
        %1187 = vperm.xlu0 %1186, %v441
        %v1188 = vpop.permute.xlu0 %1187
        %1191 = vset.pattern.permute.xlu0 0
        %1192 = vperm.xlu0 %1191, %v442
        %v1193 = vpop.permute.xlu0 %1192
        %1196 = vset.pattern.permute.xlu0 0
        %1197 = vperm.xlu0 %1196, %v443
        %v1198 = vpop.permute.xlu0 %1197
        %1201 = vset.pattern.permute.xlu0 0
        %1202 = vperm.xlu0 %1201, %v444
        %v1203 = vpop.permute.xlu0 %1202
        %1206 = vset.pattern.permute.xlu0 0
        %1207 = vperm.xlu0 %1206, %v445
        %v1208 = vpop.permute.xlu0 %1207
        %1211 = vset.pattern.permute.xlu0 0
        %1212 = vperm.xlu0 %1211, %v446
        %v1213 = vpop.permute.xlu0 %1212
        %1216 = vset.pattern.permute.xlu0 0
        %1217 = vperm.xlu0 %1216, %v447
        %v1218 = vpop.permute.xlu0 %1217
        %1221 = vset.pattern.permute.xlu0 0
        %1222 = vperm.xlu0 %1221, %v448
        %v1223 = vpop.permute.xlu0 %1222
        %1226 = vset.pattern.permute.xlu0 0
        %1227 = vperm.xlu0 %1226, %v449
        %v1228 = vpop.permute.xlu0 %1227
        %1231 = vset.pattern.permute.xlu0 0
        %1232 = vperm.xlu0 %1231, %v450
        %v1233 = vpop.permute.xlu0 %1232
        %1236 = vset.pattern.permute.xlu0 0
        %1237 = vperm.xlu0 %1236, %v451
        %v1238 = vpop.permute.xlu0 %1237
        %1241 = vset.pattern.permute.xlu0 0
        %1242 = vperm.xlu0 %1241, %v452
        %v1243 = vpop.permute.xlu0 %1242
        %1246 = vset.pattern.permute.xlu0 0
        %1247 = vperm.xlu0 %1246, %v453
        %v1248 = vpop.permute.xlu0 %1247
        %1251 = vset.pattern.permute.xlu0 0
        %1252 = vperm.xlu0 %1251, %v454
        %v1253 = vpop.permute.xlu0 %1252
        %1256 = vset.pattern.permute.xlu0 0
        %1257 = vperm.xlu0 %1256, %v455
        %v1258 = vpop.permute.xlu0 %1257
        %1261 = vset.pattern.permute.xlu0 0
        %1262 = vperm.xlu0 %1261, %v456
        %v1263 = vpop.permute.xlu0 %1262
        %1266 = vset.pattern.permute.xlu0 0
        %1267 = vperm.xlu0 %1266, %v457
        %v1268 = vpop.permute.xlu0 %1267
        %1271 = vset.pattern.permute.xlu0 0
        %1272 = vperm.xlu0 %1271, %v458
        %v1273 = vpop.permute.xlu0 %1272
        %1276 = vset.pattern.permute.xlu0 0
        %1277 = vperm.xlu0 %1276, %v459
        %v1278 = vpop.permute.xlu0 %1277
        %1281 = vset.pattern.permute.xlu0 0
        %1282 = vperm.xlu0 %1281, %v460
        %v1283 = vpop.permute.xlu0 %1282
        %1286 = vset.pattern.permute.xlu0 0
        %1287 = vperm.xlu0 %1286, %v461
        %v1288 = vpop.permute.xlu0 %1287
        %1291 = vset.pattern.permute.xlu0 0
        %1292 = vperm.xlu0 %1291, %v462
        %v1293 = vpop.permute.xlu0 %1292
        %v1423 = vunpack.c.l.b16 %v527
        %v1424 = vunpack.c.l.b16 %v528
        %v1425 = vunpack.c.l.b16 %v529
        %v1426 = vunpack.c.l.b16 %v530
        %v1427 = vunpack.c.l.b16 %v531
        %v1428 = vunpack.c.l.b16 %v532
        %v1429 = vunpack.c.l.b16 %v533
        %v1430 = vunpack.c.l.b16 %v534
        %v1431 = vunpack.c.l.b16 %v535
        %v1432 = vunpack.c.l.b16 %v536
        %v1433 = vunpack.c.l.b16 %v537
        %v1434 = vunpack.c.l.b16 %v538
        %v1435 = vunpack.c.l.b16 %v539
        %v1436 = vunpack.c.l.b16 %v540
        %v1437 = vunpack.c.l.b16 %v541
        %v1438 = vunpack.c.l.b16 %v542
        %v1439 = vunpack.c.l.b16 %v543
        %v1440 = vunpack.c.l.b16 %v544
        %v1441 = vunpack.c.l.b16 %v545
        %v1442 = vunpack.c.l.b16 %v546
        %v1443 = vunpack.c.l.b16 %v547
        %v1444 = vunpack.c.l.b16 %v548
        %v1445 = vunpack.c.l.b16 %v549
        %v1446 = vunpack.c.l.b16 %v550
        %v1447 = vunpack.c.l.b16 %v551
        %v1448 = vunpack.c.l.b16 %v552
        %v1449 = vunpack.c.l.b16 %v553
        %v1450 = vunpack.c.l.b16 %v554
        %v1451 = vunpack.c.l.b16 %v555
        %v1452 = vunpack.c.l.b16 %v556
        %v1453 = vunpack.c.l.b16 %v557
        %v1454 = vunpack.c.l.b16 %v558
        %v1455 = vunpack.c.l.b16 %v559
        %v1456 = vunpack.c.l.b16 %v560
        %v1457 = vunpack.c.l.b16 %v561
        %v1458 = vunpack.c.l.b16 %v562
        %v1459 = vunpack.c.l.b16 %v563
        %v1460 = vunpack.c.l.b16 %v564
        %v1461 = vunpack.c.l.b16 %v565
        %v1462 = vunpack.c.l.b16 %v566
        %v1463 = vunpack.c.l.b16 %v567
        %v1464 = vunpack.c.l.b16 %v568
        %v1465 = vunpack.c.l.b16 %v569
        %v1466 = vunpack.c.l.b16 %v570
        %v1467 = vunpack.c.l.b16 %v571
        %v1468 = vunpack.c.l.b16 %v572
        %v1469 = vunpack.c.l.b16 %v573
        %v1470 = vunpack.c.l.b16 %v574
        %v1471 = vunpack.c.l.b16 %v575
        %v1472 = vunpack.c.l.b16 %v576
        %v1473 = vunpack.c.l.b16 %v577
        %v1474 = vunpack.c.l.b16 %v578
        %v1475 = vunpack.c.l.b16 %v579
        %v1476 = vunpack.c.l.b16 %v580
        %v1477 = vunpack.c.l.b16 %v581
        %v1478 = vunpack.c.l.b16 %v582
        %v1479 = vunpack.c.l.b16 %v583
        %v1480 = vunpack.c.l.b16 %v584
        %v1481 = vunpack.c.l.b16 %v585
        %v1482 = vunpack.c.l.b16 %v586
        %v1483 = vunpack.c.l.b16 %v587
        %v1484 = vunpack.c.l.b16 %v588
        %v1485 = vunpack.c.l.b16 %v589
        %v1486 = vunpack.c.l.b16 %v590
        %v1487 = vunpack.c.l.b16 %v591
        %v1488 = vunpack.c.l.b16 %v592
        %v1489 = vunpack.c.l.b16 %v593
        %v1490 = vunpack.c.l.b16 %v594
        %v1491 = vunpack.c.l.b16 %v595
        %v1492 = vunpack.c.l.b16 %v596
        %v1493 = vunpack.c.l.b16 %v597
        %v1494 = vunpack.c.l.b16 %v598
        %v1495 = vunpack.c.l.b16 %v599
        %v1496 = vunpack.c.l.b16 %v600
        %v1497 = vunpack.c.l.b16 %v601
        %v1498 = vunpack.c.l.b16 %v602
        %v1499 = vunpack.c.l.b16 %v603
        %v1500 = vunpack.c.l.b16 %v604
        %v1501 = vunpack.c.l.b16 %v605
        %v1502 = vunpack.c.l.b16 %v606
        %v1503 = vunpack.c.l.b16 %v607
        %v1504 = vunpack.c.l.b16 %v608
        %v1505 = vunpack.c.l.b16 %v609
        %v1506 = vunpack.c.l.b16 %v610
        %v1507 = vunpack.c.l.b16 %v611
        %v1508 = vunpack.c.l.b16 %v612
        %v1509 = vunpack.c.l.b16 %v613
        %v1510 = vunpack.c.l.b16 %v614
        %v1511 = vunpack.c.l.b16 %v615
        %v1512 = vunpack.c.l.b16 %v616
        %v1513 = vunpack.c.l.b16 %v617
        %v1514 = vunpack.c.l.b16 %v618
        %v1515 = vunpack.c.l.b16 %v619
        %v1516 = vunpack.c.l.b16 %v620
        %v1517 = vunpack.c.l.b16 %v621
        %v1518 = vunpack.c.l.b16 %v622
        %v1519 = vunpack.c.l.b16 %v623
        %v1520 = vunpack.c.l.b16 %v624
        %v1521 = vunpack.c.l.b16 %v625
        %v1522 = vunpack.c.l.b16 %v626
        %v1523 = vunpack.c.l.b16 %v627
        %v1524 = vunpack.c.l.b16 %v628
        %v1525 = vunpack.c.l.b16 %v629
        %v1526 = vunpack.c.l.b16 %v630
        %v1527 = vunpack.c.l.b16 %v631
        %v1528 = vunpack.c.l.b16 %v632
        %v1529 = vunpack.c.l.b16 %v633
        %v1530 = vunpack.c.l.b16 %v634
        %v1531 = vunpack.c.l.b16 %v635
        %v1532 = vunpack.c.l.b16 %v636
        %v1533 = vunpack.c.l.b16 %v637
        %v1534 = vunpack.c.l.b16 %v638
        %v1535 = vunpack.c.l.b16 %v639
        %v1536 = vunpack.c.l.b16 %v640
        %v1537 = vunpack.c.l.b16 %v641
        %v1538 = vunpack.c.l.b16 %v642
        %v1539 = vunpack.c.l.b16 %v643
        %v1540 = vunpack.c.l.b16 %v644
        %v1541 = vunpack.c.l.b16 %v645
        %v1542 = vunpack.c.l.b16 %v646
        %v1543 = vunpack.c.l.b16 %v647
        %v1544 = vunpack.c.l.b16 %v648
        %v1545 = vunpack.c.l.b16 %v649
        %v1546 = vunpack.c.l.b16 %v650
        %v1547 = vunpack.c.l.b16 %v651
        %v1548 = vunpack.c.l.b16 %v652
        %v1549 = vunpack.c.l.b16 %v653
        %v1550 = vunpack.c.l.b16 %v654
        %v1551 = vpack.c.b16 %v1424, %v1423
        %v1552 = vpack.c.b16 %v1426, %v1425
        %v1553 = vpack.c.b16 %v1428, %v1427
        %v1554 = vpack.c.b16 %v1430, %v1429
        %v1555 = vpack.c.b16 %v1432, %v1431
        %v1556 = vpack.c.b16 %v1434, %v1433
        %v1557 = vpack.c.b16 %v1436, %v1435
        %v1558 = vpack.c.b16 %v1438, %v1437
        %v1559 = vpack.c.b16 %v1440, %v1439
        %v1560 = vpack.c.b16 %v1442, %v1441
        %v1561 = vpack.c.b16 %v1444, %v1443
        %v1562 = vpack.c.b16 %v1446, %v1445
        %v1563 = vpack.c.b16 %v1448, %v1447
        %v1564 = vpack.c.b16 %v1450, %v1449
        %v1565 = vpack.c.b16 %v1452, %v1451
        %v1566 = vpack.c.b16 %v1454, %v1453
        %v1567 = vpack.c.b16 %v1456, %v1455
        %v1568 = vpack.c.b16 %v1458, %v1457
        %v1569 = vpack.c.b16 %v1460, %v1459
        %v1570 = vpack.c.b16 %v1462, %v1461
        %v1571 = vpack.c.b16 %v1464, %v1463
        %v1572 = vpack.c.b16 %v1466, %v1465
        %v1573 = vpack.c.b16 %v1468, %v1467
        %v1574 = vpack.c.b16 %v1470, %v1469
        %v1575 = vpack.c.b16 %v1472, %v1471
        %v1576 = vpack.c.b16 %v1474, %v1473
        %v1577 = vpack.c.b16 %v1476, %v1475
        %v1578 = vpack.c.b16 %v1478, %v1477
        %v1579 = vpack.c.b16 %v1480, %v1479
        %v1580 = vpack.c.b16 %v1482, %v1481
        %v1581 = vpack.c.b16 %v1484, %v1483
        %v1582 = vpack.c.b16 %v1486, %v1485
        %v1583 = vpack.c.b16 %v1488, %v1487
        %v1584 = vpack.c.b16 %v1490, %v1489
        %v1585 = vpack.c.b16 %v1492, %v1491
        %v1586 = vpack.c.b16 %v1494, %v1493
        %v1587 = vpack.c.b16 %v1496, %v1495
        %v1588 = vpack.c.b16 %v1498, %v1497
        %v1589 = vpack.c.b16 %v1500, %v1499
        %v1590 = vpack.c.b16 %v1502, %v1501
        %v1591 = vpack.c.b16 %v1504, %v1503
        %v1592 = vpack.c.b16 %v1506, %v1505
        %v1593 = vpack.c.b16 %v1508, %v1507
        %v1594 = vpack.c.b16 %v1510, %v1509
        %v1595 = vpack.c.b16 %v1512, %v1511
        %v1596 = vpack.c.b16 %v1514, %v1513
        %v1597 = vpack.c.b16 %v1516, %v1515
        %v1598 = vpack.c.b16 %v1518, %v1517
        %v1599 = vpack.c.b16 %v1520, %v1519
        %v1600 = vpack.c.b16 %v1522, %v1521
        %v1601 = vpack.c.b16 %v1524, %v1523
        %v1602 = vpack.c.b16 %v1526, %v1525
        %v1603 = vpack.c.b16 %v1528, %v1527
        %v1604 = vpack.c.b16 %v1530, %v1529
        %v1605 = vpack.c.b16 %v1532, %v1531
        %v1606 = vpack.c.b16 %v1534, %v1533
        %v1607 = vpack.c.b16 %v1536, %v1535
        %v1608 = vpack.c.b16 %v1538, %v1537
        %v1609 = vpack.c.b16 %v1540, %v1539
        %v1610 = vpack.c.b16 %v1542, %v1541
        %v1611 = vpack.c.b16 %v1544, %v1543
        %v1612 = vpack.c.b16 %v1546, %v1545
        %v1613 = vpack.c.b16 %v1548, %v1547
        %v1614 = vpack.c.b16 %v1550, %v1549
        %vm1615 = vcmask 785408
        %v1617 = vsel %vm1615, %v1551, 0
        %v1620 = vsel %vm1615, %v1552, 0
        %v1623 = vsel %vm1615, %v1553, 0
        %v1626 = vsel %vm1615, %v1554, 0
        %v1629 = vsel %vm1615, %v1555, 0
        %v1632 = vsel %vm1615, %v1556, 0
        %v1635 = vsel %vm1615, %v1557, 0
        %v1638 = vsel %vm1615, %v1558, 0
        %v1641 = vsel %vm1615, %v1559, 0
        %v1644 = vsel %vm1615, %v1560, 0
        %v1647 = vsel %vm1615, %v1561, 0
        %v1650 = vsel %vm1615, %v1562, 0
        %v1653 = vsel %vm1615, %v1563, 0
        %v1656 = vsel %vm1615, %v1564, 0
        %v1659 = vsel %vm1615, %v1565, 0
        %v1662 = vsel %vm1615, %v1566, 0
        %v1665 = vsel %vm1615, %v1567, 0
        %v1668 = vsel %vm1615, %v1568, 0
        %v1671 = vsel %vm1615, %v1569, 0
        %v1674 = vsel %vm1615, %v1570, 0
        %v1677 = vsel %vm1615, %v1571, 0
        %v1680 = vsel %vm1615, %v1572, 0
        %v1683 = vsel %vm1615, %v1573, 0
        %v1686 = vsel %vm1615, %v1574, 0
        %v1689 = vsel %vm1615, %v1575, 0
        %v1692 = vsel %vm1615, %v1576, 0
        %v1695 = vsel %vm1615, %v1577, 0
        %v1698 = vsel %vm1615, %v1578, 0
        %v1701 = vsel %vm1615, %v1579, 0
        %v1704 = vsel %vm1615, %v1580, 0
        %v1707 = vsel %vm1615, %v1581, 0
        %v1710 = vsel %vm1615, %v1582, 0
        %v1713 = vsel %vm1615, %v1583, 0
        %v1716 = vsel %vm1615, %v1584, 0
        %v1719 = vsel %vm1615, %v1585, 0
        %v1722 = vsel %vm1615, %v1586, 0
        %v1725 = vsel %vm1615, %v1587, 0
        %v1728 = vsel %vm1615, %v1588, 0
        %v1731 = vsel %vm1615, %v1589, 0
        %v1734 = vsel %vm1615, %v1590, 0
        %v1737 = vsel %vm1615, %v1591, 0
        %v1740 = vsel %vm1615, %v1592, 0
        %v1743 = vsel %vm1615, %v1593, 0
        %v1746 = vsel %vm1615, %v1594, 0
        %v1749 = vsel %vm1615, %v1595, 0
        %v1752 = vsel %vm1615, %v1596, 0
        %v1755 = vsel %vm1615, %v1597, 0
        %v1758 = vsel %vm1615, %v1598, 0
        %v1761 = vsel %vm1615, %v1599, 0
        %v1764 = vsel %vm1615, %v1600, 0
        %v1767 = vsel %vm1615, %v1601, 0
        %v1770 = vsel %vm1615, %v1602, 0
        %v1773 = vsel %vm1615, %v1603, 0
        %v1776 = vsel %vm1615, %v1604, 0
        %v1779 = vsel %vm1615, %v1605, 0
        %v1782 = vsel %vm1615, %v1606, 0
        %v1785 = vsel %vm1615, %v1607, 0
        %v1788 = vsel %vm1615, %v1608, 0
        %v1791 = vsel %vm1615, %v1609, 0
        %v1794 = vsel %vm1615, %v1610, 0
        %v1797 = vsel %vm1615, %v1611, 0
        %v1800 = vsel %vm1615, %v1612, 0
        %v1803 = vsel %vm1615, %v1613, 0
        %v1806 = vsel %vm1615, %v1614, 0
        %1808 = vmatprep.subr.bf16.mxu0 0
        %1809 = vmatpush1.bf16.msra.mxu0 %v321
        %1810 = vmatprep.subr.bf16.mxu0 0
        %1811 = vmatpush1.bf16.msra.mxu0 %v322
        %1812 = vmatprep.subr.bf16.mxu0 0
        %1813 = vmatpush1.bf16.msra.mxu0 %v323
        %1814 = vmatprep.subr.bf16.mxu0 0
        %1815 = vmatpush1.bf16.msra.mxu0 %v324
        %1816 = vmatprep.subr.bf16.mxu0 0
        %1817 = vmatpush1.bf16.msra.mxu0 %v333
        %1818 = vmatprep.subr.bf16.mxu0 0
        %1819 = vmatpush1.bf16.msra.mxu0 %v334
        %1820 = vmatprep.subr.bf16.mxu0 0
        %1821 = vmatpush1.bf16.msra.mxu0 0
        %1822 = vmatprep.subr.bf16.mxu0 0
        %1823 = vmatpush1.bf16.msra.mxu0 0
        %1824 = vmatprep.subr.bf16.mxu0 0
        %1825 = vmatpush1.bf16.msra.mxu0 0
        %1826 = vmatprep.subr.bf16.mxu0 0
        %1827 = vmatpush1.bf16.msra.mxu0 0
        %1828 = vmatprep.subr.bf16.mxu0 0
        %1829 = vmatpush1.bf16.msra.mxu0 0
        %1830 = vmatprep.subr.bf16.mxu0 0
        %1831 = vmatpush1.bf16.msra.mxu0 0
        %1832 = vmatprep.subr.bf16.mxu0 0
        %1833 = vmatpush1.bf16.msra.mxu0 0
        %1834 = vmatprep.subr.bf16.mxu0 0
        %1835 = vmatpush1.bf16.msra.mxu0 0
        %1836 = vmatprep.subr.bf16.mxu0 0
        %1837 = vmatpush1.bf16.msra.mxu0 0
        %1838 = vmatprep.subr.bf16.mxu0 0
        %1839 = vmatpush1.bf16.msra.mxu0 0
        %1840 = vmatprep.mubr.bf16.mxu0 0
        %1841 = vmatmul.mubr.bf16.gmra.mrb[0].mxu0 %v1617
        %v1842 = vpop.f32.mrb[0].mxu0
        %v1843 = vadd.f32 %v658, %v1842
        %v1844 = vpop.f32.mrb[0].mxu0
        %v1845 = vpop.f32.mrb[0].mxu0
        %v1846 = vadd.f32 %v663, %v1845
        %v1847 = vpop.f32.mrb[0].mxu0
        %1848 = vmatprep.mubr.bf16.mxu0 0
        %1849 = vmatmul.mubr.bf16.gmra.mrb[0].mxu0 %v1620
        %v1850 = vpop.f32.mrb[0].mxu0
        %v1851 = vadd.f32 %v668, %v1850
        %v1852 = vpop.f32.mrb[0].mxu0
        %v1853 = vpop.f32.mrb[0].mxu0
        %v1854 = vadd.f32 %v673, %v1853
        %v1855 = vpop.f32.mrb[0].mxu0
        %1856 = vmatprep.mubr.bf16.mxu0 0
        %1857 = vmatmul.mubr.bf16.gmra.mrb[0].mxu0 %v1623
        %v1858 = vpop.f32.mrb[0].mxu0
        %v1859 = vadd.f32 %v678, %v1858
        %v1860 = vpop.f32.mrb[0].mxu0
        %v1861 = vpop.f32.mrb[0].mxu0
        %v1862 = vadd.f32 %v683, %v1861
        %v1863 = vpop.f32.mrb[0].mxu0
        %1864 = vmatprep.mubr.bf16.mxu0 0
        %1865 = vmatmul.mubr.bf16.gmra.mrb[0].mxu0 %v1626
        %v1866 = vpop.f32.mrb[0].mxu0
        %v1867 = vadd.f32 %v688, %v1866
        %v1868 = vpop.f32.mrb[0].mxu0
        %v1869 = vpop.f32.mrb[0].mxu0
        %v1870 = vadd.f32 %v693, %v1869
        %v1871 = vpop.f32.mrb[0].mxu0
        %1872 = vmatprep.mubr.bf16.mxu0 0
        %1873 = vmatmul.mubr.bf16.gmra.mrb[0].mxu0 %v1629
        %v1874 = vpop.f32.mrb[0].mxu0
        %v1875 = vadd.f32 %v698, %v1874
        %v1876 = vpop.f32.mrb[0].mxu0
        %v1877 = vpop.f32.mrb[0].mxu0
        %v1878 = vadd.f32 %v703, %v1877
        %v1879 = vpop.f32.mrb[0].mxu0
        %1880 = vmatprep.mubr.bf16.mxu0 0
        %1881 = vmatmul.mubr.bf16.gmra.mrb[0].mxu0 %v1632
        %v1882 = vpop.f32.mrb[0].mxu0
        %v1883 = vadd.f32 %v708, %v1882
        %v1884 = vpop.f32.mrb[0].mxu0
        %v1885 = vpop.f32.mrb[0].mxu0
        %v1886 = vadd.f32 %v713, %v1885
        %v1887 = vpop.f32.mrb[0].mxu0
        %1888 = vmatprep.mubr.bf16.mxu0 0
        %1889 = vmatmul.mubr.bf16.gmra.mrb[0].mxu0 %v1635
        %v1890 = vpop.f32.mrb[0].mxu0
        %v1891 = vadd.f32 %v718, %v1890
        %v1892 = vpop.f32.mrb[0].mxu0
        %v1893 = vpop.f32.mrb[0].mxu0
        %v1894 = vadd.f32 %v723, %v1893
        %v1895 = vpop.f32.mrb[0].mxu0
        %1896 = vmatprep.mubr.bf16.mxu0 0
        %1897 = vmatmul.mubr.bf16.gmra.mrb[0].mxu0 %v1638
        %v1898 = vpop.f32.mrb[0].mxu0
        %v1899 = vadd.f32 %v728, %v1898
        %v1900 = vpop.f32.mrb[0].mxu0
        %v1901 = vpop.f32.mrb[0].mxu0
        %v1902 = vadd.f32 %v733, %v1901
        %v1903 = vpop.f32.mrb[0].mxu0
        %1904 = vmatprep.mubr.bf16.mxu0 0
        %1905 = vmatmul.mubr.bf16.gmra.mrb[0].mxu0 %v1641
        %v1906 = vpop.f32.mrb[0].mxu0
        %v1907 = vadd.f32 %v738, %v1906
        %v1908 = vpop.f32.mrb[0].mxu0
        %v1909 = vpop.f32.mrb[0].mxu0
        %v1910 = vadd.f32 %v743, %v1909
        %v1911 = vpop.f32.mrb[0].mxu0
        %1912 = vmatprep.mubr.bf16.mxu0 0
        %1913 = vmatmul.mubr.bf16.gmra.mrb[0].mxu0 %v1644
        %v1914 = vpop.f32.mrb[0].mxu0
        %v1915 = vadd.f32 %v748, %v1914
        %v1916 = vpop.f32.mrb[0].mxu0
        %v1917 = vpop.f32.mrb[0].mxu0
        %v1918 = vadd.f32 %v753, %v1917
        %v1919 = vpop.f32.mrb[0].mxu0
        %1920 = vmatprep.mubr.bf16.mxu0 0
        %1921 = vmatmul.mubr.bf16.gmra.mrb[0].mxu0 %v1647
        %v1922 = vpop.f32.mrb[0].mxu0
        %v1923 = vadd.f32 %v758, %v1922
        %v1924 = vpop.f32.mrb[0].mxu0
        %v1925 = vpop.f32.mrb[0].mxu0
        %v1926 = vadd.f32 %v763, %v1925
        %v1927 = vpop.f32.mrb[0].mxu0
        %1928 = vmatprep.mubr.bf16.mxu0 0
        %1929 = vmatmul.mubr.bf16.gmra.mrb[0].mxu0 %v1650
        %v1930 = vpop.f32.mrb[0].mxu0
        %v1931 = vadd.f32 %v768, %v1930
        %v1932 = vpop.f32.mrb[0].mxu0
        %v1933 = vpop.f32.mrb[0].mxu0
        %v1934 = vadd.f32 %v773, %v1933
        %v1935 = vpop.f32.mrb[0].mxu0
        %1936 = vmatprep.mubr.bf16.mxu0 0
        %1937 = vmatmul.mubr.bf16.gmra.mrb[0].mxu0 %v1653
        %v1938 = vpop.f32.mrb[0].mxu0
        %v1939 = vadd.f32 %v778, %v1938
        %v1940 = vpop.f32.mrb[0].mxu0
        %v1941 = vpop.f32.mrb[0].mxu0
        %v1942 = vadd.f32 %v783, %v1941
        %v1943 = vpop.f32.mrb[0].mxu0
        %1944 = vmatprep.mubr.bf16.mxu0 0
        %1945 = vmatmul.mubr.bf16.gmra.mrb[0].mxu0 %v1656
        %v1946 = vpop.f32.mrb[0].mxu0
        %v1947 = vadd.f32 %v788, %v1946
        %v1948 = vpop.f32.mrb[0].mxu0
        %v1949 = vpop.f32.mrb[0].mxu0
        %v1950 = vadd.f32 %v793, %v1949
        %v1951 = vpop.f32.mrb[0].mxu0
        %1952 = vmatprep.mubr.bf16.mxu0 0
        %1953 = vmatmul.mubr.bf16.gmra.mrb[0].mxu0 %v1659
        %v1954 = vpop.f32.mrb[0].mxu0
        %v1955 = vadd.f32 %v798, %v1954
        %v1956 = vpop.f32.mrb[0].mxu0
        %v1957 = vpop.f32.mrb[0].mxu0
        %v1958 = vadd.f32 %v803, %v1957
        %v1959 = vpop.f32.mrb[0].mxu0
        %1960 = vmatprep.mubr.bf16.mxu0 0
        %1961 = vmatmul.mubr.bf16.gmra.mrb[0].mxu0 %v1662
        %v1962 = vpop.f32.mrb[0].mxu0
        %v1963 = vadd.f32 %v808, %v1962
        %v1964 = vpop.f32.mrb[0].mxu0
        %v1965 = vpop.f32.mrb[0].mxu0
        %v1966 = vadd.f32 %v813, %v1965
        %v1967 = vpop.f32.mrb[0].mxu0
        %1968 = vmatprep.mubr.bf16.mxu0 0
        %1969 = vmatmul.mubr.bf16.gmra.mrb[0].mxu0 %v1665
        %v1970 = vpop.f32.mrb[0].mxu0
        %v1971 = vadd.f32 %v818, %v1970
        %v1972 = vpop.f32.mrb[0].mxu0
        %v1973 = vpop.f32.mrb[0].mxu0
        %v1974 = vadd.f32 %v823, %v1973
        %v1975 = vpop.f32.mrb[0].mxu0
        %1976 = vmatprep.mubr.bf16.mxu0 0
        %1977 = vmatmul.mubr.bf16.gmra.mrb[0].mxu0 %v1668
        %v1978 = vpop.f32.mrb[0].mxu0
        %v1979 = vadd.f32 %v828, %v1978
        %v1980 = vpop.f32.mrb[0].mxu0
        %v1981 = vpop.f32.mrb[0].mxu0
        %v1982 = vadd.f32 %v833, %v1981
        %v1983 = vpop.f32.mrb[0].mxu0
        %1984 = vmatprep.mubr.bf16.mxu0 0
        %1985 = vmatmul.mubr.bf16.gmra.mrb[0].mxu0 %v1671
        %v1986 = vpop.f32.mrb[0].mxu0
        %v1987 = vadd.f32 %v838, %v1986
        %v1988 = vpop.f32.mrb[0].mxu0
        %v1989 = vpop.f32.mrb[0].mxu0
        %v1990 = vadd.f32 %v843, %v1989
        %v1991 = vpop.f32.mrb[0].mxu0
        %1992 = vmatprep.mubr.bf16.mxu0 0
        %1993 = vmatmul.mubr.bf16.gmra.mrb[0].mxu0 %v1674
        %v1994 = vpop.f32.mrb[0].mxu0
        %v1995 = vadd.f32 %v848, %v1994
        %v1996 = vpop.f32.mrb[0].mxu0
        %v1997 = vpop.f32.mrb[0].mxu0
        %v1998 = vadd.f32 %v853, %v1997
        %v1999 = vpop.f32.mrb[0].mxu0
        %2000 = vmatprep.mubr.bf16.mxu0 0
        %2001 = vmatmul.mubr.bf16.gmra.mrb[0].mxu0 %v1677
        %v2002 = vpop.f32.mrb[0].mxu0
        %v2003 = vadd.f32 %v858, %v2002
        %v2004 = vpop.f32.mrb[0].mxu0
        %v2005 = vpop.f32.mrb[0].mxu0
        %v2006 = vadd.f32 %v863, %v2005
        %v2007 = vpop.f32.mrb[0].mxu0
        %2008 = vmatprep.mubr.bf16.mxu0 0
        %2009 = vmatmul.mubr.bf16.gmra.mrb[0].mxu0 %v1680
        %v2010 = vpop.f32.mrb[0].mxu0
        %v2011 = vadd.f32 %v868, %v2010
        %v2012 = vpop.f32.mrb[0].mxu0
        %v2013 = vpop.f32.mrb[0].mxu0
        %v2014 = vadd.f32 %v873, %v2013
        %v2015 = vpop.f32.mrb[0].mxu0
        %2016 = vmatprep.mubr.bf16.mxu0 0
        %2017 = vmatmul.mubr.bf16.gmra.mrb[0].mxu0 %v1683
        %v2018 = vpop.f32.mrb[0].mxu0
        %v2019 = vadd.f32 %v878, %v2018
        %v2020 = vpop.f32.mrb[0].mxu0
        %v2021 = vpop.f32.mrb[0].mxu0
        %v2022 = vadd.f32 %v883, %v2021
        %v2023 = vpop.f32.mrb[0].mxu0
        %2024 = vmatprep.mubr.bf16.mxu0 0
        %2025 = vmatmul.mubr.bf16.gmra.mrb[0].mxu0 %v1686
        %v2026 = vpop.f32.mrb[0].mxu0
        %v2027 = vadd.f32 %v888, %v2026
        %v2028 = vpop.f32.mrb[0].mxu0
        %v2029 = vpop.f32.mrb[0].mxu0
        %v2030 = vadd.f32 %v893, %v2029
        %v2031 = vpop.f32.mrb[0].mxu0
        %2032 = vmatprep.mubr.bf16.mxu0 0
        %2033 = vmatmul.mubr.bf16.gmra.mrb[0].mxu0 %v1689
        %v2034 = vpop.f32.mrb[0].mxu0
        %v2035 = vadd.f32 %v898, %v2034
        %v2036 = vpop.f32.mrb[0].mxu0
        %v2037 = vpop.f32.mrb[0].mxu0
        %v2038 = vadd.f32 %v903, %v2037
        %v2039 = vpop.f32.mrb[0].mxu0
        %2040 = vmatprep.mubr.bf16.mxu0 0
        %2041 = vmatmul.mubr.bf16.gmra.mrb[0].mxu0 %v1692
        %v2042 = vpop.f32.mrb[0].mxu0
        %v2043 = vadd.f32 %v908, %v2042
        %v2044 = vpop.f32.mrb[0].mxu0
        %v2045 = vpop.f32.mrb[0].mxu0
        %v2046 = vadd.f32 %v913, %v2045
        %v2047 = vpop.f32.mrb[0].mxu0
        %2048 = vmatprep.mubr.bf16.mxu0 0
        %2049 = vmatmul.mubr.bf16.gmra.mrb[0].mxu0 %v1695
        %v2050 = vpop.f32.mrb[0].mxu0
        %v2051 = vadd.f32 %v918, %v2050
        %v2052 = vpop.f32.mrb[0].mxu0
        %v2053 = vpop.f32.mrb[0].mxu0
        %v2054 = vadd.f32 %v923, %v2053
        %v2055 = vpop.f32.mrb[0].mxu0
        %2056 = vmatprep.mubr.bf16.mxu0 0
        %2057 = vmatmul.mubr.bf16.gmra.mrb[0].mxu0 %v1698
        %v2058 = vpop.f32.mrb[0].mxu0
        %v2059 = vadd.f32 %v928, %v2058
        %v2060 = vpop.f32.mrb[0].mxu0
        %v2061 = vpop.f32.mrb[0].mxu0
        %v2062 = vadd.f32 %v933, %v2061
        %v2063 = vpop.f32.mrb[0].mxu0
        %2064 = vmatprep.mubr.bf16.mxu0 0
        %2065 = vmatmul.mubr.bf16.gmra.mrb[0].mxu0 %v1701
        %v2066 = vpop.f32.mrb[0].mxu0
        %v2067 = vadd.f32 %v938, %v2066
        %v2068 = vpop.f32.mrb[0].mxu0
        %v2069 = vpop.f32.mrb[0].mxu0
        %v2070 = vadd.f32 %v943, %v2069
        %v2071 = vpop.f32.mrb[0].mxu0
        %2072 = vmatprep.mubr.bf16.mxu0 0
        %2073 = vmatmul.mubr.bf16.gmra.mrb[0].mxu0 %v1704
        %v2074 = vpop.f32.mrb[0].mxu0
        %v2075 = vadd.f32 %v948, %v2074
        %v2076 = vpop.f32.mrb[0].mxu0
        %v2077 = vpop.f32.mrb[0].mxu0
        %v2078 = vadd.f32 %v953, %v2077
        %v2079 = vpop.f32.mrb[0].mxu0
        %2080 = vmatprep.mubr.bf16.mxu0 0
        %2081 = vmatmul.mubr.bf16.gmra.mrb[0].mxu0 %v1707
        %v2082 = vpop.f32.mrb[0].mxu0
        %v2083 = vadd.f32 %v958, %v2082
        %v2084 = vpop.f32.mrb[0].mxu0
        %v2085 = vpop.f32.mrb[0].mxu0
        %v2086 = vadd.f32 %v963, %v2085
        %v2087 = vpop.f32.mrb[0].mxu0
        %2088 = vmatprep.mubr.bf16.mxu0 0
        %2089 = vmatmul.mubr.bf16.gmra.mrb[0].mxu0 %v1710
        %v2090 = vpop.f32.mrb[0].mxu0
        %v2091 = vadd.f32 %v968, %v2090
        %v2092 = vpop.f32.mrb[0].mxu0
        %v2093 = vpop.f32.mrb[0].mxu0
        %v2094 = vadd.f32 %v973, %v2093
        %v2095 = vpop.f32.mrb[0].mxu0
        %2096 = vmatprep.mubr.bf16.mxu0 0
        %2097 = vmatmul.mubr.bf16.gmra.mrb[0].mxu0 %v1713
        %v2098 = vpop.f32.mrb[0].mxu0
        %v2099 = vadd.f32 %v978, %v2098
        %v2100 = vpop.f32.mrb[0].mxu0
        %v2101 = vpop.f32.mrb[0].mxu0
        %v2102 = vadd.f32 %v983, %v2101
        %v2103 = vpop.f32.mrb[0].mxu0
        %2104 = vmatprep.mubr.bf16.mxu0 0
        %2105 = vmatmul.mubr.bf16.gmra.mrb[0].mxu0 %v1716
        %v2106 = vpop.f32.mrb[0].mxu0
        %v2107 = vadd.f32 %v988, %v2106
        %v2108 = vpop.f32.mrb[0].mxu0
        %v2109 = vpop.f32.mrb[0].mxu0
        %v2110 = vadd.f32 %v993, %v2109
        %v2111 = vpop.f32.mrb[0].mxu0
        %2112 = vmatprep.mubr.bf16.mxu0 0
        %2113 = vmatmul.mubr.bf16.gmra.mrb[0].mxu0 %v1719
        %v2114 = vpop.f32.mrb[0].mxu0
        %v2115 = vadd.f32 %v998, %v2114
        %v2116 = vpop.f32.mrb[0].mxu0
        %v2117 = vpop.f32.mrb[0].mxu0
        %v2118 = vadd.f32 %v1003, %v2117
        %v2119 = vpop.f32.mrb[0].mxu0
        %2120 = vmatprep.mubr.bf16.mxu0 0
        %2121 = vmatmul.mubr.bf16.gmra.mrb[0].mxu0 %v1722
        %v2122 = vpop.f32.mrb[0].mxu0
        %v2123 = vadd.f32 %v1008, %v2122
        %v2124 = vpop.f32.mrb[0].mxu0
        %v2125 = vpop.f32.mrb[0].mxu0
        %v2126 = vadd.f32 %v1013, %v2125
        %v2127 = vpop.f32.mrb[0].mxu0
        %2128 = vmatprep.mubr.bf16.mxu0 0
        %2129 = vmatmul.mubr.bf16.gmra.mrb[0].mxu0 %v1725
        %v2130 = vpop.f32.mrb[0].mxu0
        %v2131 = vadd.f32 %v1018, %v2130
        %v2132 = vpop.f32.mrb[0].mxu0
        %v2133 = vpop.f32.mrb[0].mxu0
        %v2134 = vadd.f32 %v1023, %v2133
        %v2135 = vpop.f32.mrb[0].mxu0
        %2136 = vmatprep.mubr.bf16.mxu0 0
        %2137 = vmatmul.mubr.bf16.gmra.mrb[0].mxu0 %v1728
        %v2138 = vpop.f32.mrb[0].mxu0
        %v2139 = vadd.f32 %v1028, %v2138
        %v2140 = vpop.f32.mrb[0].mxu0
        %v2141 = vpop.f32.mrb[0].mxu0
        %v2142 = vadd.f32 %v1033, %v2141
        %v2143 = vpop.f32.mrb[0].mxu0
        %2144 = vmatprep.mubr.bf16.mxu0 0
        %2145 = vmatmul.mubr.bf16.gmra.mrb[0].mxu0 %v1731
        %v2146 = vpop.f32.mrb[0].mxu0
        %v2147 = vadd.f32 %v1038, %v2146
        %v2148 = vpop.f32.mrb[0].mxu0
        %v2149 = vpop.f32.mrb[0].mxu0
        %v2150 = vadd.f32 %v1043, %v2149
        %v2151 = vpop.f32.mrb[0].mxu0
        %2152 = vmatprep.mubr.bf16.mxu0 0
        %2153 = vmatmul.mubr.bf16.gmra.mrb[0].mxu0 %v1734
        %v2154 = vpop.f32.mrb[0].mxu0
        %v2155 = vadd.f32 %v1048, %v2154
        %v2156 = vpop.f32.mrb[0].mxu0
        %v2157 = vpop.f32.mrb[0].mxu0
        %v2158 = vadd.f32 %v1053, %v2157
        %v2159 = vpop.f32.mrb[0].mxu0
        %2160 = vmatprep.mubr.bf16.mxu0 0
        %2161 = vmatmul.mubr.bf16.gmra.mrb[0].mxu0 %v1737
        %v2162 = vpop.f32.mrb[0].mxu0
        %v2163 = vadd.f32 %v1058, %v2162
        %v2164 = vpop.f32.mrb[0].mxu0
        %v2165 = vpop.f32.mrb[0].mxu0
        %v2166 = vadd.f32 %v1063, %v2165
        %v2167 = vpop.f32.mrb[0].mxu0
        %2168 = vmatprep.mubr.bf16.mxu0 0
        %2169 = vmatmul.mubr.bf16.gmra.mrb[0].mxu0 %v1740
        %v2170 = vpop.f32.mrb[0].mxu0
        %v2171 = vadd.f32 %v1068, %v2170
        %v2172 = vpop.f32.mrb[0].mxu0
        %v2173 = vpop.f32.mrb[0].mxu0
        %v2174 = vadd.f32 %v1073, %v2173
        %v2175 = vpop.f32.mrb[0].mxu0
        %2176 = vmatprep.mubr.bf16.mxu0 0
        %2177 = vmatmul.mubr.bf16.gmra.mrb[0].mxu0 %v1743
        %v2178 = vpop.f32.mrb[0].mxu0
        %v2179 = vadd.f32 %v1078, %v2178
        %v2180 = vpop.f32.mrb[0].mxu0
        %v2181 = vpop.f32.mrb[0].mxu0
        %v2182 = vadd.f32 %v1083, %v2181
        %v2183 = vpop.f32.mrb[0].mxu0
        %2184 = vmatprep.mubr.bf16.mxu0 0
        %2185 = vmatmul.mubr.bf16.gmra.mrb[0].mxu0 %v1746
        %v2186 = vpop.f32.mrb[0].mxu0
        %v2187 = vadd.f32 %v1088, %v2186
        %v2188 = vpop.f32.mrb[0].mxu0
        %v2189 = vpop.f32.mrb[0].mxu0
        %v2190 = vadd.f32 %v1093, %v2189
        %v2191 = vpop.f32.mrb[0].mxu0
        %2192 = vmatprep.mubr.bf16.mxu0 0
        %2193 = vmatmul.mubr.bf16.gmra.mrb[0].mxu0 %v1749
        %v2194 = vpop.f32.mrb[0].mxu0
        %v2195 = vadd.f32 %v1098, %v2194
        %v2196 = vpop.f32.mrb[0].mxu0
        %v2197 = vpop.f32.mrb[0].mxu0
        %v2198 = vadd.f32 %v1103, %v2197
        %v2199 = vpop.f32.mrb[0].mxu0
        %2200 = vmatprep.mubr.bf16.mxu0 0
        %2201 = vmatmul.mubr.bf16.gmra.mrb[0].mxu0 %v1752
        %v2202 = vpop.f32.mrb[0].mxu0
        %v2203 = vadd.f32 %v1108, %v2202
        %v2204 = vpop.f32.mrb[0].mxu0
        %v2205 = vpop.f32.mrb[0].mxu0
        %v2206 = vadd.f32 %v1113, %v2205
        %v2207 = vpop.f32.mrb[0].mxu0
        %2208 = vmatprep.mubr.bf16.mxu0 0
        %2209 = vmatmul.mubr.bf16.gmra.mrb[0].mxu0 %v1755
        %v2210 = vpop.f32.mrb[0].mxu0
        %v2211 = vadd.f32 %v1118, %v2210
        %v2212 = vpop.f32.mrb[0].mxu0
        %v2213 = vpop.f32.mrb[0].mxu0
        %v2214 = vadd.f32 %v1123, %v2213
        %v2215 = vpop.f32.mrb[0].mxu0
        %2216 = vmatprep.mubr.bf16.mxu0 0
        %2217 = vmatmul.mubr.bf16.gmra.mrb[0].mxu0 %v1758
        %v2218 = vpop.f32.mrb[0].mxu0
        %v2219 = vadd.f32 %v1128, %v2218
        %v2220 = vpop.f32.mrb[0].mxu0
        %v2221 = vpop.f32.mrb[0].mxu0
        %v2222 = vadd.f32 %v1133, %v2221
        %v2223 = vpop.f32.mrb[0].mxu0
        %2224 = vmatprep.mubr.bf16.mxu0 0
        %2225 = vmatmul.mubr.bf16.gmra.mrb[0].mxu0 %v1761
        %v2226 = vpop.f32.mrb[0].mxu0
        %v2227 = vadd.f32 %v1138, %v2226
        %v2228 = vpop.f32.mrb[0].mxu0
        %v2229 = vpop.f32.mrb[0].mxu0
        %v2230 = vadd.f32 %v1143, %v2229
        %v2231 = vpop.f32.mrb[0].mxu0
        %2232 = vmatprep.mubr.bf16.mxu0 0
        %2233 = vmatmul.mubr.bf16.gmra.mrb[0].mxu0 %v1764
        %v2234 = vpop.f32.mrb[0].mxu0
        %v2235 = vadd.f32 %v1148, %v2234
        %v2236 = vpop.f32.mrb[0].mxu0
        %v2237 = vpop.f32.mrb[0].mxu0
        %v2238 = vadd.f32 %v1153, %v2237
        %v2239 = vpop.f32.mrb[0].mxu0
        %2240 = vmatprep.mubr.bf16.mxu0 0
        %2241 = vmatmul.mubr.bf16.gmra.mrb[0].mxu0 %v1767
        %v2242 = vpop.f32.mrb[0].mxu0
        %v2243 = vadd.f32 %v1158, %v2242
        %v2244 = vpop.f32.mrb[0].mxu0
        %v2245 = vpop.f32.mrb[0].mxu0
        %v2246 = vadd.f32 %v1163, %v2245
        %v2247 = vpop.f32.mrb[0].mxu0
        %2248 = vmatprep.mubr.bf16.mxu0 0
        %2249 = vmatmul.mubr.bf16.gmra.mrb[0].mxu0 %v1770
        %v2250 = vpop.f32.mrb[0].mxu0
        %v2251 = vadd.f32 %v1168, %v2250
        %v2252 = vpop.f32.mrb[0].mxu0
        %v2253 = vpop.f32.mrb[0].mxu0
        %v2254 = vadd.f32 %v1173, %v2253
        %v2255 = vpop.f32.mrb[0].mxu0
        %2256 = vmatprep.mubr.bf16.mxu0 0
        %2257 = vmatmul.mubr.bf16.gmra.mrb[0].mxu0 %v1773
        %v2258 = vpop.f32.mrb[0].mxu0
        %v2259 = vadd.f32 %v1178, %v2258
        %v2260 = vpop.f32.mrb[0].mxu0
        %v2261 = vpop.f32.mrb[0].mxu0
        %v2262 = vadd.f32 %v1183, %v2261
        %v2263 = vpop.f32.mrb[0].mxu0
        %2264 = vmatprep.mubr.bf16.mxu0 0
        %2265 = vmatmul.mubr.bf16.gmra.mrb[0].mxu0 %v1776
        %v2266 = vpop.f32.mrb[0].mxu0
        %v2267 = vadd.f32 %v1188, %v2266
        %v2268 = vpop.f32.mrb[0].mxu0
        %v2269 = vpop.f32.mrb[0].mxu0
        %v2270 = vadd.f32 %v1193, %v2269
        %v2271 = vpop.f32.mrb[0].mxu0
        %2272 = vmatprep.mubr.bf16.mxu0 0
        %2273 = vmatmul.mubr.bf16.gmra.mrb[0].mxu0 %v1779
        %v2274 = vpop.f32.mrb[0].mxu0
        %v2275 = vadd.f32 %v1198, %v2274
        %v2276 = vpop.f32.mrb[0].mxu0
        %v2277 = vpop.f32.mrb[0].mxu0
        %v2278 = vadd.f32 %v1203, %v2277
        %v2279 = vpop.f32.mrb[0].mxu0
        %2280 = vmatprep.mubr.bf16.mxu0 0
        %2281 = vmatmul.mubr.bf16.gmra.mrb[0].mxu0 %v1782
        %v2282 = vpop.f32.mrb[0].mxu0
        %v2283 = vadd.f32 %v1208, %v2282
        %v2284 = vpop.f32.mrb[0].mxu0
        %v2285 = vpop.f32.mrb[0].mxu0
        %v2286 = vadd.f32 %v1213, %v2285
        %v2287 = vpop.f32.mrb[0].mxu0
        %2288 = vmatprep.mubr.bf16.mxu0 0
        %2289 = vmatmul.mubr.bf16.gmra.mrb[0].mxu0 %v1785
        %v2290 = vpop.f32.mrb[0].mxu0
        %v2291 = vadd.f32 %v1218, %v2290
        %v2292 = vpop.f32.mrb[0].mxu0
        %v2293 = vpop.f32.mrb[0].mxu0
        %v2294 = vadd.f32 %v1223, %v2293
        %v2295 = vpop.f32.mrb[0].mxu0
        %2296 = vmatprep.mubr.bf16.mxu0 0
        %2297 = vmatmul.mubr.bf16.gmra.mrb[0].mxu0 %v1788
        %v2298 = vpop.f32.mrb[0].mxu0
        %v2299 = vadd.f32 %v1228, %v2298
        %v2300 = vpop.f32.mrb[0].mxu0
        %v2301 = vpop.f32.mrb[0].mxu0
        %v2302 = vadd.f32 %v1233, %v2301
        %v2303 = vpop.f32.mrb[0].mxu0
        %2304 = vmatprep.mubr.bf16.mxu0 0
        %2305 = vmatmul.mubr.bf16.gmra.mrb[0].mxu0 %v1791
        %v2306 = vpop.f32.mrb[0].mxu0
        %v2307 = vadd.f32 %v1238, %v2306
        %v2308 = vpop.f32.mrb[0].mxu0
        %v2309 = vpop.f32.mrb[0].mxu0
        %v2310 = vadd.f32 %v1243, %v2309
        %v2311 = vpop.f32.mrb[0].mxu0
        %2312 = vmatprep.mubr.bf16.mxu0 0
        %2313 = vmatmul.mubr.bf16.gmra.mrb[0].mxu0 %v1794
        %v2314 = vpop.f32.mrb[0].mxu0
        %v2315 = vadd.f32 %v1248, %v2314
        %v2316 = vpop.f32.mrb[0].mxu0
        %v2317 = vpop.f32.mrb[0].mxu0
        %v2318 = vadd.f32 %v1253, %v2317
        %v2319 = vpop.f32.mrb[0].mxu0
        %2320 = vmatprep.mubr.bf16.mxu0 0
        %2321 = vmatmul.mubr.bf16.gmra.mrb[0].mxu0 %v1797
        %v2322 = vpop.f32.mrb[0].mxu0
        %v2323 = vadd.f32 %v1258, %v2322
        %v2324 = vpop.f32.mrb[0].mxu0
        %v2325 = vpop.f32.mrb[0].mxu0
        %v2326 = vadd.f32 %v1263, %v2325
        %v2327 = vpop.f32.mrb[0].mxu0
        %2328 = vmatprep.mubr.bf16.mxu0 0
        %2329 = vmatmul.mubr.bf16.gmra.mrb[0].mxu0 %v1800
        %v2330 = vpop.f32.mrb[0].mxu0
        %v2331 = vadd.f32 %v1268, %v2330
        %v2332 = vpop.f32.mrb[0].mxu0
        %v2333 = vpop.f32.mrb[0].mxu0
        %v2334 = vadd.f32 %v1273, %v2333
        %v2335 = vpop.f32.mrb[0].mxu0
        %2336 = vmatprep.mubr.bf16.mxu0 0
        %2337 = vmatmul.mubr.bf16.gmra.mrb[0].mxu0 %v1803
        %v2338 = vpop.f32.mrb[0].mxu0
        %v2339 = vadd.f32 %v1278, %v2338
        %v2340 = vpop.f32.mrb[0].mxu0
        %v2341 = vpop.f32.mrb[0].mxu0
        %v2342 = vadd.f32 %v1283, %v2341
        %v2343 = vpop.f32.mrb[0].mxu0
        %2344 = vmatprep.mubr.bf16.mxu0 0
        %2345 = vmatmul.mubr.bf16.gmra.mrb[0].mxu0 %v1806
        %v2346 = vpop.f32.mrb[0].mxu0
        %v2347 = vadd.f32 %v1288, %v2346
        %v2348 = vpop.f32.mrb[0].mxu0
        %v2349 = vpop.f32.mrb[0].mxu0
        %v2350 = vadd.f32 %v1293, %v2349
        %v2351 = vpop.f32.mrb[0].mxu0
        %2352 = vdwg.mxu0
        %v2353 = vmax.f32 %v1843, 0.0
        %v2354 = vmax.f32 %v1846, 0.0
        %v2355 = vmax.f32 %v1851, 0.0
        %v2356 = vmax.f32 %v1854, 0.0
        %v2357 = vmax.f32 %v1859, 0.0
        %v2358 = vmax.f32 %v1862, 0.0
        %v2359 = vmax.f32 %v1867, 0.0
        %v2360 = vmax.f32 %v1870, 0.0
        %v2361 = vmax.f32 %v1875, 0.0
        %v2362 = vmax.f32 %v1878, 0.0
        %v2363 = vmax.f32 %v1883, 0.0
        %v2364 = vmax.f32 %v1886, 0.0
        %v2365 = vmax.f32 %v1891, 0.0
        %v2366 = vmax.f32 %v1894, 0.0
        %v2367 = vmax.f32 %v1899, 0.0
        %v2368 = vmax.f32 %v1902, 0.0
        %v2369 = vmax.f32 %v1907, 0.0
        %v2370 = vmax.f32 %v1910, 0.0
        %v2371 = vmax.f32 %v1915, 0.0
        %v2372 = vmax.f32 %v1918, 0.0
        %v2373 = vmax.f32 %v1923, 0.0
        %v2374 = vmax.f32 %v1926, 0.0
        %v2375 = vmax.f32 %v1931, 0.0
        %v2376 = vmax.f32 %v1934, 0.0
        %v2377 = vmax.f32 %v1939, 0.0
        %v2378 = vmax.f32 %v1942, 0.0
        %v2379 = vmax.f32 %v1947, 0.0
        %v2380 = vmax.f32 %v1950, 0.0
        %v2381 = vmax.f32 %v1955, 0.0
        %v2382 = vmax.f32 %v1958, 0.0
        %v2383 = vmax.f32 %v1963, 0.0
        %v2384 = vmax.f32 %v1966, 0.0
        %v2385 = vmax.f32 %v1971, 0.0
        %v2386 = vmax.f32 %v1974, 0.0
        %v2387 = vmax.f32 %v1979, 0.0
        %v2388 = vmax.f32 %v1982, 0.0
        %v2389 = vmax.f32 %v1987, 0.0
        %v2390 = vmax.f32 %v1990, 0.0
        %v2391 = vmax.f32 %v1995, 0.0
        %v2392 = vmax.f32 %v1998, 0.0
        %v2393 = vmax.f32 %v2003, 0.0
        %v2394 = vmax.f32 %v2006, 0.0
        %v2395 = vmax.f32 %v2011, 0.0
        %v2396 = vmax.f32 %v2014, 0.0
        %v2397 = vmax.f32 %v2019, 0.0
        %v2398 = vmax.f32 %v2022, 0.0
        %v2399 = vmax.f32 %v2027, 0.0
        %v2400 = vmax.f32 %v2030, 0.0
        %v2401 = vmax.f32 %v2035, 0.0
        %v2402 = vmax.f32 %v2038, 0.0
        %v2403 = vmax.f32 %v2043, 0.0
        %v2404 = vmax.f32 %v2046, 0.0
        %v2405 = vmax.f32 %v2051, 0.0
        %v2406 = vmax.f32 %v2054, 0.0
        %v2407 = vmax.f32 %v2059, 0.0
        %v2408 = vmax.f32 %v2062, 0.0
        %v2409 = vmax.f32 %v2067, 0.0
        %v2410 = vmax.f32 %v2070, 0.0
        %v2411 = vmax.f32 %v2075, 0.0
        %v2412 = vmax.f32 %v2078, 0.0
        %v2413 = vmax.f32 %v2083, 0.0
        %v2414 = vmax.f32 %v2086, 0.0
        %v2415 = vmax.f32 %v2091, 0.0
        %v2416 = vmax.f32 %v2094, 0.0
        %v2417 = vmax.f32 %v2099, 0.0
        %v2418 = vmax.f32 %v2102, 0.0
        %v2419 = vmax.f32 %v2107, 0.0
        %v2420 = vmax.f32 %v2110, 0.0
        %v2421 = vmax.f32 %v2115, 0.0
        %v2422 = vmax.f32 %v2118, 0.0
        %v2423 = vmax.f32 %v2123, 0.0
        %v2424 = vmax.f32 %v2126, 0.0
        %v2425 = vmax.f32 %v2131, 0.0
        %v2426 = vmax.f32 %v2134, 0.0
        %v2427 = vmax.f32 %v2139, 0.0
        %v2428 = vmax.f32 %v2142, 0.0
        %v2429 = vmax.f32 %v2147, 0.0
        %v2430 = vmax.f32 %v2150, 0.0
        %v2431 = vmax.f32 %v2155, 0.0
        %v2432 = vmax.f32 %v2158, 0.0
        %v2433 = vmax.f32 %v2163, 0.0
        %v2434 = vmax.f32 %v2166, 0.0
        %v2435 = vmax.f32 %v2171, 0.0
        %v2436 = vmax.f32 %v2174, 0.0
        %v2437 = vmax.f32 %v2179, 0.0
        %v2438 = vmax.f32 %v2182, 0.0
        %v2439 = vmax.f32 %v2187, 0.0
        %v2440 = vmax.f32 %v2190, 0.0
        %v2441 = vmax.f32 %v2195, 0.0
        %v2442 = vmax.f32 %v2198, 0.0
        %v2443 = vmax.f32 %v2203, 0.0
        %v2444 = vmax.f32 %v2206, 0.0
        %v2445 = vmax.f32 %v2211, 0.0
        %v2446 = vmax.f32 %v2214, 0.0
        %v2447 = vmax.f32 %v2219, 0.0
        %v2448 = vmax.f32 %v2222, 0.0
        %v2449 = vmax.f32 %v2227, 0.0
        %v2450 = vmax.f32 %v2230, 0.0
        %v2451 = vmax.f32 %v2235, 0.0
        %v2452 = vmax.f32 %v2238, 0.0
        %v2453 = vmax.f32 %v2243, 0.0
        %v2454 = vmax.f32 %v2246, 0.0
        %v2455 = vmax.f32 %v2251, 0.0
        %v2456 = vmax.f32 %v2254, 0.0
        %v2457 = vmax.f32 %v2259, 0.0
        %v2458 = vmax.f32 %v2262, 0.0
        %v2459 = vmax.f32 %v2267, 0.0
        %v2460 = vmax.f32 %v2270, 0.0
        %v2461 = vmax.f32 %v2275, 0.0
        %v2462 = vmax.f32 %v2278, 0.0
        %v2463 = vmax.f32 %v2283, 0.0
        %v2464 = vmax.f32 %v2286, 0.0
        %v2465 = vmax.f32 %v2291, 0.0
        %v2466 = vmax.f32 %v2294, 0.0
        %v2467 = vmax.f32 %v2299, 0.0
        %v2468 = vmax.f32 %v2302, 0.0
        %v2469 = vmax.f32 %v2307, 0.0
        %v2470 = vmax.f32 %v2310, 0.0
        %v2471 = vmax.f32 %v2315, 0.0
        %v2472 = vmax.f32 %v2318, 0.0
        %v2473 = vmax.f32 %v2323, 0.0
        %v2474 = vmax.f32 %v2326, 0.0
        %v2475 = vmax.f32 %v2331, 0.0
        %v2476 = vmax.f32 %v2334, 0.0
        %v2477 = vmax.f32 %v2339, 0.0
        %v2478 = vmax.f32 %v2342, 0.0
        %v2479 = vmax.f32 %v2347, 0.0
        %v2480 = vmax.f32 %v2350, 0.0
        %v2481 = vld [vmem:[%s3] sm:$0xff]
        %v2482 = vld [vmem:[%s3 + $0x8] sm:$0xff]
        %v2483 = vld [vmem:[%s3 + $0x10] sm:$0xff]
        %v2484 = vld [vmem:[%s3 + $0x18] sm:$0xff]
        %v2485 = vld [vmem:[%s3 + $0x20] sm:$0xff]
        %v2486 = vld [vmem:[%s3 + $0x28] sm:$0xff]
        %v2487 = vld [vmem:[%s3 + $0x30] sm:$0xff]
        %v2488 = vld [vmem:[%s3 + $0x38] sm:$0xff]
        %v2489 = vld [vmem:[%s3 + $0x40] sm:$0xff]
        %v2490 = vld [vmem:[%s3 + $0x48] sm:$0xff]
        %v2491 = vld [vmem:[%s3 + $0x50] sm:$0xff]
        %v2492 = vld [vmem:[%s3 + $0x58] sm:$0xff]
        %v2493 = vld [vmem:[%s3 + $0x60] sm:$0xff]
        %v2494 = vld [vmem:[%s3 + $0x68] sm:$0xff]
        %v2495 = vld [vmem:[%s3 + $0x70] sm:$0xff]
        %v2496 = vld [vmem:[%s3 + $0x78] sm:$0xff]
        %v2497 = vld [vmem:[%s3 + $0x80] sm:$0xff]
        %v2498 = vld [vmem:[%s3 + $0x88] sm:$0xff]
        %v2499 = vld [vmem:[%s3 + $0x90] sm:$0xff]
        %v2500 = vld [vmem:[%s3 + $0x98] sm:$0xff]
        %v2501 = vld [vmem:[%s3 + $0xa0] sm:$0xff]
        %v2502 = vld [vmem:[%s3 + $0xa8] sm:$0xff]
        %v2503 = vld [vmem:[%s3 + $0xb0] sm:$0xff]
        %v2504 = vld [vmem:[%s3 + $0xb8] sm:$0xff]
        %v2505 = vld [vmem:[%s3 + $0xc0] sm:$0xff]
        %v2506 = vld [vmem:[%s3 + $0xc8] sm:$0xff]
        %v2507 = vld [vmem:[%s3 + $0xd0] sm:$0xff]
        %v2508 = vld [vmem:[%s3 + $0xd8] sm:$0xff]
        %v2509 = vld [vmem:[%s3 + $0xe0] sm:$0xff]
        %v2510 = vld [vmem:[%s3 + $0xe8] sm:$0xff]
        %v2511 = vld [vmem:[%s3 + $0xf0] sm:$0xff]
        %v2512 = vld [vmem:[%s3 + $0xf8] sm:$0xff]
        %v2513 = vld [vmem:[%s3 + $0x100] sm:$0xff]
        %v2514 = vld [vmem:[%s3 + $0x108] sm:$0xff]
        %v2515 = vld [vmem:[%s3 + $0x110] sm:$0xff]
        %v2516 = vld [vmem:[%s3 + $0x118] sm:$0xff]
        %v2517 = vld [vmem:[%s3 + $0x120] sm:$0xff]
        %v2518 = vld [vmem:[%s3 + $0x128] sm:$0xff]
        %v2519 = vld [vmem:[%s3 + $0x130] sm:$0xff]
        %v2520 = vld [vmem:[%s3 + $0x138] sm:$0xff]
        %v2521 = vld [vmem:[%s3 + $0x140] sm:$0xff]
        %v2522 = vld [vmem:[%s3 + $0x148] sm:$0xff]
        %v2523 = vld [vmem:[%s3 + $0x150] sm:$0xff]
        %v2524 = vld [vmem:[%s3 + $0x158] sm:$0xff]
        %v2525 = vld [vmem:[%s3 + $0x160] sm:$0xff]
        %v2526 = vld [vmem:[%s3 + $0x168] sm:$0xff]
        %v2527 = vld [vmem:[%s3 + $0x170] sm:$0xff]
        %v2528 = vld [vmem:[%s3 + $0x178] sm:$0xff]
        %v2529 = vld [vmem:[%s3 + $0x180] sm:$0xff]
        %v2530 = vld [vmem:[%s3 + $0x188] sm:$0xff]
        %v2531 = vld [vmem:[%s3 + $0x190] sm:$0xff]
        %v2532 = vld [vmem:[%s3 + $0x198] sm:$0xff]
        %v2533 = vld [vmem:[%s3 + $0x1a0] sm:$0xff]
        %v2534 = vld [vmem:[%s3 + $0x1a8] sm:$0xff]
        %v2535 = vld [vmem:[%s3 + $0x1b0] sm:$0xff]
        %v2536 = vld [vmem:[%s3 + $0x1b8] sm:$0xff]
        %v2537 = vld [vmem:[%s3 + $0x1c0] sm:$0xff]
        %v2538 = vld [vmem:[%s3 + $0x1c8] sm:$0xff]
        %v2539 = vld [vmem:[%s3 + $0x1d0] sm:$0xff]
        %v2540 = vld [vmem:[%s3 + $0x1d8] sm:$0xff]
        %v2541 = vld [vmem:[%s3 + $0x1e0] sm:$0xff]
        %v2542 = vld [vmem:[%s3 + $0x1e8] sm:$0xff]
        %v2543 = vld [vmem:[%s3 + $0x1f0] sm:$0xff]
        %v2544 = vld [vmem:[%s3 + $0x1f8] sm:$0xff]
        %v2545 = vld [vmem:[%s3 + $0x200] sm:$0xff]
        %v2546 = vld [vmem:[%s3 + $0x208] sm:$0xff]
        %v2547 = vld [vmem:[%s3 + $0x210] sm:$0xff]
        %v2548 = vld [vmem:[%s3 + $0x218] sm:$0xff]
        %v2549 = vld [vmem:[%s3 + $0x220] sm:$0xff]
        %v2550 = vld [vmem:[%s3 + $0x228] sm:$0xff]
        %v2551 = vld [vmem:[%s3 + $0x230] sm:$0xff]
        %v2552 = vld [vmem:[%s3 + $0x238] sm:$0xff]
        %v2553 = vld [vmem:[%s3 + $0x240] sm:$0xff]
        %v2554 = vld [vmem:[%s3 + $0x248] sm:$0xff]
        %v2555 = vld [vmem:[%s3 + $0x250] sm:$0xff]
        %v2556 = vld [vmem:[%s3 + $0x258] sm:$0xff]
        %v2557 = vld [vmem:[%s3 + $0x260] sm:$0xff]
        %v2558 = vld [vmem:[%s3 + $0x268] sm:$0xff]
        %v2559 = vld [vmem:[%s3 + $0x270] sm:$0xff]
        %v2560 = vld [vmem:[%s3 + $0x278] sm:$0xff]
        %v2561 = vld [vmem:[%s3 + $0x280] sm:$0xff]
        %v2562 = vld [vmem:[%s3 + $0x288] sm:$0xff]
        %v2563 = vld [vmem:[%s3 + $0x290] sm:$0xff]
        %v2564 = vld [vmem:[%s3 + $0x298] sm:$0xff]
        %v2565 = vld [vmem:[%s3 + $0x2a0] sm:$0xff]
        %v2566 = vld [vmem:[%s3 + $0x2a8] sm:$0xff]
        %v2567 = vld [vmem:[%s3 + $0x2b0] sm:$0xff]
        %v2568 = vld [vmem:[%s3 + $0x2b8] sm:$0xff]
        %v2569 = vld [vmem:[%s3 + $0x2c0] sm:$0xff]
        %v2570 = vld [vmem:[%s3 + $0x2c8] sm:$0xff]
        %v2571 = vld [vmem:[%s3 + $0x2d0] sm:$0xff]
        %v2572 = vld [vmem:[%s3 + $0x2d8] sm:$0xff]
        %v2573 = vld [vmem:[%s3 + $0x2e0] sm:$0xff]
        %v2574 = vld [vmem:[%s3 + $0x2e8] sm:$0xff]
        %v2575 = vld [vmem:[%s3 + $0x2f0] sm:$0xff]
        %v2576 = vld [vmem:[%s3 + $0x2f8] sm:$0xff]
        %v2577 = vld [vmem:[%s3 + $0x300] sm:$0xff]
        %v2578 = vld [vmem:[%s3 + $0x308] sm:$0xff]
        %v2579 = vld [vmem:[%s3 + $0x310] sm:$0xff]
        %v2580 = vld [vmem:[%s3 + $0x318] sm:$0xff]
        %v2581 = vld [vmem:[%s3 + $0x320] sm:$0xff]
        %v2582 = vld [vmem:[%s3 + $0x328] sm:$0xff]
        %v2583 = vld [vmem:[%s3 + $0x330] sm:$0xff]
        %v2584 = vld [vmem:[%s3 + $0x338] sm:$0xff]
        %v2585 = vld [vmem:[%s3 + $0x340] sm:$0xff]
        %v2586 = vld [vmem:[%s3 + $0x348] sm:$0xff]
        %v2587 = vld [vmem:[%s3 + $0x350] sm:$0xff]
        %v2588 = vld [vmem:[%s3 + $0x358] sm:$0xff]
        %v2589 = vld [vmem:[%s3 + $0x360] sm:$0xff]
        %v2590 = vld [vmem:[%s3 + $0x368] sm:$0xff]
        %v2591 = vld [vmem:[%s3 + $0x370] sm:$0xff]
        %v2592 = vld [vmem:[%s3 + $0x378] sm:$0xff]
        %v2593 = vld [vmem:[%s3 + $0x380] sm:$0xff]
        %v2594 = vld [vmem:[%s3 + $0x388] sm:$0xff]
        %v2595 = vld [vmem:[%s3 + $0x390] sm:$0xff]
        %v2596 = vld [vmem:[%s3 + $0x398] sm:$0xff]
        %v2597 = vld [vmem:[%s3 + $0x3a0] sm:$0xff]
        %v2598 = vld [vmem:[%s3 + $0x3a8] sm:$0xff]
        %v2599 = vld [vmem:[%s3 + $0x3b0] sm:$0xff]
        %v2600 = vld [vmem:[%s3 + $0x3b8] sm:$0xff]
        %v2601 = vld [vmem:[%s3 + $0x3c0] sm:$0xff]
        %v2602 = vld [vmem:[%s3 + $0x3c8] sm:$0xff]
        %v2603 = vld [vmem:[%s3 + $0x3d0] sm:$0xff]
        %v2604 = vld [vmem:[%s3 + $0x3d8] sm:$0xff]
        %v2605 = vld [vmem:[%s3 + $0x3e0] sm:$0xff]
        %v2606 = vld [vmem:[%s3 + $0x3e8] sm:$0xff]
        %v2607 = vld [vmem:[%s3 + $0x3f0] sm:$0xff]
        %v2608 = vld [vmem:[%s3 + $0x3f8] sm:$0xff]
        %v2609 = vld [vmem:[%s3 + $0x400] sm:$0xff]
        %v2610 = vld [vmem:[%s3 + $0x408] sm:$0xff]
        %v2611 = vld [vmem:[%s3 + $0x410] sm:$0xff]
        %v2612 = vld [vmem:[%s3 + $0x418] sm:$0xff]
        %v2613 = vld [vmem:[%s3 + $0x420] sm:$0xff]
        %v2614 = vld [vmem:[%s3 + $0x428] sm:$0xff]
        %v2615 = vld [vmem:[%s3 + $0x430] sm:$0xff]
        %v2616 = vld [vmem:[%s3 + $0x438] sm:$0xff]
        %v2617 = vld [vmem:[%s3 + $0x440] sm:$0xff]
        %v2618 = vld [vmem:[%s3 + $0x448] sm:$0xff]
        %v2619 = vld [vmem:[%s3 + $0x450] sm:$0xff]
        %v2620 = vld [vmem:[%s3 + $0x458] sm:$0xff]
        %v2621 = vld [vmem:[%s3 + $0x460] sm:$0xff]
        %v2622 = vld [vmem:[%s3 + $0x468] sm:$0xff]
        %v2623 = vld [vmem:[%s3 + $0x470] sm:$0xff]
        %v2624 = vld [vmem:[%s3 + $0x478] sm:$0xff]
        %v2625 = vld [vmem:[%s3 + $0x480] sm:$0xff]
        %v2626 = vld [vmem:[%s3 + $0x488] sm:$0xff]
        %v2627 = vld [vmem:[%s3 + $0x490] sm:$0xff]
        %v2628 = vld [vmem:[%s3 + $0x498] sm:$0xff]
        %v2629 = vld [vmem:[%s3 + $0x4a0] sm:$0xff]
        %v2630 = vld [vmem:[%s3 + $0x4a8] sm:$0xff]
        %v2631 = vld [vmem:[%s3 + $0x4b0] sm:$0xff]
        %v2632 = vld [vmem:[%s3 + $0x4b8] sm:$0xff]
        %v2633 = vld [vmem:[%s3 + $0x4c0] sm:$0xff]
        %v2634 = vld [vmem:[%s3 + $0x4c8] sm:$0xff]
        %v2635 = vld [vmem:[%s3 + $0x4d0] sm:$0xff]
        %v2636 = vld [vmem:[%s3 + $0x4d8] sm:$0xff]
        %v2637 = vld [vmem:[%s3 + $0x4e0] sm:$0xff]
        %v2638 = vld [vmem:[%s3 + $0x4e8] sm:$0xff]
        %v2639 = vld [vmem:[%s3 + $0x4f0] sm:$0xff]
        %v2640 = vld [vmem:[%s3 + $0x4f8] sm:$0xff]
        %v2641 = vld [vmem:[%s3 + $0x500] sm:$0xff]
        %v2642 = vld [vmem:[%s3 + $0x508] sm:$0xff]
        %v2643 = vld [vmem:[%s3 + $0x510] sm:$0xff]
        %v2644 = vld [vmem:[%s3 + $0x518] sm:$0xff]
        %v2645 = vld [vmem:[%s3 + $0x520] sm:$0xff]
        %v2646 = vld [vmem:[%s3 + $0x528] sm:$0xff]
        %v2647 = vld [vmem:[%s3 + $0x530] sm:$0xff]
        %v2648 = vld [vmem:[%s3 + $0x538] sm:$0xff]
        %v2649 = vld [vmem:[%s3 + $0x540] sm:$0xff]
        %v2650 = vld [vmem:[%s3 + $0x548] sm:$0xff]
        %v2651 = vld [vmem:[%s3 + $0x550] sm:$0xff]
        %v2652 = vld [vmem:[%s3 + $0x558] sm:$0xff]
        %v2653 = vld [vmem:[%s3 + $0x560] sm:$0xff]
        %v2654 = vld [vmem:[%s3 + $0x568] sm:$0xff]
        %v2655 = vld [vmem:[%s3 + $0x570] sm:$0xff]
        %v2656 = vld [vmem:[%s3 + $0x578] sm:$0xff]
        %v2657 = vld [vmem:[%s3 + $0x580] sm:$0xff]
        %v2658 = vld [vmem:[%s3 + $0x588] sm:$0xff]
        %v2659 = vld [vmem:[%s3 + $0x590] sm:$0xff]
        %v2660 = vld [vmem:[%s3 + $0x598] sm:$0xff]
        %v2661 = vld [vmem:[%s3 + $0x5a0] sm:$0xff]
        %v2662 = vld [vmem:[%s3 + $0x5a8] sm:$0xff]
        %v2663 = vld [vmem:[%s3 + $0x5b0] sm:$0xff]
        %v2664 = vld [vmem:[%s3 + $0x5b8] sm:$0xff]
        %v2665 = vld [vmem:[%s3 + $0x5c0] sm:$0xff]
        %v2666 = vld [vmem:[%s3 + $0x5c8] sm:$0xff]
        %v2667 = vld [vmem:[%s3 + $0x5d0] sm:$0xff]
        %v2668 = vld [vmem:[%s3 + $0x5d8] sm:$0xff]
        %v2669 = vld [vmem:[%s3 + $0x5e0] sm:$0xff]
        %v2670 = vld [vmem:[%s3 + $0x5e8] sm:$0xff]
        %v2671 = vld [vmem:[%s3 + $0x5f0] sm:$0xff]
        %v2672 = vld [vmem:[%s3 + $0x5f8] sm:$0xff]
        %v2673 = vld [vmem:[%s3 + $0x600] sm:$0xff]
        %v2674 = vld [vmem:[%s3 + $0x608] sm:$0xff]
        %v2675 = vld [vmem:[%s3 + $0x610] sm:$0xff]
        %v2676 = vld [vmem:[%s3 + $0x618] sm:$0xff]
        %v2677 = vld [vmem:[%s3 + $0x620] sm:$0xff]
        %v2678 = vld [vmem:[%s3 + $0x628] sm:$0xff]
        %v2679 = vld [vmem:[%s3 + $0x630] sm:$0xff]
        %v2680 = vld [vmem:[%s3 + $0x638] sm:$0xff]
        %v2681 = vld [vmem:[%s3 + $0x640] sm:$0xff]
        %v2682 = vld [vmem:[%s3 + $0x648] sm:$0xff]
        %v2683 = vld [vmem:[%s3 + $0x650] sm:$0xff]
        %v2684 = vld [vmem:[%s3 + $0x658] sm:$0xff]
        %v2685 = vld [vmem:[%s3 + $0x660] sm:$0xff]
        %v2686 = vld [vmem:[%s3 + $0x668] sm:$0xff]
        %v2687 = vld [vmem:[%s3 + $0x670] sm:$0xff]
        %v2688 = vld [vmem:[%s3 + $0x678] sm:$0xff]
        %v2689 = vld [vmem:[%s3 + $0x680] sm:$0xff]
        %v2690 = vld [vmem:[%s3 + $0x688] sm:$0xff]
        %v2691 = vld [vmem:[%s3 + $0x690] sm:$0xff]
        %v2692 = vld [vmem:[%s3 + $0x698] sm:$0xff]
        %v2693 = vld [vmem:[%s3 + $0x6a0] sm:$0xff]
        %v2694 = vld [vmem:[%s3 + $0x6a8] sm:$0xff]
        %v2695 = vld [vmem:[%s3 + $0x6b0] sm:$0xff]
        %v2696 = vld [vmem:[%s3 + $0x6b8] sm:$0xff]
        %v2697 = vld [vmem:[%s3 + $0x6c0] sm:$0xff]
        %v2698 = vld [vmem:[%s3 + $0x6c8] sm:$0xff]
        %v2699 = vld [vmem:[%s3 + $0x6d0] sm:$0xff]
        %v2700 = vld [vmem:[%s3 + $0x6d8] sm:$0xff]
        %v2701 = vld [vmem:[%s3 + $0x6e0] sm:$0xff]
        %v2702 = vld [vmem:[%s3 + $0x6e8] sm:$0xff]
        %v2703 = vld [vmem:[%s3 + $0x6f0] sm:$0xff]
        %v2704 = vld [vmem:[%s3 + $0x6f8] sm:$0xff]
        %v2705 = vld [vmem:[%s3 + $0x700] sm:$0xff]
        %v2706 = vld [vmem:[%s3 + $0x708] sm:$0xff]
        %v2707 = vld [vmem:[%s3 + $0x710] sm:$0xff]
        %v2708 = vld [vmem:[%s3 + $0x718] sm:$0xff]
        %v2709 = vld [vmem:[%s3 + $0x720] sm:$0xff]
        %v2710 = vld [vmem:[%s3 + $0x728] sm:$0xff]
        %v2711 = vld [vmem:[%s3 + $0x730] sm:$0xff]
        %v2712 = vld [vmem:[%s3 + $0x738] sm:$0xff]
        %v2713 = vld [vmem:[%s3 + $0x740] sm:$0xff]
        %v2714 = vld [vmem:[%s3 + $0x748] sm:$0xff]
        %v2715 = vld [vmem:[%s3 + $0x750] sm:$0xff]
        %v2716 = vld [vmem:[%s3 + $0x758] sm:$0xff]
        %v2717 = vld [vmem:[%s3 + $0x760] sm:$0xff]
        %v2718 = vld [vmem:[%s3 + $0x768] sm:$0xff]
        %v2719 = vld [vmem:[%s3 + $0x770] sm:$0xff]
        %v2720 = vld [vmem:[%s3 + $0x778] sm:$0xff]
        %v2721 = vld [vmem:[%s3 + $0x780] sm:$0xff]
        %v2722 = vld [vmem:[%s3 + $0x788] sm:$0xff]
        %v2723 = vld [vmem:[%s3 + $0x790] sm:$0xff]
        %v2724 = vld [vmem:[%s3 + $0x798] sm:$0xff]
        %v2725 = vld [vmem:[%s3 + $0x7a0] sm:$0xff]
        %v2726 = vld [vmem:[%s3 + $0x7a8] sm:$0xff]
        %v2727 = vld [vmem:[%s3 + $0x7b0] sm:$0xff]
        %v2728 = vld [vmem:[%s3 + $0x7b8] sm:$0xff]
        %v2729 = vld [vmem:[%s3 + $0x7c0] sm:$0xff]
        %v2730 = vld [vmem:[%s3 + $0x7c8] sm:$0xff]
        %v2731 = vld [vmem:[%s3 + $0x7d0] sm:$0xff]
        %v2732 = vld [vmem:[%s3 + $0x7d8] sm:$0xff]
        %v2733 = vld [vmem:[%s3 + $0x7e0] sm:$0xff]
        %v2734 = vld [vmem:[%s3 + $0x7e8] sm:$0xff]
        %v2735 = vld [vmem:[%s3 + $0x7f0] sm:$0xff]
        %v2736 = vld [vmem:[%s3 + $0x7f8] sm:$0xff]
        %v2737 = vpack.c.bf16 %v2354, %v2353
        %v2738 = vpack.c.bf16 %v2356, %v2355
        %v2739 = vpack.c.bf16 %v2358, %v2357
        %v2740 = vpack.c.bf16 %v2360, %v2359
        %v2741 = vpack.c.bf16 %v2362, %v2361
        %v2742 = vpack.c.bf16 %v2364, %v2363
        %v2743 = vpack.c.bf16 %v2366, %v2365
        %v2744 = vpack.c.bf16 %v2368, %v2367
        %v2745 = vpack.c.bf16 %v2370, %v2369
        %v2746 = vpack.c.bf16 %v2372, %v2371
        %v2747 = vpack.c.bf16 %v2374, %v2373
        %v2748 = vpack.c.bf16 %v2376, %v2375
        %v2749 = vpack.c.bf16 %v2378, %v2377
        %v2750 = vpack.c.bf16 %v2380, %v2379
        %v2751 = vpack.c.bf16 %v2382, %v2381
        %v2752 = vpack.c.bf16 %v2384, %v2383
        %v2753 = vpack.c.bf16 %v2386, %v2385
        %v2754 = vpack.c.bf16 %v2388, %v2387
        %v2755 = vpack.c.bf16 %v2390, %v2389
        %v2756 = vpack.c.bf16 %v2392, %v2391
        %v2757 = vpack.c.bf16 %v2394, %v2393
        %v2758 = vpack.c.bf16 %v2396, %v2395
        %v2759 = vpack.c.bf16 %v2398, %v2397
        %v2760 = vpack.c.bf16 %v2400, %v2399
        %v2761 = vpack.c.bf16 %v2402, %v2401
        %v2762 = vpack.c.bf16 %v2404, %v2403
        %v2763 = vpack.c.bf16 %v2406, %v2405
        %v2764 = vpack.c.bf16 %v2408, %v2407
        %v2765 = vpack.c.bf16 %v2410, %v2409
        %v2766 = vpack.c.bf16 %v2412, %v2411
        %v2767 = vpack.c.bf16 %v2414, %v2413
        %v2768 = vpack.c.bf16 %v2416, %v2415
        %v2769 = vpack.c.bf16 %v2418, %v2417
        %v2770 = vpack.c.bf16 %v2420, %v2419
        %v2771 = vpack.c.bf16 %v2422, %v2421
        %v2772 = vpack.c.bf16 %v2424, %v2423
        %v2773 = vpack.c.bf16 %v2426, %v2425
        %v2774 = vpack.c.bf16 %v2428, %v2427
        %v2775 = vpack.c.bf16 %v2430, %v2429
        %v2776 = vpack.c.bf16 %v2432, %v2431
        %v2777 = vpack.c.bf16 %v2434, %v2433
        %v2778 = vpack.c.bf16 %v2436, %v2435
        %v2779 = vpack.c.bf16 %v2438, %v2437
        %v2780 = vpack.c.bf16 %v2440, %v2439
        %v2781 = vpack.c.bf16 %v2442, %v2441
        %v2782 = vpack.c.bf16 %v2444, %v2443
        %v2783 = vpack.c.bf16 %v2446, %v2445
        %v2784 = vpack.c.bf16 %v2448, %v2447
        %v2785 = vpack.c.bf16 %v2450, %v2449
        %v2786 = vpack.c.bf16 %v2452, %v2451
        %v2787 = vpack.c.bf16 %v2454, %v2453
        %v2788 = vpack.c.bf16 %v2456, %v2455
        %v2789 = vpack.c.bf16 %v2458, %v2457
        %v2790 = vpack.c.bf16 %v2460, %v2459
        %v2791 = vpack.c.bf16 %v2462, %v2461
        %v2792 = vpack.c.bf16 %v2464, %v2463
        %v2793 = vpack.c.bf16 %v2466, %v2465
        %v2794 = vpack.c.bf16 %v2468, %v2467
        %v2795 = vpack.c.bf16 %v2470, %v2469
        %v2796 = vpack.c.bf16 %v2472, %v2471
        %v2797 = vpack.c.bf16 %v2474, %v2473
        %v2798 = vpack.c.bf16 %v2476, %v2475
        %v2799 = vpack.c.bf16 %v2478, %v2477
        %v2800 = vpack.c.bf16 %v2480, %v2479
        %2802 = vset.pattern.permute.xlu0 0
        %2803 = vperm.xlu0 %2802, %v463
        %v2804 = vpop.permute.xlu0 %2803
        %2807 = vset.pattern.permute.xlu0 0
        %2808 = vperm.xlu0 %2807, %v464
        %v2809 = vpop.permute.xlu0 %2808
        %2812 = vset.pattern.permute.xlu0 0
        %2813 = vperm.xlu0 %2812, %v465
        %v2814 = vpop.permute.xlu0 %2813
        %2817 = vset.pattern.permute.xlu0 0
        %2818 = vperm.xlu0 %2817, %v466
        %v2819 = vpop.permute.xlu0 %2818
        %2822 = vset.pattern.permute.xlu0 0
        %2823 = vperm.xlu0 %2822, %v467
        %v2824 = vpop.permute.xlu0 %2823
        %2827 = vset.pattern.permute.xlu0 0
        %2828 = vperm.xlu0 %2827, %v468
        %v2829 = vpop.permute.xlu0 %2828
        %2832 = vset.pattern.permute.xlu0 0
        %2833 = vperm.xlu0 %2832, %v469
        %v2834 = vpop.permute.xlu0 %2833
        %2837 = vset.pattern.permute.xlu0 0
        %2838 = vperm.xlu0 %2837, %v470
        %v2839 = vpop.permute.xlu0 %2838
        %2842 = vset.pattern.permute.xlu0 0
        %2843 = vperm.xlu0 %2842, %v471
        %v2844 = vpop.permute.xlu0 %2843
        %2847 = vset.pattern.permute.xlu0 0
        %2848 = vperm.xlu0 %2847, %v472
        %v2849 = vpop.permute.xlu0 %2848
        %2852 = vset.pattern.permute.xlu0 0
        %2853 = vperm.xlu0 %2852, %v473
        %v2854 = vpop.permute.xlu0 %2853
        %2857 = vset.pattern.permute.xlu0 0
        %2858 = vperm.xlu0 %2857, %v474
        %v2859 = vpop.permute.xlu0 %2858
        %2862 = vset.pattern.permute.xlu0 0
        %2863 = vperm.xlu0 %2862, %v475
        %v2864 = vpop.permute.xlu0 %2863
        %2867 = vset.pattern.permute.xlu0 0
        %2868 = vperm.xlu0 %2867, %v476
        %v2869 = vpop.permute.xlu0 %2868
        %2872 = vset.pattern.permute.xlu0 0
        %2873 = vperm.xlu0 %2872, %v477
        %v2874 = vpop.permute.xlu0 %2873
        %2877 = vset.pattern.permute.xlu0 0
        %2878 = vperm.xlu0 %2877, %v478
        %v2879 = vpop.permute.xlu0 %2878
        %2882 = vset.pattern.permute.xlu0 0
        %2883 = vperm.xlu0 %2882, %v479
        %v2884 = vpop.permute.xlu0 %2883
        %2887 = vset.pattern.permute.xlu0 0
        %2888 = vperm.xlu0 %2887, %v480
        %v2889 = vpop.permute.xlu0 %2888
        %2892 = vset.pattern.permute.xlu0 0
        %2893 = vperm.xlu0 %2892, %v481
        %v2894 = vpop.permute.xlu0 %2893
        %2897 = vset.pattern.permute.xlu0 0
        %2898 = vperm.xlu0 %2897, %v482
        %v2899 = vpop.permute.xlu0 %2898
        %2902 = vset.pattern.permute.xlu0 0
        %2903 = vperm.xlu0 %2902, %v483
        %v2904 = vpop.permute.xlu0 %2903
        %2907 = vset.pattern.permute.xlu0 0
        %2908 = vperm.xlu0 %2907, %v484
        %v2909 = vpop.permute.xlu0 %2908
        %2912 = vset.pattern.permute.xlu0 0
        %2913 = vperm.xlu0 %2912, %v485
        %v2914 = vpop.permute.xlu0 %2913
        %2917 = vset.pattern.permute.xlu0 0
        %2918 = vperm.xlu0 %2917, %v486
        %v2919 = vpop.permute.xlu0 %2918
        %2922 = vset.pattern.permute.xlu0 0
        %2923 = vperm.xlu0 %2922, %v487
        %v2924 = vpop.permute.xlu0 %2923
        %2927 = vset.pattern.permute.xlu0 0
        %2928 = vperm.xlu0 %2927, %v488
        %v2929 = vpop.permute.xlu0 %2928
        %2932 = vset.pattern.permute.xlu0 0
        %2933 = vperm.xlu0 %2932, %v489
        %v2934 = vpop.permute.xlu0 %2933
        %2937 = vset.pattern.permute.xlu0 0
        %2938 = vperm.xlu0 %2937, %v490
        %v2939 = vpop.permute.xlu0 %2938
        %2942 = vset.pattern.permute.xlu0 0
        %2943 = vperm.xlu0 %2942, %v491
        %v2944 = vpop.permute.xlu0 %2943
        %2947 = vset.pattern.permute.xlu0 0
        %2948 = vperm.xlu0 %2947, %v492
        %v2949 = vpop.permute.xlu0 %2948
        %2952 = vset.pattern.permute.xlu0 0
        %2953 = vperm.xlu0 %2952, %v493
        %v2954 = vpop.permute.xlu0 %2953
        %2957 = vset.pattern.permute.xlu0 0
        %2958 = vperm.xlu0 %2957, %v494
        %v2959 = vpop.permute.xlu0 %2958
        %2962 = vset.pattern.permute.xlu0 0
        %2963 = vperm.xlu0 %2962, %v495
        %v2964 = vpop.permute.xlu0 %2963
        %2967 = vset.pattern.permute.xlu0 0
        %2968 = vperm.xlu0 %2967, %v496
        %v2969 = vpop.permute.xlu0 %2968
        %2972 = vset.pattern.permute.xlu0 0
        %2973 = vperm.xlu0 %2972, %v497
        %v2974 = vpop.permute.xlu0 %2973
        %2977 = vset.pattern.permute.xlu0 0
        %2978 = vperm.xlu0 %2977, %v498
        %v2979 = vpop.permute.xlu0 %2978
        %2982 = vset.pattern.permute.xlu0 0
        %2983 = vperm.xlu0 %2982, %v499
        %v2984 = vpop.permute.xlu0 %2983
        %2987 = vset.pattern.permute.xlu0 0
        %2988 = vperm.xlu0 %2987, %v500
        %v2989 = vpop.permute.xlu0 %2988
        %2992 = vset.pattern.permute.xlu0 0
        %2993 = vperm.xlu0 %2992, %v501
        %v2994 = vpop.permute.xlu0 %2993
        %2997 = vset.pattern.permute.xlu0 0
        %2998 = vperm.xlu0 %2997, %v502
        %v2999 = vpop.permute.xlu0 %2998
        %3002 = vset.pattern.permute.xlu0 0
        %3003 = vperm.xlu0 %3002, %v503
        %v3004 = vpop.permute.xlu0 %3003
        %3007 = vset.pattern.permute.xlu0 0
        %3008 = vperm.xlu0 %3007, %v504
        %v3009 = vpop.permute.xlu0 %3008
        %3012 = vset.pattern.permute.xlu0 0
        %3013 = vperm.xlu0 %3012, %v505
        %v3014 = vpop.permute.xlu0 %3013
        %3017 = vset.pattern.permute.xlu0 0
        %3018 = vperm.xlu0 %3017, %v506
        %v3019 = vpop.permute.xlu0 %3018
        %3022 = vset.pattern.permute.xlu0 0
        %3023 = vperm.xlu0 %3022, %v507
        %v3024 = vpop.permute.xlu0 %3023
        %3027 = vset.pattern.permute.xlu0 0
        %3028 = vperm.xlu0 %3027, %v508
        %v3029 = vpop.permute.xlu0 %3028
        %3032 = vset.pattern.permute.xlu0 0
        %3033 = vperm.xlu0 %3032, %v509
        %v3034 = vpop.permute.xlu0 %3033
        %3037 = vset.pattern.permute.xlu0 0
        %3038 = vperm.xlu0 %3037, %v510
        %v3039 = vpop.permute.xlu0 %3038
        %3042 = vset.pattern.permute.xlu0 0
        %3043 = vperm.xlu0 %3042, %v511
        %v3044 = vpop.permute.xlu0 %3043
        %3047 = vset.pattern.permute.xlu0 0
        %3048 = vperm.xlu0 %3047, %v512
        %v3049 = vpop.permute.xlu0 %3048
        %3052 = vset.pattern.permute.xlu0 0
        %3053 = vperm.xlu0 %3052, %v513
        %v3054 = vpop.permute.xlu0 %3053
        %3057 = vset.pattern.permute.xlu0 0
        %3058 = vperm.xlu0 %3057, %v514
        %v3059 = vpop.permute.xlu0 %3058
        %3062 = vset.pattern.permute.xlu0 0
        %3063 = vperm.xlu0 %3062, %v515
        %v3064 = vpop.permute.xlu0 %3063
        %3067 = vset.pattern.permute.xlu0 0
        %3068 = vperm.xlu0 %3067, %v516
        %v3069 = vpop.permute.xlu0 %3068
        %3072 = vset.pattern.permute.xlu0 0
        %3073 = vperm.xlu0 %3072, %v517
        %v3074 = vpop.permute.xlu0 %3073
        %3077 = vset.pattern.permute.xlu0 0
        %3078 = vperm.xlu0 %3077, %v518
        %v3079 = vpop.permute.xlu0 %3078
        %3082 = vset.pattern.permute.xlu0 0
        %3083 = vperm.xlu0 %3082, %v519
        %v3084 = vpop.permute.xlu0 %3083
        %3087 = vset.pattern.permute.xlu0 0
        %3088 = vperm.xlu0 %3087, %v520
        %v3089 = vpop.permute.xlu0 %3088
        %3092 = vset.pattern.permute.xlu0 0
        %3093 = vperm.xlu0 %3092, %v521
        %v3094 = vpop.permute.xlu0 %3093
        %3097 = vset.pattern.permute.xlu0 0
        %3098 = vperm.xlu0 %3097, %v522
        %v3099 = vpop.permute.xlu0 %3098
        %3102 = vset.pattern.permute.xlu0 0
        %3103 = vperm.xlu0 %3102, %v523
        %v3104 = vpop.permute.xlu0 %3103
        %3107 = vset.pattern.permute.xlu0 0
        %3108 = vperm.xlu0 %3107, %v524
        %v3109 = vpop.permute.xlu0 %3108
        %3112 = vset.pattern.permute.xlu0 0
        %3113 = vperm.xlu0 %3112, %v525
        %v3114 = vpop.permute.xlu0 %3113
        %3117 = vset.pattern.permute.xlu0 0
        %3118 = vperm.xlu0 %3117, %v526
        %v3119 = vpop.permute.xlu0 %3118
        %v3377 = vunpack.c.l.b16 %v2481
        %v3378 = vunpack.c.h.b16 %v2481
        %v3379 = vunpack.c.l.b16 %v2482
        %v3380 = vunpack.c.h.b16 %v2482
        %v3381 = vunpack.c.l.b16 %v2483
        %v3382 = vunpack.c.h.b16 %v2483
        %v3383 = vunpack.c.l.b16 %v2484
        %v3384 = vunpack.c.h.b16 %v2484
        %v3385 = vunpack.c.l.b16 %v2485
        %v3386 = vunpack.c.h.b16 %v2485
        %v3387 = vunpack.c.l.b16 %v2486
        %v3388 = vunpack.c.h.b16 %v2486
        %v3389 = vunpack.c.l.b16 %v2487
        %v3390 = vunpack.c.h.b16 %v2487
        %v3391 = vunpack.c.l.b16 %v2488
        %v3392 = vunpack.c.h.b16 %v2488
        %v3393 = vunpack.c.l.b16 %v2489
        %v3394 = vunpack.c.h.b16 %v2489
        %v3395 = vunpack.c.l.b16 %v2490
        %v3396 = vunpack.c.h.b16 %v2490
        %v3397 = vunpack.c.l.b16 %v2491
        %v3398 = vunpack.c.h.b16 %v2491
        %v3399 = vunpack.c.l.b16 %v2492
        %v3400 = vunpack.c.h.b16 %v2492
        %v3401 = vunpack.c.l.b16 %v2493
        %v3402 = vunpack.c.h.b16 %v2493
        %v3403 = vunpack.c.l.b16 %v2494
        %v3404 = vunpack.c.h.b16 %v2494
        %v3405 = vunpack.c.l.b16 %v2495
        %v3406 = vunpack.c.h.b16 %v2495
        %v3407 = vunpack.c.l.b16 %v2496
        %v3408 = vunpack.c.h.b16 %v2496
        %v3409 = vunpack.c.l.b16 %v2497
        %v3410 = vunpack.c.h.b16 %v2497
        %v3411 = vunpack.c.l.b16 %v2498
        %v3412 = vunpack.c.h.b16 %v2498
        %v3413 = vunpack.c.l.b16 %v2499
        %v3414 = vunpack.c.h.b16 %v2499
        %v3415 = vunpack.c.l.b16 %v2500
        %v3416 = vunpack.c.h.b16 %v2500
        %v3417 = vunpack.c.l.b16 %v2501
        %v3418 = vunpack.c.h.b16 %v2501
        %v3419 = vunpack.c.l.b16 %v2502
        %v3420 = vunpack.c.h.b16 %v2502
        %v3421 = vunpack.c.l.b16 %v2503
        %v3422 = vunpack.c.h.b16 %v2503
        %v3423 = vunpack.c.l.b16 %v2504
        %v3424 = vunpack.c.h.b16 %v2504
        %v3425 = vunpack.c.l.b16 %v2505
        %v3426 = vunpack.c.h.b16 %v2505
        %v3427 = vunpack.c.l.b16 %v2506
        %v3428 = vunpack.c.h.b16 %v2506
        %v3429 = vunpack.c.l.b16 %v2507
        %v3430 = vunpack.c.h.b16 %v2507
        %v3431 = vunpack.c.l.b16 %v2508
        %v3432 = vunpack.c.h.b16 %v2508
        %v3433 = vunpack.c.l.b16 %v2509
        %v3434 = vunpack.c.h.b16 %v2509
        %v3435 = vunpack.c.l.b16 %v2510
        %v3436 = vunpack.c.h.b16 %v2510
        %v3437 = vunpack.c.l.b16 %v2511
        %v3438 = vunpack.c.h.b16 %v2511
        %v3439 = vunpack.c.l.b16 %v2512
        %v3440 = vunpack.c.h.b16 %v2512
        %v3441 = vunpack.c.l.b16 %v2513
        %v3442 = vunpack.c.h.b16 %v2513
        %v3443 = vunpack.c.l.b16 %v2514
        %v3444 = vunpack.c.h.b16 %v2514
        %v3445 = vunpack.c.l.b16 %v2515
        %v3446 = vunpack.c.h.b16 %v2515
        %v3447 = vunpack.c.l.b16 %v2516
        %v3448 = vunpack.c.h.b16 %v2516
        %v3449 = vunpack.c.l.b16 %v2517
        %v3450 = vunpack.c.h.b16 %v2517
        %v3451 = vunpack.c.l.b16 %v2518
        %v3452 = vunpack.c.h.b16 %v2518
        %v3453 = vunpack.c.l.b16 %v2519
        %v3454 = vunpack.c.h.b16 %v2519
        %v3455 = vunpack.c.l.b16 %v2520
        %v3456 = vunpack.c.h.b16 %v2520
        %v3457 = vunpack.c.l.b16 %v2521
        %v3458 = vunpack.c.h.b16 %v2521
        %v3459 = vunpack.c.l.b16 %v2522
        %v3460 = vunpack.c.h.b16 %v2522
        %v3461 = vunpack.c.l.b16 %v2523
        %v3462 = vunpack.c.h.b16 %v2523
        %v3463 = vunpack.c.l.b16 %v2524
        %v3464 = vunpack.c.h.b16 %v2524
        %v3465 = vunpack.c.l.b16 %v2525
        %v3466 = vunpack.c.h.b16 %v2525
        %v3467 = vunpack.c.l.b16 %v2526
        %v3468 = vunpack.c.h.b16 %v2526
        %v3469 = vunpack.c.l.b16 %v2527
        %v3470 = vunpack.c.h.b16 %v2527
        %v3471 = vunpack.c.l.b16 %v2528
        %v3472 = vunpack.c.h.b16 %v2528
        %v3473 = vunpack.c.l.b16 %v2529
        %v3474 = vunpack.c.h.b16 %v2529
        %v3475 = vunpack.c.l.b16 %v2530
        %v3476 = vunpack.c.h.b16 %v2530
        %v3477 = vunpack.c.l.b16 %v2531
        %v3478 = vunpack.c.h.b16 %v2531
        %v3479 = vunpack.c.l.b16 %v2532
        %v3480 = vunpack.c.h.b16 %v2532
        %v3481 = vunpack.c.l.b16 %v2533
        %v3482 = vunpack.c.h.b16 %v2533
        %v3483 = vunpack.c.l.b16 %v2534
        %v3484 = vunpack.c.h.b16 %v2534
        %v3485 = vunpack.c.l.b16 %v2535
        %v3486 = vunpack.c.h.b16 %v2535
        %v3487 = vunpack.c.l.b16 %v2536
        %v3488 = vunpack.c.h.b16 %v2536
        %v3489 = vunpack.c.l.b16 %v2537
        %v3490 = vunpack.c.h.b16 %v2537
        %v3491 = vunpack.c.l.b16 %v2538
        %v3492 = vunpack.c.h.b16 %v2538
        %v3493 = vunpack.c.l.b16 %v2539
        %v3494 = vunpack.c.h.b16 %v2539
        %v3495 = vunpack.c.l.b16 %v2540
        %v3496 = vunpack.c.h.b16 %v2540
        %v3497 = vunpack.c.l.b16 %v2541
        %v3498 = vunpack.c.h.b16 %v2541
        %v3499 = vunpack.c.l.b16 %v2542
        %v3500 = vunpack.c.h.b16 %v2542
        %v3501 = vunpack.c.l.b16 %v2543
        %v3502 = vunpack.c.h.b16 %v2543
        %v3503 = vunpack.c.l.b16 %v2544
        %v3504 = vunpack.c.h.b16 %v2544
        %v3505 = vunpack.c.l.b16 %v2545
        %v3506 = vunpack.c.h.b16 %v2545
        %v3507 = vunpack.c.l.b16 %v2546
        %v3508 = vunpack.c.h.b16 %v2546
        %v3509 = vunpack.c.l.b16 %v2547
        %v3510 = vunpack.c.h.b16 %v2547
        %v3511 = vunpack.c.l.b16 %v2548
        %v3512 = vunpack.c.h.b16 %v2548
        %v3513 = vunpack.c.l.b16 %v2549
        %v3514 = vunpack.c.h.b16 %v2549
        %v3515 = vunpack.c.l.b16 %v2550
        %v3516 = vunpack.c.h.b16 %v2550
        %v3517 = vunpack.c.l.b16 %v2551
        %v3518 = vunpack.c.h.b16 %v2551
        %v3519 = vunpack.c.l.b16 %v2552
        %v3520 = vunpack.c.h.b16 %v2552
        %v3521 = vunpack.c.l.b16 %v2553
        %v3522 = vunpack.c.h.b16 %v2553
        %v3523 = vunpack.c.l.b16 %v2554
        %v3524 = vunpack.c.h.b16 %v2554
        %v3525 = vunpack.c.l.b16 %v2555
        %v3526 = vunpack.c.h.b16 %v2555
        %v3527 = vunpack.c.l.b16 %v2556
        %v3528 = vunpack.c.h.b16 %v2556
        %v3529 = vunpack.c.l.b16 %v2557
        %v3530 = vunpack.c.h.b16 %v2557
        %v3531 = vunpack.c.l.b16 %v2558
        %v3532 = vunpack.c.h.b16 %v2558
        %v3533 = vunpack.c.l.b16 %v2559
        %v3534 = vunpack.c.h.b16 %v2559
        %v3535 = vunpack.c.l.b16 %v2560
        %v3536 = vunpack.c.h.b16 %v2560
        %v3537 = vunpack.c.l.b16 %v2561
        %v3538 = vunpack.c.h.b16 %v2561
        %v3539 = vunpack.c.l.b16 %v2562
        %v3540 = vunpack.c.h.b16 %v2562
        %v3541 = vunpack.c.l.b16 %v2563
        %v3542 = vunpack.c.h.b16 %v2563
        %v3543 = vunpack.c.l.b16 %v2564
        %v3544 = vunpack.c.h.b16 %v2564
        %v3545 = vunpack.c.l.b16 %v2565
        %v3546 = vunpack.c.h.b16 %v2565
        %v3547 = vunpack.c.l.b16 %v2566
        %v3548 = vunpack.c.h.b16 %v2566
        %v3549 = vunpack.c.l.b16 %v2567
        %v3550 = vunpack.c.h.b16 %v2567
        %v3551 = vunpack.c.l.b16 %v2568
        %v3552 = vunpack.c.h.b16 %v2568
        %v3553 = vunpack.c.l.b16 %v2569
        %v3554 = vunpack.c.h.b16 %v2569
        %v3555 = vunpack.c.l.b16 %v2570
        %v3556 = vunpack.c.h.b16 %v2570
        %v3557 = vunpack.c.l.b16 %v2571
        %v3558 = vunpack.c.h.b16 %v2571
        %v3559 = vunpack.c.l.b16 %v2572
        %v3560 = vunpack.c.h.b16 %v2572
        %v3561 = vunpack.c.l.b16 %v2573
        %v3562 = vunpack.c.h.b16 %v2573
        %v3563 = vunpack.c.l.b16 %v2574
        %v3564 = vunpack.c.h.b16 %v2574
        %v3565 = vunpack.c.l.b16 %v2575
        %v3566 = vunpack.c.h.b16 %v2575
        %v3567 = vunpack.c.l.b16 %v2576
        %v3568 = vunpack.c.h.b16 %v2576
        %v3569 = vunpack.c.l.b16 %v2577
        %v3570 = vunpack.c.h.b16 %v2577
        %v3571 = vunpack.c.l.b16 %v2578
        %v3572 = vunpack.c.h.b16 %v2578
        %v3573 = vunpack.c.l.b16 %v2579
        %v3574 = vunpack.c.h.b16 %v2579
        %v3575 = vunpack.c.l.b16 %v2580
        %v3576 = vunpack.c.h.b16 %v2580
        %v3577 = vunpack.c.l.b16 %v2581
        %v3578 = vunpack.c.h.b16 %v2581
        %v3579 = vunpack.c.l.b16 %v2582
        %v3580 = vunpack.c.h.b16 %v2582
        %v3581 = vunpack.c.l.b16 %v2583
        %v3582 = vunpack.c.h.b16 %v2583
        %v3583 = vunpack.c.l.b16 %v2584
        %v3584 = vunpack.c.h.b16 %v2584
        %v3585 = vunpack.c.l.b16 %v2585
        %v3586 = vunpack.c.h.b16 %v2585
        %v3587 = vunpack.c.l.b16 %v2586
        %v3588 = vunpack.c.h.b16 %v2586
        %v3589 = vunpack.c.l.b16 %v2587
        %v3590 = vunpack.c.h.b16 %v2587
        %v3591 = vunpack.c.l.b16 %v2588
        %v3592 = vunpack.c.h.b16 %v2588
        %v3593 = vunpack.c.l.b16 %v2589
        %v3594 = vunpack.c.h.b16 %v2589
        %v3595 = vunpack.c.l.b16 %v2590
        %v3596 = vunpack.c.h.b16 %v2590
        %v3597 = vunpack.c.l.b16 %v2591
        %v3598 = vunpack.c.h.b16 %v2591
        %v3599 = vunpack.c.l.b16 %v2592
        %v3600 = vunpack.c.h.b16 %v2592
        %v3601 = vunpack.c.l.b16 %v2593
        %v3602 = vunpack.c.h.b16 %v2593
        %v3603 = vunpack.c.l.b16 %v2594
        %v3604 = vunpack.c.h.b16 %v2594
        %v3605 = vunpack.c.l.b16 %v2595
        %v3606 = vunpack.c.h.b16 %v2595
        %v3607 = vunpack.c.l.b16 %v2596
        %v3608 = vunpack.c.h.b16 %v2596
        %v3609 = vunpack.c.l.b16 %v2597
        %v3610 = vunpack.c.h.b16 %v2597
        %v3611 = vunpack.c.l.b16 %v2598
        %v3612 = vunpack.c.h.b16 %v2598
        %v3613 = vunpack.c.l.b16 %v2599
        %v3614 = vunpack.c.h.b16 %v2599
        %v3615 = vunpack.c.l.b16 %v2600
        %v3616 = vunpack.c.h.b16 %v2600
        %v3617 = vunpack.c.l.b16 %v2601
        %v3618 = vunpack.c.h.b16 %v2601
        %v3619 = vunpack.c.l.b16 %v2602
        %v3620 = vunpack.c.h.b16 %v2602
        %v3621 = vunpack.c.l.b16 %v2603
        %v3622 = vunpack.c.h.b16 %v2603
        %v3623 = vunpack.c.l.b16 %v2604
        %v3624 = vunpack.c.h.b16 %v2604
        %v3625 = vunpack.c.l.b16 %v2605
        %v3626 = vunpack.c.h.b16 %v2605
        %v3627 = vunpack.c.l.b16 %v2606
        %v3628 = vunpack.c.h.b16 %v2606
        %v3629 = vunpack.c.l.b16 %v2607
        %v3630 = vunpack.c.h.b16 %v2607
        %v3631 = vunpack.c.l.b16 %v2608
        %v3632 = vunpack.c.h.b16 %v2608
        %v3633 = vunpack.c.l.b16 %v2609
        %v3634 = vunpack.c.h.b16 %v2609
        %v3635 = vunpack.c.l.b16 %v2610
        %v3636 = vunpack.c.h.b16 %v2610
        %v3637 = vunpack.c.l.b16 %v2611
        %v3638 = vunpack.c.h.b16 %v2611
        %v3639 = vunpack.c.l.b16 %v2612
        %v3640 = vunpack.c.h.b16 %v2612
        %v3641 = vunpack.c.l.b16 %v2613
        %v3642 = vunpack.c.h.b16 %v2613
        %v3643 = vunpack.c.l.b16 %v2614
        %v3644 = vunpack.c.h.b16 %v2614
        %v3645 = vunpack.c.l.b16 %v2615
        %v3646 = vunpack.c.h.b16 %v2615
        %v3647 = vunpack.c.l.b16 %v2616
        %v3648 = vunpack.c.h.b16 %v2616
        %v3649 = vunpack.c.l.b16 %v2617
        %v3650 = vunpack.c.h.b16 %v2617
        %v3651 = vunpack.c.l.b16 %v2618
        %v3652 = vunpack.c.h.b16 %v2618
        %v3653 = vunpack.c.l.b16 %v2619
        %v3654 = vunpack.c.h.b16 %v2619
        %v3655 = vunpack.c.l.b16 %v2620
        %v3656 = vunpack.c.h.b16 %v2620
        %v3657 = vunpack.c.l.b16 %v2621
        %v3658 = vunpack.c.h.b16 %v2621
        %v3659 = vunpack.c.l.b16 %v2622
        %v3660 = vunpack.c.h.b16 %v2622
        %v3661 = vunpack.c.l.b16 %v2623
        %v3662 = vunpack.c.h.b16 %v2623
        %v3663 = vunpack.c.l.b16 %v2624
        %v3664 = vunpack.c.h.b16 %v2624
        %v3665 = vunpack.c.l.b16 %v2625
        %v3666 = vunpack.c.h.b16 %v2625
        %v3667 = vunpack.c.l.b16 %v2626
        %v3668 = vunpack.c.h.b16 %v2626
        %v3669 = vunpack.c.l.b16 %v2627
        %v3670 = vunpack.c.h.b16 %v2627
        %v3671 = vunpack.c.l.b16 %v2628
        %v3672 = vunpack.c.h.b16 %v2628
        %v3673 = vunpack.c.l.b16 %v2629
        %v3674 = vunpack.c.h.b16 %v2629
        %v3675 = vunpack.c.l.b16 %v2630
        %v3676 = vunpack.c.h.b16 %v2630
        %v3677 = vunpack.c.l.b16 %v2631
        %v3678 = vunpack.c.h.b16 %v2631
        %v3679 = vunpack.c.l.b16 %v2632
        %v3680 = vunpack.c.h.b16 %v2632
        %v3681 = vunpack.c.l.b16 %v2633
        %v3682 = vunpack.c.h.b16 %v2633
        %v3683 = vunpack.c.l.b16 %v2634
        %v3684 = vunpack.c.h.b16 %v2634
        %v3685 = vunpack.c.l.b16 %v2635
        %v3686 = vunpack.c.h.b16 %v2635
        %v3687 = vunpack.c.l.b16 %v2636
        %v3688 = vunpack.c.h.b16 %v2636
        %v3689 = vunpack.c.l.b16 %v2637
        %v3690 = vunpack.c.h.b16 %v2637
        %v3691 = vunpack.c.l.b16 %v2638
        %v3692 = vunpack.c.h.b16 %v2638
        %v3693 = vunpack.c.l.b16 %v2639
        %v3694 = vunpack.c.h.b16 %v2639
        %v3695 = vunpack.c.l.b16 %v2640
        %v3696 = vunpack.c.h.b16 %v2640
        %v3697 = vunpack.c.l.b16 %v2641
        %v3698 = vunpack.c.h.b16 %v2641
        %v3699 = vunpack.c.l.b16 %v2642
        %v3700 = vunpack.c.h.b16 %v2642
        %v3701 = vunpack.c.l.b16 %v2643
        %v3702 = vunpack.c.h.b16 %v2643
        %v3703 = vunpack.c.l.b16 %v2644
        %v3704 = vunpack.c.h.b16 %v2644
        %v3705 = vunpack.c.l.b16 %v2645
        %v3706 = vunpack.c.h.b16 %v2645
        %v3707 = vunpack.c.l.b16 %v2646
        %v3708 = vunpack.c.h.b16 %v2646
        %v3709 = vunpack.c.l.b16 %v2647
        %v3710 = vunpack.c.h.b16 %v2647
        %v3711 = vunpack.c.l.b16 %v2648
        %v3712 = vunpack.c.h.b16 %v2648
        %v3713 = vunpack.c.l.b16 %v2649
        %v3714 = vunpack.c.h.b16 %v2649
        %v3715 = vunpack.c.l.b16 %v2650
        %v3716 = vunpack.c.h.b16 %v2650
        %v3717 = vunpack.c.l.b16 %v2651
        %v3718 = vunpack.c.h.b16 %v2651
        %v3719 = vunpack.c.l.b16 %v2652
        %v3720 = vunpack.c.h.b16 %v2652
        %v3721 = vunpack.c.l.b16 %v2653
        %v3722 = vunpack.c.h.b16 %v2653
        %v3723 = vunpack.c.l.b16 %v2654
        %v3724 = vunpack.c.h.b16 %v2654
        %v3725 = vunpack.c.l.b16 %v2655
        %v3726 = vunpack.c.h.b16 %v2655
        %v3727 = vunpack.c.l.b16 %v2656
        %v3728 = vunpack.c.h.b16 %v2656
        %v3729 = vunpack.c.l.b16 %v2657
        %v3730 = vunpack.c.h.b16 %v2657
        %v3731 = vunpack.c.l.b16 %v2658
        %v3732 = vunpack.c.h.b16 %v2658
        %v3733 = vunpack.c.l.b16 %v2659
        %v3734 = vunpack.c.h.b16 %v2659
        %v3735 = vunpack.c.l.b16 %v2660
        %v3736 = vunpack.c.h.b16 %v2660
        %v3737 = vunpack.c.l.b16 %v2661
        %v3738 = vunpack.c.h.b16 %v2661
        %v3739 = vunpack.c.l.b16 %v2662
        %v3740 = vunpack.c.h.b16 %v2662
        %v3741 = vunpack.c.l.b16 %v2663
        %v3742 = vunpack.c.h.b16 %v2663
        %v3743 = vunpack.c.l.b16 %v2664
        %v3744 = vunpack.c.h.b16 %v2664
        %v3745 = vunpack.c.l.b16 %v2665
        %v3746 = vunpack.c.h.b16 %v2665
        %v3747 = vunpack.c.l.b16 %v2666
        %v3748 = vunpack.c.h.b16 %v2666
        %v3749 = vunpack.c.l.b16 %v2667
        %v3750 = vunpack.c.h.b16 %v2667
        %v3751 = vunpack.c.l.b16 %v2668
        %v3752 = vunpack.c.h.b16 %v2668
        %v3753 = vunpack.c.l.b16 %v2669
        %v3754 = vunpack.c.h.b16 %v2669
        %v3755 = vunpack.c.l.b16 %v2670
        %v3756 = vunpack.c.h.b16 %v2670
        %v3757 = vunpack.c.l.b16 %v2671
        %v3758 = vunpack.c.h.b16 %v2671
        %v3759 = vunpack.c.l.b16 %v2672
        %v3760 = vunpack.c.h.b16 %v2672
        %v3761 = vunpack.c.l.b16 %v2673
        %v3762 = vunpack.c.h.b16 %v2673
        %v3763 = vunpack.c.l.b16 %v2674
        %v3764 = vunpack.c.h.b16 %v2674
        %v3765 = vunpack.c.l.b16 %v2675
        %v3766 = vunpack.c.h.b16 %v2675
        %v3767 = vunpack.c.l.b16 %v2676
        %v3768 = vunpack.c.h.b16 %v2676
        %v3769 = vunpack.c.l.b16 %v2677
        %v3770 = vunpack.c.h.b16 %v2677
        %v3771 = vunpack.c.l.b16 %v2678
        %v3772 = vunpack.c.h.b16 %v2678
        %v3773 = vunpack.c.l.b16 %v2679
        %v3774 = vunpack.c.h.b16 %v2679
        %v3775 = vunpack.c.l.b16 %v2680
        %v3776 = vunpack.c.h.b16 %v2680
        %v3777 = vunpack.c.l.b16 %v2681
        %v3778 = vunpack.c.h.b16 %v2681
        %v3779 = vunpack.c.l.b16 %v2682
        %v3780 = vunpack.c.h.b16 %v2682
        %v3781 = vunpack.c.l.b16 %v2683
        %v3782 = vunpack.c.h.b16 %v2683
        %v3783 = vunpack.c.l.b16 %v2684
        %v3784 = vunpack.c.h.b16 %v2684
        %v3785 = vunpack.c.l.b16 %v2685
        %v3786 = vunpack.c.h.b16 %v2685
        %v3787 = vunpack.c.l.b16 %v2686
        %v3788 = vunpack.c.h.b16 %v2686
        %v3789 = vunpack.c.l.b16 %v2687
        %v3790 = vunpack.c.h.b16 %v2687
        %v3791 = vunpack.c.l.b16 %v2688
        %v3792 = vunpack.c.h.b16 %v2688
        %v3793 = vunpack.c.l.b16 %v2689
        %v3794 = vunpack.c.h.b16 %v2689
        %v3795 = vunpack.c.l.b16 %v2690
        %v3796 = vunpack.c.h.b16 %v2690
        %v3797 = vunpack.c.l.b16 %v2691
        %v3798 = vunpack.c.h.b16 %v2691
        %v3799 = vunpack.c.l.b16 %v2692
        %v3800 = vunpack.c.h.b16 %v2692
        %v3801 = vunpack.c.l.b16 %v2693
        %v3802 = vunpack.c.h.b16 %v2693
        %v3803 = vunpack.c.l.b16 %v2694
        %v3804 = vunpack.c.h.b16 %v2694
        %v3805 = vunpack.c.l.b16 %v2695
        %v3806 = vunpack.c.h.b16 %v2695
        %v3807 = vunpack.c.l.b16 %v2696
        %v3808 = vunpack.c.h.b16 %v2696
        %v3809 = vunpack.c.l.b16 %v2697
        %v3810 = vunpack.c.h.b16 %v2697
        %v3811 = vunpack.c.l.b16 %v2698
        %v3812 = vunpack.c.h.b16 %v2698
        %v3813 = vunpack.c.l.b16 %v2699
        %v3814 = vunpack.c.h.b16 %v2699
        %v3815 = vunpack.c.l.b16 %v2700
        %v3816 = vunpack.c.h.b16 %v2700
        %v3817 = vunpack.c.l.b16 %v2701
        %v3818 = vunpack.c.h.b16 %v2701
        %v3819 = vunpack.c.l.b16 %v2702
        %v3820 = vunpack.c.h.b16 %v2702
        %v3821 = vunpack.c.l.b16 %v2703
        %v3822 = vunpack.c.h.b16 %v2703
        %v3823 = vunpack.c.l.b16 %v2704
        %v3824 = vunpack.c.h.b16 %v2704
        %v3825 = vunpack.c.l.b16 %v2705
        %v3826 = vunpack.c.h.b16 %v2705
        %v3827 = vunpack.c.l.b16 %v2706
        %v3828 = vunpack.c.h.b16 %v2706
        %v3829 = vunpack.c.l.b16 %v2707
        %v3830 = vunpack.c.h.b16 %v2707
        %v3831 = vunpack.c.l.b16 %v2708
        %v3832 = vunpack.c.h.b16 %v2708
        %v3833 = vunpack.c.l.b16 %v2709
        %v3834 = vunpack.c.h.b16 %v2709
        %v3835 = vunpack.c.l.b16 %v2710
        %v3836 = vunpack.c.h.b16 %v2710
        %v3837 = vunpack.c.l.b16 %v2711
        %v3838 = vunpack.c.h.b16 %v2711
        %v3839 = vunpack.c.l.b16 %v2712
        %v3840 = vunpack.c.h.b16 %v2712
        %v3841 = vunpack.c.l.b16 %v2713
        %v3842 = vunpack.c.h.b16 %v2713
        %v3843 = vunpack.c.l.b16 %v2714
        %v3844 = vunpack.c.h.b16 %v2714
        %v3845 = vunpack.c.l.b16 %v2715
        %v3846 = vunpack.c.h.b16 %v2715
        %v3847 = vunpack.c.l.b16 %v2716
        %v3848 = vunpack.c.h.b16 %v2716
        %v3849 = vunpack.c.l.b16 %v2717
        %v3850 = vunpack.c.h.b16 %v2717
        %v3851 = vunpack.c.l.b16 %v2718
        %v3852 = vunpack.c.h.b16 %v2718
        %v3853 = vunpack.c.l.b16 %v2719
        %v3854 = vunpack.c.h.b16 %v2719
        %v3855 = vunpack.c.l.b16 %v2720
        %v3856 = vunpack.c.h.b16 %v2720
        %v3857 = vunpack.c.l.b16 %v2721
        %v3858 = vunpack.c.h.b16 %v2721
        %v3859 = vunpack.c.l.b16 %v2722
        %v3860 = vunpack.c.h.b16 %v2722
        %v3861 = vunpack.c.l.b16 %v2723
        %v3862 = vunpack.c.h.b16 %v2723
        %v3863 = vunpack.c.l.b16 %v2724
        %v3864 = vunpack.c.h.b16 %v2724
        %v3865 = vunpack.c.l.b16 %v2725
        %v3866 = vunpack.c.h.b16 %v2725
        %v3867 = vunpack.c.l.b16 %v2726
        %v3868 = vunpack.c.h.b16 %v2726
        %v3869 = vunpack.c.l.b16 %v2727
        %v3870 = vunpack.c.h.b16 %v2727
        %v3871 = vunpack.c.l.b16 %v2728
        %v3872 = vunpack.c.h.b16 %v2728
        %v3873 = vunpack.c.l.b16 %v2729
        %v3874 = vunpack.c.h.b16 %v2729
        %v3875 = vunpack.c.l.b16 %v2730
        %v3876 = vunpack.c.h.b16 %v2730
        %v3877 = vunpack.c.l.b16 %v2731
        %v3878 = vunpack.c.h.b16 %v2731
        %v3879 = vunpack.c.l.b16 %v2732
        %v3880 = vunpack.c.h.b16 %v2732
        %v3881 = vunpack.c.l.b16 %v2733
        %v3882 = vunpack.c.h.b16 %v2733
        %v3883 = vunpack.c.l.b16 %v2734
        %v3884 = vunpack.c.h.b16 %v2734
        %v3885 = vunpack.c.l.b16 %v2735
        %v3886 = vunpack.c.h.b16 %v2735
        %v3887 = vunpack.c.l.b16 %v2736
        %v3888 = vunpack.c.h.b16 %v2736
        %v3889 = vpack.c.b16 %v3385, %v3377
        %v3890 = vpack.c.b16 %v3386, %v3378
        %v3891 = vpack.c.b16 %v3387, %v3379
        %v3892 = vpack.c.b16 %v3388, %v3380
        %v3893 = vpack.c.b16 %v3389, %v3381
        %v3894 = vpack.c.b16 %v3390, %v3382
        %v3895 = vpack.c.b16 %v3391, %v3383
        %v3896 = vpack.c.b16 %v3392, %v3384
        %v3897 = vpack.c.b16 %v3401, %v3393
        %v3898 = vpack.c.b16 %v3402, %v3394
        %v3899 = vpack.c.b16 %v3403, %v3395
        %v3900 = vpack.c.b16 %v3404, %v3396
        %v3901 = vpack.c.b16 %v3405, %v3397
        %v3902 = vpack.c.b16 %v3406, %v3398
        %v3903 = vpack.c.b16 %v3407, %v3399
        %v3904 = vpack.c.b16 %v3408, %v3400
        %v3905 = vpack.c.b16 %v3417, %v3409
        %v3906 = vpack.c.b16 %v3418, %v3410
        %v3907 = vpack.c.b16 %v3419, %v3411
        %v3908 = vpack.c.b16 %v3420, %v3412
        %v3909 = vpack.c.b16 %v3421, %v3413
        %v3910 = vpack.c.b16 %v3422, %v3414
        %v3911 = vpack.c.b16 %v3423, %v3415
        %v3912 = vpack.c.b16 %v3424, %v3416
        %v3913 = vpack.c.b16 %v3433, %v3425
        %v3914 = vpack.c.b16 %v3434, %v3426
        %v3915 = vpack.c.b16 %v3435, %v3427
        %v3916 = vpack.c.b16 %v3436, %v3428
        %v3917 = vpack.c.b16 %v3437, %v3429
        %v3918 = vpack.c.b16 %v3438, %v3430
        %v3919 = vpack.c.b16 %v3439, %v3431
        %v3920 = vpack.c.b16 %v3440, %v3432
        %v3921 = vpack.c.b16 %v3449, %v3441
        %v3922 = vpack.c.b16 %v3450, %v3442
        %v3923 = vpack.c.b16 %v3451, %v3443
        %v3924 = vpack.c.b16 %v3452, %v3444
        %v3925 = vpack.c.b16 %v3453, %v3445
        %v3926 = vpack.c.b16 %v3454, %v3446
        %v3927 = vpack.c.b16 %v3455, %v3447
        %v3928 = vpack.c.b16 %v3456, %v3448
        %v3929 = vpack.c.b16 %v3465, %v3457
        %v3930 = vpack.c.b16 %v3466, %v3458
        %v3931 = vpack.c.b16 %v3467, %v3459
        %v3932 = vpack.c.b16 %v3468, %v3460
        %v3933 = vpack.c.b16 %v3469, %v3461
        %v3934 = vpack.c.b16 %v3470, %v3462
        %v3935 = vpack.c.b16 %v3471, %v3463
        %v3936 = vpack.c.b16 %v3472, %v3464
        %v3937 = vpack.c.b16 %v3481, %v3473
        %v3938 = vpack.c.b16 %v3482, %v3474
        %v3939 = vpack.c.b16 %v3483, %v3475
        %v3940 = vpack.c.b16 %v3484, %v3476
        %v3941 = vpack.c.b16 %v3485, %v3477
        %v3942 = vpack.c.b16 %v3486, %v3478
        %v3943 = vpack.c.b16 %v3487, %v3479
        %v3944 = vpack.c.b16 %v3488, %v3480
        %v3945 = vpack.c.b16 %v3497, %v3489
        %v3946 = vpack.c.b16 %v3498, %v3490
        %v3947 = vpack.c.b16 %v3499, %v3491
        %v3948 = vpack.c.b16 %v3500, %v3492
        %v3949 = vpack.c.b16 %v3501, %v3493
        %v3950 = vpack.c.b16 %v3502, %v3494
        %v3951 = vpack.c.b16 %v3503, %v3495
        %v3952 = vpack.c.b16 %v3504, %v3496
        %v3953 = vpack.c.b16 %v3513, %v3505
        %v3954 = vpack.c.b16 %v3514, %v3506
        %v3955 = vpack.c.b16 %v3515, %v3507
        %v3956 = vpack.c.b16 %v3516, %v3508
        %v3957 = vpack.c.b16 %v3517, %v3509
        %v3958 = vpack.c.b16 %v3518, %v3510
        %v3959 = vpack.c.b16 %v3519, %v3511
        %v3960 = vpack.c.b16 %v3520, %v3512
        %v3961 = vpack.c.b16 %v3529, %v3521
        %v3962 = vpack.c.b16 %v3530, %v3522
        %v3963 = vpack.c.b16 %v3531, %v3523
        %v3964 = vpack.c.b16 %v3532, %v3524
        %v3965 = vpack.c.b16 %v3533, %v3525
        %v3966 = vpack.c.b16 %v3534, %v3526
        %v3967 = vpack.c.b16 %v3535, %v3527
        %v3968 = vpack.c.b16 %v3536, %v3528
        %v3969 = vpack.c.b16 %v3545, %v3537
        %v3970 = vpack.c.b16 %v3546, %v3538
        %v3971 = vpack.c.b16 %v3547, %v3539
        %v3972 = vpack.c.b16 %v3548, %v3540
        %v3973 = vpack.c.b16 %v3549, %v3541
        %v3974 = vpack.c.b16 %v3550, %v3542
        %v3975 = vpack.c.b16 %v3551, %v3543
        %v3976 = vpack.c.b16 %v3552, %v3544
        %v3977 = vpack.c.b16 %v3561, %v3553
        %v3978 = vpack.c.b16 %v3562, %v3554
        %v3979 = vpack.c.b16 %v3563, %v3555
        %v3980 = vpack.c.b16 %v3564, %v3556
        %v3981 = vpack.c.b16 %v3565, %v3557
        %v3982 = vpack.c.b16 %v3566, %v3558
        %v3983 = vpack.c.b16 %v3567, %v3559
        %v3984 = vpack.c.b16 %v3568, %v3560
        %v3985 = vpack.c.b16 %v3577, %v3569
        %v3986 = vpack.c.b16 %v3578, %v3570
        %v3987 = vpack.c.b16 %v3579, %v3571
        %v3988 = vpack.c.b16 %v3580, %v3572
        %v3989 = vpack.c.b16 %v3581, %v3573
        %v3990 = vpack.c.b16 %v3582, %v3574
        %v3991 = vpack.c.b16 %v3583, %v3575
        %v3992 = vpack.c.b16 %v3584, %v3576
        %v3993 = vpack.c.b16 %v3593, %v3585
        %v3994 = vpack.c.b16 %v3594, %v3586
        %v3995 = vpack.c.b16 %v3595, %v3587
        %v3996 = vpack.c.b16 %v3596, %v3588
        %v3997 = vpack.c.b16 %v3597, %v3589
        %v3998 = vpack.c.b16 %v3598, %v3590
        %v3999 = vpack.c.b16 %v3599, %v3591
        %v4000 = vpack.c.b16 %v3600, %v3592
        %v4001 = vpack.c.b16 %v3609, %v3601
        %v4002 = vpack.c.b16 %v3610, %v3602
        %v4003 = vpack.c.b16 %v3611, %v3603
        %v4004 = vpack.c.b16 %v3612, %v3604
        %v4005 = vpack.c.b16 %v3613, %v3605
        %v4006 = vpack.c.b16 %v3614, %v3606
        %v4007 = vpack.c.b16 %v3615, %v3607
        %v4008 = vpack.c.b16 %v3616, %v3608
        %v4009 = vpack.c.b16 %v3625, %v3617
        %v4010 = vpack.c.b16 %v3626, %v3618
        %v4011 = vpack.c.b16 %v3627, %v3619
        %v4012 = vpack.c.b16 %v3628, %v3620
        %v4013 = vpack.c.b16 %v3629, %v3621
        %v4014 = vpack.c.b16 %v3630, %v3622
        %v4015 = vpack.c.b16 %v3631, %v3623
        %v4016 = vpack.c.b16 %v3632, %v3624
        %v4017 = vpack.c.b16 %v3641, %v3633
        %v4018 = vpack.c.b16 %v3642, %v3634
        %v4019 = vpack.c.b16 %v3643, %v3635
        %v4020 = vpack.c.b16 %v3644, %v3636
        %v4021 = vpack.c.b16 %v3645, %v3637
        %v4022 = vpack.c.b16 %v3646, %v3638
        %v4023 = vpack.c.b16 %v3647, %v3639
        %v4024 = vpack.c.b16 %v3648, %v3640
        %v4025 = vpack.c.b16 %v3657, %v3649
        %v4026 = vpack.c.b16 %v3658, %v3650
        %v4027 = vpack.c.b16 %v3659, %v3651
        %v4028 = vpack.c.b16 %v3660, %v3652
        %v4029 = vpack.c.b16 %v3661, %v3653
        %v4030 = vpack.c.b16 %v3662, %v3654
        %v4031 = vpack.c.b16 %v3663, %v3655
        %v4032 = vpack.c.b16 %v3664, %v3656
        %v4033 = vpack.c.b16 %v3673, %v3665
        %v4034 = vpack.c.b16 %v3674, %v3666
        %v4035 = vpack.c.b16 %v3675, %v3667
        %v4036 = vpack.c.b16 %v3676, %v3668
        %v4037 = vpack.c.b16 %v3677, %v3669
        %v4038 = vpack.c.b16 %v3678, %v3670
        %v4039 = vpack.c.b16 %v3679, %v3671
        %v4040 = vpack.c.b16 %v3680, %v3672
        %v4041 = vpack.c.b16 %v3689, %v3681
        %v4042 = vpack.c.b16 %v3690, %v3682
        %v4043 = vpack.c.b16 %v3691, %v3683
        %v4044 = vpack.c.b16 %v3692, %v3684
        %v4045 = vpack.c.b16 %v3693, %v3685
        %v4046 = vpack.c.b16 %v3694, %v3686
        %v4047 = vpack.c.b16 %v3695, %v3687
        %v4048 = vpack.c.b16 %v3696, %v3688
        %v4049 = vpack.c.b16 %v3705, %v3697
        %v4050 = vpack.c.b16 %v3706, %v3698
        %v4051 = vpack.c.b16 %v3707, %v3699
        %v4052 = vpack.c.b16 %v3708, %v3700
        %v4053 = vpack.c.b16 %v3709, %v3701
        %v4054 = vpack.c.b16 %v3710, %v3702
        %v4055 = vpack.c.b16 %v3711, %v3703
        %v4056 = vpack.c.b16 %v3712, %v3704
        %v4057 = vpack.c.b16 %v3721, %v3713
        %v4058 = vpack.c.b16 %v3722, %v3714
        %v4059 = vpack.c.b16 %v3723, %v3715
        %v4060 = vpack.c.b16 %v3724, %v3716
        %v4061 = vpack.c.b16 %v3725, %v3717
        %v4062 = vpack.c.b16 %v3726, %v3718
        %v4063 = vpack.c.b16 %v3727, %v3719
        %v4064 = vpack.c.b16 %v3728, %v3720
        %v4065 = vpack.c.b16 %v3737, %v3729
        %v4066 = vpack.c.b16 %v3738, %v3730
        %v4067 = vpack.c.b16 %v3739, %v3731
        %v4068 = vpack.c.b16 %v3740, %v3732
        %v4069 = vpack.c.b16 %v3741, %v3733
        %v4070 = vpack.c.b16 %v3742, %v3734
        %v4071 = vpack.c.b16 %v3743, %v3735
        %v4072 = vpack.c.b16 %v3744, %v3736
        %v4073 = vpack.c.b16 %v3753, %v3745
        %v4074 = vpack.c.b16 %v3754, %v3746
        %v4075 = vpack.c.b16 %v3755, %v3747
        %v4076 = vpack.c.b16 %v3756, %v3748
        %v4077 = vpack.c.b16 %v3757, %v3749
        %v4078 = vpack.c.b16 %v3758, %v3750
        %v4079 = vpack.c.b16 %v3759, %v3751
        %v4080 = vpack.c.b16 %v3760, %v3752
        %v4081 = vpack.c.b16 %v3769, %v3761
        %v4082 = vpack.c.b16 %v3770, %v3762
        %v4083 = vpack.c.b16 %v3771, %v3763
        %v4084 = vpack.c.b16 %v3772, %v3764
        %v4085 = vpack.c.b16 %v3773, %v3765
        %v4086 = vpack.c.b16 %v3774, %v3766
        %v4087 = vpack.c.b16 %v3775, %v3767
        %v4088 = vpack.c.b16 %v3776, %v3768
        %v4089 = vpack.c.b16 %v3785, %v3777
        %v4090 = vpack.c.b16 %v3786, %v3778
        %v4091 = vpack.c.b16 %v3787, %v3779
        %v4092 = vpack.c.b16 %v3788, %v3780
        %v4093 = vpack.c.b16 %v3789, %v3781
        %v4094 = vpack.c.b16 %v3790, %v3782
        %v4095 = vpack.c.b16 %v3791, %v3783
        %v4096 = vpack.c.b16 %v3792, %v3784
        %v4097 = vpack.c.b16 %v3801, %v3793
        %v4098 = vpack.c.b16 %v3802, %v3794
        %v4099 = vpack.c.b16 %v3803, %v3795
        %v4100 = vpack.c.b16 %v3804, %v3796
        %v4101 = vpack.c.b16 %v3805, %v3797
        %v4102 = vpack.c.b16 %v3806, %v3798
        %v4103 = vpack.c.b16 %v3807, %v3799
        %v4104 = vpack.c.b16 %v3808, %v3800
        %v4105 = vpack.c.b16 %v3817, %v3809
        %v4106 = vpack.c.b16 %v3818, %v3810
        %v4107 = vpack.c.b16 %v3819, %v3811
        %v4108 = vpack.c.b16 %v3820, %v3812
        %v4109 = vpack.c.b16 %v3821, %v3813
        %v4110 = vpack.c.b16 %v3822, %v3814
        %v4111 = vpack.c.b16 %v3823, %v3815
        %v4112 = vpack.c.b16 %v3824, %v3816
        %v4113 = vpack.c.b16 %v3833, %v3825
        %v4114 = vpack.c.b16 %v3834, %v3826
        %v4115 = vpack.c.b16 %v3835, %v3827
        %v4116 = vpack.c.b16 %v3836, %v3828
        %v4117 = vpack.c.b16 %v3837, %v3829
        %v4118 = vpack.c.b16 %v3838, %v3830
        %v4119 = vpack.c.b16 %v3839, %v3831
        %v4120 = vpack.c.b16 %v3840, %v3832
        %v4121 = vpack.c.b16 %v3849, %v3841
        %v4122 = vpack.c.b16 %v3850, %v3842
        %v4123 = vpack.c.b16 %v3851, %v3843
        %v4124 = vpack.c.b16 %v3852, %v3844
        %v4125 = vpack.c.b16 %v3853, %v3845
        %v4126 = vpack.c.b16 %v3854, %v3846
        %v4127 = vpack.c.b16 %v3855, %v3847
        %v4128 = vpack.c.b16 %v3856, %v3848
        %v4129 = vpack.c.b16 %v3865, %v3857
        %v4130 = vpack.c.b16 %v3866, %v3858
        %v4131 = vpack.c.b16 %v3867, %v3859
        %v4132 = vpack.c.b16 %v3868, %v3860
        %v4133 = vpack.c.b16 %v3869, %v3861
        %v4134 = vpack.c.b16 %v3870, %v3862
        %v4135 = vpack.c.b16 %v3871, %v3863
        %v4136 = vpack.c.b16 %v3872, %v3864
        %v4137 = vpack.c.b16 %v3881, %v3873
        %v4138 = vpack.c.b16 %v3882, %v3874
        %v4139 = vpack.c.b16 %v3883, %v3875
        %v4140 = vpack.c.b16 %v3884, %v3876
        %v4141 = vpack.c.b16 %v3885, %v3877
        %v4142 = vpack.c.b16 %v3886, %v3878
        %v4143 = vpack.c.b16 %v3887, %v3879
        %v4144 = vpack.c.b16 %v3888, %v3880
        %4401 = vmatprep.subr.bf16.mxu0 0
        %4402 = vmatpush1.bf16.msra.mxu0 %v2737
        %4403 = vmatprep.subr.bf16.mxu0 0
        %4404 = vmatpush1.bf16.msra.mxu0 %v2738
        %4405 = vmatprep.subr.bf16.mxu0 0
        %4406 = vmatpush1.bf16.msra.mxu0 %v2739
        %4407 = vmatprep.subr.bf16.mxu0 0
        %4408 = vmatpush1.bf16.msra.mxu0 %v2740
        %4409 = vmatprep.subr.bf16.mxu0 0
        %4410 = vmatpush1.bf16.msra.mxu0 %v2741
        %4411 = vmatprep.subr.bf16.mxu0 0
        %4412 = vmatpush1.bf16.msra.mxu0 %v2742
        %4413 = vmatprep.subr.bf16.mxu0 0
        %4414 = vmatpush1.bf16.msra.mxu0 %v2743
        %4415 = vmatprep.subr.bf16.mxu0 0
        %4416 = vmatpush1.bf16.msra.mxu0 %v2744
        %4417 = vmatprep.subr.bf16.mxu0 0
        %4418 = vmatpush1.bf16.msra.mxu0 %v2745
        %4419 = vmatprep.subr.bf16.mxu0 0
        %4420 = vmatpush1.bf16.msra.mxu0 %v2746
        %4421 = vmatprep.subr.bf16.mxu0 0
        %4422 = vmatpush1.bf16.msra.mxu0 %v2747
        %4423 = vmatprep.subr.bf16.mxu0 0
        %4424 = vmatpush1.bf16.msra.mxu0 %v2748
        %4425 = vmatprep.subr.bf16.mxu0 0
        %4426 = vmatpush1.bf16.msra.mxu0 %v2749
        %4427 = vmatprep.subr.bf16.mxu0 0
        %4428 = vmatpush1.bf16.msra.mxu0 %v2750
        %4429 = vmatprep.subr.bf16.mxu0 0
        %4430 = vmatpush1.bf16.msra.mxu0 %v2751
        %4431 = vmatprep.subr.bf16.mxu0 0
        %4432 = vmatpush1.bf16.msra.mxu0 %v2752
        %4433 = vmatprep.mubr.bf16.mxu0 %v3890
        %4434 = vmatmul.mubr.bf16.gmra.mrb[0].mxu0 %v3889
        %v4435 = vpop.f32.mrb[0].mxu0
        %v4436 = vadd.f32 %v2804, %v4435
        %v4437 = vpop.f32.mrb[0].mxu0
        %v4438 = vpop.f32.mrb[0].mxu0
        %v4439 = vadd.f32 %v2809, %v4438
        %v4440 = vpop.f32.mrb[0].mxu0
        %4441 = vmatprep.mubr.bf16.mxu0 %v3898
        %4442 = vmatmul.mubr.bf16.gmra.mrb[0].mxu0 %v3897
        %v4443 = vpop.f32.mrb[0].mxu0
        %v4444 = vadd.f32 %v2814, %v4443
        %v4445 = vpop.f32.mrb[0].mxu0
        %v4446 = vpop.f32.mrb[0].mxu0
        %v4447 = vadd.f32 %v2819, %v4446
        %v4448 = vpop.f32.mrb[0].mxu0
        %4449 = vmatprep.mubr.bf16.mxu0 %v3906
        %4450 = vmatmul.mubr.bf16.gmra.mrb[0].mxu0 %v3905
        %v4451 = vpop.f32.mrb[0].mxu0
        %v4452 = vadd.f32 %v2824, %v4451
        %v4453 = vpop.f32.mrb[0].mxu0
        %v4454 = vpop.f32.mrb[0].mxu0
        %v4455 = vadd.f32 %v2829, %v4454
        %v4456 = vpop.f32.mrb[0].mxu0
        %4457 = vmatprep.mubr.bf16.mxu0 %v3914
        %4458 = vmatmul.mubr.bf16.gmra.mrb[0].mxu0 %v3913
        %v4459 = vpop.f32.mrb[0].mxu0
        %v4460 = vadd.f32 %v2834, %v4459
        %v4461 = vpop.f32.mrb[0].mxu0
        %v4462 = vpop.f32.mrb[0].mxu0
        %v4463 = vadd.f32 %v2839, %v4462
        %v4464 = vpop.f32.mrb[0].mxu0
        %4465 = vmatprep.mubr.bf16.mxu0 %v3922
        %4466 = vmatmul.mubr.bf16.gmra.mrb[0].mxu0 %v3921
        %v4467 = vpop.f32.mrb[0].mxu0
        %v4468 = vadd.f32 %v2844, %v4467
        %v4469 = vpop.f32.mrb[0].mxu0
        %v4470 = vpop.f32.mrb[0].mxu0
        %v4471 = vadd.f32 %v2849, %v4470
        %v4472 = vpop.f32.mrb[0].mxu0
        %4473 = vmatprep.mubr.bf16.mxu0 %v3930
        %4474 = vmatmul.mubr.bf16.gmra.mrb[0].mxu0 %v3929
        %v4475 = vpop.f32.mrb[0].mxu0
        %v4476 = vadd.f32 %v2854, %v4475
        %v4477 = vpop.f32.mrb[0].mxu0
        %v4478 = vpop.f32.mrb[0].mxu0
        %v4479 = vadd.f32 %v2859, %v4478
        %v4480 = vpop.f32.mrb[0].mxu0
        %4481 = vmatprep.mubr.bf16.mxu0 %v3938
        %4482 = vmatmul.mubr.bf16.gmra.mrb[0].mxu0 %v3937
        %v4483 = vpop.f32.mrb[0].mxu0
        %v4484 = vadd.f32 %v2864, %v4483
        %v4485 = vpop.f32.mrb[0].mxu0
        %v4486 = vpop.f32.mrb[0].mxu0
        %v4487 = vadd.f32 %v2869, %v4486
        %v4488 = vpop.f32.mrb[0].mxu0
        %4489 = vmatprep.mubr.bf16.mxu0 %v3946
        %4490 = vmatmul.mubr.bf16.gmra.mrb[0].mxu0 %v3945
        %v4491 = vpop.f32.mrb[0].mxu0
        %v4492 = vadd.f32 %v2874, %v4491
        %v4493 = vpop.f32.mrb[0].mxu0
        %v4494 = vpop.f32.mrb[0].mxu0
        %v4495 = vadd.f32 %v2879, %v4494
        %v4496 = vpop.f32.mrb[0].mxu0
        %4497 = vmatprep.mubr.bf16.mxu0 %v3954
        %4498 = vmatmul.mubr.bf16.gmra.mrb[0].mxu0 %v3953
        %v4499 = vpop.f32.mrb[0].mxu0
        %v4500 = vadd.f32 %v2884, %v4499
        %v4501 = vpop.f32.mrb[0].mxu0
        %v4502 = vpop.f32.mrb[0].mxu0
        %v4503 = vadd.f32 %v2889, %v4502
        %v4504 = vpop.f32.mrb[0].mxu0
        %4505 = vmatprep.mubr.bf16.mxu0 %v3962
        %4506 = vmatmul.mubr.bf16.gmra.mrb[0].mxu0 %v3961
        %v4507 = vpop.f32.mrb[0].mxu0
        %v4508 = vadd.f32 %v2894, %v4507
        %v4509 = vpop.f32.mrb[0].mxu0
        %v4510 = vpop.f32.mrb[0].mxu0
        %v4511 = vadd.f32 %v2899, %v4510
        %v4512 = vpop.f32.mrb[0].mxu0
        %4513 = vmatprep.mubr.bf16.mxu0 %v3970
        %4514 = vmatmul.mubr.bf16.gmra.mrb[0].mxu0 %v3969
        %v4515 = vpop.f32.mrb[0].mxu0
        %v4516 = vadd.f32 %v2904, %v4515
        %v4517 = vpop.f32.mrb[0].mxu0
        %v4518 = vpop.f32.mrb[0].mxu0
        %v4519 = vadd.f32 %v2909, %v4518
        %v4520 = vpop.f32.mrb[0].mxu0
        %4521 = vmatprep.mubr.bf16.mxu0 %v3978
        %4522 = vmatmul.mubr.bf16.gmra.mrb[0].mxu0 %v3977
        %v4523 = vpop.f32.mrb[0].mxu0
        %v4524 = vadd.f32 %v2914, %v4523
        %v4525 = vpop.f32.mrb[0].mxu0
        %v4526 = vpop.f32.mrb[0].mxu0
        %v4527 = vadd.f32 %v2919, %v4526
        %v4528 = vpop.f32.mrb[0].mxu0
        %4529 = vmatprep.mubr.bf16.mxu0 %v3986
        %4530 = vmatmul.mubr.bf16.gmra.mrb[0].mxu0 %v3985
        %v4531 = vpop.f32.mrb[0].mxu0
        %v4532 = vadd.f32 %v2924, %v4531
        %v4533 = vpop.f32.mrb[0].mxu0
        %v4534 = vpop.f32.mrb[0].mxu0
        %v4535 = vadd.f32 %v2929, %v4534
        %v4536 = vpop.f32.mrb[0].mxu0
        %4537 = vmatprep.mubr.bf16.mxu0 %v3994
        %4538 = vmatmul.mubr.bf16.gmra.mrb[0].mxu0 %v3993
        %v4539 = vpop.f32.mrb[0].mxu0
        %v4540 = vadd.f32 %v2934, %v4539
        %v4541 = vpop.f32.mrb[0].mxu0
        %v4542 = vpop.f32.mrb[0].mxu0
        %v4543 = vadd.f32 %v2939, %v4542
        %v4544 = vpop.f32.mrb[0].mxu0
        %4545 = vmatprep.mubr.bf16.mxu0 %v4002
        %4546 = vmatmul.mubr.bf16.gmra.mrb[0].mxu0 %v4001
        %v4547 = vpop.f32.mrb[0].mxu0
        %v4548 = vadd.f32 %v2944, %v4547
        %v4549 = vpop.f32.mrb[0].mxu0
        %v4550 = vpop.f32.mrb[0].mxu0
        %v4551 = vadd.f32 %v2949, %v4550
        %v4552 = vpop.f32.mrb[0].mxu0
        %4553 = vmatprep.mubr.bf16.mxu0 %v4010
        %4554 = vmatmul.mubr.bf16.gmra.mrb[0].mxu0 %v4009
        %v4555 = vpop.f32.mrb[0].mxu0
        %v4556 = vadd.f32 %v2954, %v4555
        %v4557 = vpop.f32.mrb[0].mxu0
        %v4558 = vpop.f32.mrb[0].mxu0
        %v4559 = vadd.f32 %v2959, %v4558
        %v4560 = vpop.f32.mrb[0].mxu0
        %4561 = vmatprep.mubr.bf16.mxu0 %v4018
        %4562 = vmatmul.mubr.bf16.gmra.mrb[0].mxu0 %v4017
        %v4563 = vpop.f32.mrb[0].mxu0
        %v4564 = vadd.f32 %v2964, %v4563
        %v4565 = vpop.f32.mrb[0].mxu0
        %v4566 = vpop.f32.mrb[0].mxu0
        %v4567 = vadd.f32 %v2969, %v4566
        %v4568 = vpop.f32.mrb[0].mxu0
        %4569 = vmatprep.mubr.bf16.mxu0 %v4026
        %4570 = vmatmul.mubr.bf16.gmra.mrb[0].mxu0 %v4025
        %v4571 = vpop.f32.mrb[0].mxu0
        %v4572 = vadd.f32 %v2974, %v4571
        %v4573 = vpop.f32.mrb[0].mxu0
        %v4574 = vpop.f32.mrb[0].mxu0
        %v4575 = vadd.f32 %v2979, %v4574
        %v4576 = vpop.f32.mrb[0].mxu0
        %4577 = vmatprep.mubr.bf16.mxu0 %v4034
        %4578 = vmatmul.mubr.bf16.gmra.mrb[0].mxu0 %v4033
        %v4579 = vpop.f32.mrb[0].mxu0
        %v4580 = vadd.f32 %v2984, %v4579
        %v4581 = vpop.f32.mrb[0].mxu0
        %v4582 = vpop.f32.mrb[0].mxu0
        %v4583 = vadd.f32 %v2989, %v4582
        %v4584 = vpop.f32.mrb[0].mxu0
        %4585 = vmatprep.mubr.bf16.mxu0 %v4042
        %4586 = vmatmul.mubr.bf16.gmra.mrb[0].mxu0 %v4041
        %v4587 = vpop.f32.mrb[0].mxu0
        %v4588 = vadd.f32 %v2994, %v4587
        %v4589 = vpop.f32.mrb[0].mxu0
        %v4590 = vpop.f32.mrb[0].mxu0
        %v4591 = vadd.f32 %v2999, %v4590
        %v4592 = vpop.f32.mrb[0].mxu0
        %4593 = vmatprep.mubr.bf16.mxu0 %v4050
        %4594 = vmatmul.mubr.bf16.gmra.mrb[0].mxu0 %v4049
        %v4595 = vpop.f32.mrb[0].mxu0
        %v4596 = vadd.f32 %v3004, %v4595
        %v4597 = vpop.f32.mrb[0].mxu0
        %v4598 = vpop.f32.mrb[0].mxu0
        %v4599 = vadd.f32 %v3009, %v4598
        %v4600 = vpop.f32.mrb[0].mxu0
        %4601 = vmatprep.mubr.bf16.mxu0 %v4058
        %4602 = vmatmul.mubr.bf16.gmra.mrb[0].mxu0 %v4057
        %v4603 = vpop.f32.mrb[0].mxu0
        %v4604 = vadd.f32 %v3014, %v4603
        %v4605 = vpop.f32.mrb[0].mxu0
        %v4606 = vpop.f32.mrb[0].mxu0
        %v4607 = vadd.f32 %v3019, %v4606
        %v4608 = vpop.f32.mrb[0].mxu0
        %4609 = vmatprep.mubr.bf16.mxu0 %v4066
        %4610 = vmatmul.mubr.bf16.gmra.mrb[0].mxu0 %v4065
        %v4611 = vpop.f32.mrb[0].mxu0
        %v4612 = vadd.f32 %v3024, %v4611
        %v4613 = vpop.f32.mrb[0].mxu0
        %v4614 = vpop.f32.mrb[0].mxu0
        %v4615 = vadd.f32 %v3029, %v4614
        %v4616 = vpop.f32.mrb[0].mxu0
        %4617 = vmatprep.mubr.bf16.mxu0 %v4074
        %4618 = vmatmul.mubr.bf16.gmra.mrb[0].mxu0 %v4073
        %v4619 = vpop.f32.mrb[0].mxu0
        %v4620 = vadd.f32 %v3034, %v4619
        %v4621 = vpop.f32.mrb[0].mxu0
        %v4622 = vpop.f32.mrb[0].mxu0
        %v4623 = vadd.f32 %v3039, %v4622
        %v4624 = vpop.f32.mrb[0].mxu0
        %4625 = vmatprep.mubr.bf16.mxu0 %v4082
        %4626 = vmatmul.mubr.bf16.gmra.mrb[0].mxu0 %v4081
        %v4627 = vpop.f32.mrb[0].mxu0
        %v4628 = vadd.f32 %v3044, %v4627
        %v4629 = vpop.f32.mrb[0].mxu0
        %v4630 = vpop.f32.mrb[0].mxu0
        %v4631 = vadd.f32 %v3049, %v4630
        %v4632 = vpop.f32.mrb[0].mxu0
        %4633 = vmatprep.mubr.bf16.mxu0 %v4090
        %4634 = vmatmul.mubr.bf16.gmra.mrb[0].mxu0 %v4089
        %v4635 = vpop.f32.mrb[0].mxu0
        %v4636 = vadd.f32 %v3054, %v4635
        %v4637 = vpop.f32.mrb[0].mxu0
        %v4638 = vpop.f32.mrb[0].mxu0
        %v4639 = vadd.f32 %v3059, %v4638
        %v4640 = vpop.f32.mrb[0].mxu0
        %4641 = vmatprep.mubr.bf16.mxu0 %v4098
        %4642 = vmatmul.mubr.bf16.gmra.mrb[0].mxu0 %v4097
        %v4643 = vpop.f32.mrb[0].mxu0
        %v4644 = vadd.f32 %v3064, %v4643
        %v4645 = vpop.f32.mrb[0].mxu0
        %v4646 = vpop.f32.mrb[0].mxu0
        %v4647 = vadd.f32 %v3069, %v4646
        %v4648 = vpop.f32.mrb[0].mxu0
        %4649 = vmatprep.mubr.bf16.mxu0 %v4106
        %4650 = vmatmul.mubr.bf16.gmra.mrb[0].mxu0 %v4105
        %v4651 = vpop.f32.mrb[0].mxu0
        %v4652 = vadd.f32 %v3074, %v4651
        %v4653 = vpop.f32.mrb[0].mxu0
        %v4654 = vpop.f32.mrb[0].mxu0
        %v4655 = vadd.f32 %v3079, %v4654
        %v4656 = vpop.f32.mrb[0].mxu0
        %4657 = vmatprep.mubr.bf16.mxu0 %v4114
        %4658 = vmatmul.mubr.bf16.gmra.mrb[0].mxu0 %v4113
        %v4659 = vpop.f32.mrb[0].mxu0
        %v4660 = vadd.f32 %v3084, %v4659
        %v4661 = vpop.f32.mrb[0].mxu0
        %v4662 = vpop.f32.mrb[0].mxu0
        %v4663 = vadd.f32 %v3089, %v4662
        %v4664 = vpop.f32.mrb[0].mxu0
        %4665 = vmatprep.mubr.bf16.mxu0 %v4122
        %4666 = vmatmul.mubr.bf16.gmra.mrb[0].mxu0 %v4121
        %v4667 = vpop.f32.mrb[0].mxu0
        %v4668 = vadd.f32 %v3094, %v4667
        %v4669 = vpop.f32.mrb[0].mxu0
        %v4670 = vpop.f32.mrb[0].mxu0
        %v4671 = vadd.f32 %v3099, %v4670
        %v4672 = vpop.f32.mrb[0].mxu0
        %4673 = vmatprep.mubr.bf16.mxu0 %v4130
        %4674 = vmatmul.mubr.bf16.gmra.mrb[0].mxu0 %v4129
        %v4675 = vpop.f32.mrb[0].mxu0
        %v4676 = vadd.f32 %v3104, %v4675
        %v4677 = vpop.f32.mrb[0].mxu0
        %v4678 = vpop.f32.mrb[0].mxu0
        %v4679 = vadd.f32 %v3109, %v4678
        %v4680 = vpop.f32.mrb[0].mxu0
        %4681 = vmatprep.mubr.bf16.mxu0 %v4138
        %4682 = vmatmul.mubr.bf16.gmra.mrb[0].mxu0 %v4137
        %v4683 = vpop.f32.mrb[0].mxu0
        %v4684 = vadd.f32 %v3114, %v4683
        %v4685 = vpop.f32.mrb[0].mxu0
        %v4686 = vpop.f32.mrb[0].mxu0
        %v4687 = vadd.f32 %v3119, %v4686
        %v4688 = vpop.f32.mrb[0].mxu0
        %4689 = vdwg.mxu0
        %4690 = vmatprep.subr.bf16.mxu0 0
        %4691 = vmatpush1.bf16.msra.mxu0 %v2753
        %4692 = vmatprep.subr.bf16.mxu0 0
        %4693 = vmatpush1.bf16.msra.mxu0 %v2754
        %4694 = vmatprep.subr.bf16.mxu0 0
        %4695 = vmatpush1.bf16.msra.mxu0 %v2755
        %4696 = vmatprep.subr.bf16.mxu0 0
        %4697 = vmatpush1.bf16.msra.mxu0 %v2756
        %4698 = vmatprep.subr.bf16.mxu0 0
        %4699 = vmatpush1.bf16.msra.mxu0 %v2757
        %4700 = vmatprep.subr.bf16.mxu0 0
        %4701 = vmatpush1.bf16.msra.mxu0 %v2758
        %4702 = vmatprep.subr.bf16.mxu0 0
        %4703 = vmatpush1.bf16.msra.mxu0 %v2759
        %4704 = vmatprep.subr.bf16.mxu0 0
        %4705 = vmatpush1.bf16.msra.mxu0 %v2760
        %4706 = vmatprep.subr.bf16.mxu0 0
        %4707 = vmatpush1.bf16.msra.mxu0 %v2761
        %4708 = vmatprep.subr.bf16.mxu0 0
        %4709 = vmatpush1.bf16.msra.mxu0 %v2762
        %4710 = vmatprep.subr.bf16.mxu0 0
        %4711 = vmatpush1.bf16.msra.mxu0 %v2763
        %4712 = vmatprep.subr.bf16.mxu0 0
        %4713 = vmatpush1.bf16.msra.mxu0 %v2764
        %4714 = vmatprep.subr.bf16.mxu0 0
        %4715 = vmatpush1.bf16.msra.mxu0 %v2765
        %4716 = vmatprep.subr.bf16.mxu0 0
        %4717 = vmatpush1.bf16.msra.mxu0 %v2766
        %4718 = vmatprep.subr.bf16.mxu0 0
        %4719 = vmatpush1.bf16.msra.mxu0 %v2767
        %4720 = vmatprep.subr.bf16.mxu0 0
        %4721 = vmatpush1.bf16.msra.mxu0 %v2768
        %4722 = vmatprep.mubr.bf16.mxu0 %v3892
        %4723 = vmatmul.mubr.bf16.gmra.mrb[0].mxu0 %v3891
        %v4724 = vpop.f32.mrb[0].mxu0
        %v4725 = vadd.f32 %v4436, %v4724
        %v4726 = vpop.f32.mrb[0].mxu0
        %v4727 = vpop.f32.mrb[0].mxu0
        %v4728 = vadd.f32 %v4439, %v4727
        %v4729 = vpop.f32.mrb[0].mxu0
        %4730 = vmatprep.mubr.bf16.mxu0 %v3900
        %4731 = vmatmul.mubr.bf16.gmra.mrb[0].mxu0 %v3899
        %v4732 = vpop.f32.mrb[0].mxu0
        %v4733 = vadd.f32 %v4444, %v4732
        %v4734 = vpop.f32.mrb[0].mxu0
        %v4735 = vpop.f32.mrb[0].mxu0
        %v4736 = vadd.f32 %v4447, %v4735
        %v4737 = vpop.f32.mrb[0].mxu0
        %4738 = vmatprep.mubr.bf16.mxu0 %v3908
        %4739 = vmatmul.mubr.bf16.gmra.mrb[0].mxu0 %v3907
        %v4740 = vpop.f32.mrb[0].mxu0
        %v4741 = vadd.f32 %v4452, %v4740
        %v4742 = vpop.f32.mrb[0].mxu0
        %v4743 = vpop.f32.mrb[0].mxu0
        %v4744 = vadd.f32 %v4455, %v4743
        %v4745 = vpop.f32.mrb[0].mxu0
        %4746 = vmatprep.mubr.bf16.mxu0 %v3916
        %4747 = vmatmul.mubr.bf16.gmra.mrb[0].mxu0 %v3915
        %v4748 = vpop.f32.mrb[0].mxu0
        %v4749 = vadd.f32 %v4460, %v4748
        %v4750 = vpop.f32.mrb[0].mxu0
        %v4751 = vpop.f32.mrb[0].mxu0
        %v4752 = vadd.f32 %v4463, %v4751
        %v4753 = vpop.f32.mrb[0].mxu0
        %4754 = vmatprep.mubr.bf16.mxu0 %v3924
        %4755 = vmatmul.mubr.bf16.gmra.mrb[0].mxu0 %v3923
        %v4756 = vpop.f32.mrb[0].mxu0
        %v4757 = vadd.f32 %v4468, %v4756
        %v4758 = vpop.f32.mrb[0].mxu0
        %v4759 = vpop.f32.mrb[0].mxu0
        %v4760 = vadd.f32 %v4471, %v4759
        %v4761 = vpop.f32.mrb[0].mxu0
        %4762 = vmatprep.mubr.bf16.mxu0 %v3932
        %4763 = vmatmul.mubr.bf16.gmra.mrb[0].mxu0 %v3931
        %v4764 = vpop.f32.mrb[0].mxu0
        %v4765 = vadd.f32 %v4476, %v4764
        %v4766 = vpop.f32.mrb[0].mxu0
        %v4767 = vpop.f32.mrb[0].mxu0
        %v4768 = vadd.f32 %v4479, %v4767
        %v4769 = vpop.f32.mrb[0].mxu0
        %4770 = vmatprep.mubr.bf16.mxu0 %v3940
        %4771 = vmatmul.mubr.bf16.gmra.mrb[0].mxu0 %v3939
        %v4772 = vpop.f32.mrb[0].mxu0
        %v4773 = vadd.f32 %v4484, %v4772
        %v4774 = vpop.f32.mrb[0].mxu0
        %v4775 = vpop.f32.mrb[0].mxu0
        %v4776 = vadd.f32 %v4487, %v4775
        %v4777 = vpop.f32.mrb[0].mxu0
        %4778 = vmatprep.mubr.bf16.mxu0 %v3948
        %4779 = vmatmul.mubr.bf16.gmra.mrb[0].mxu0 %v3947
        %v4780 = vpop.f32.mrb[0].mxu0
        %v4781 = vadd.f32 %v4492, %v4780
        %v4782 = vpop.f32.mrb[0].mxu0
        %v4783 = vpop.f32.mrb[0].mxu0
        %v4784 = vadd.f32 %v4495, %v4783
        %v4785 = vpop.f32.mrb[0].mxu0
        %4786 = vmatprep.mubr.bf16.mxu0 %v3956
        %4787 = vmatmul.mubr.bf16.gmra.mrb[0].mxu0 %v3955
        %v4788 = vpop.f32.mrb[0].mxu0
        %v4789 = vadd.f32 %v4500, %v4788
        %v4790 = vpop.f32.mrb[0].mxu0
        %v4791 = vpop.f32.mrb[0].mxu0
        %v4792 = vadd.f32 %v4503, %v4791
        %v4793 = vpop.f32.mrb[0].mxu0
        %4794 = vmatprep.mubr.bf16.mxu0 %v3964
        %4795 = vmatmul.mubr.bf16.gmra.mrb[0].mxu0 %v3963
        %v4796 = vpop.f32.mrb[0].mxu0
        %v4797 = vadd.f32 %v4508, %v4796
        %v4798 = vpop.f32.mrb[0].mxu0
        %v4799 = vpop.f32.mrb[0].mxu0
        %v4800 = vadd.f32 %v4511, %v4799
        %v4801 = vpop.f32.mrb[0].mxu0
        %4802 = vmatprep.mubr.bf16.mxu0 %v3972
        %4803 = vmatmul.mubr.bf16.gmra.mrb[0].mxu0 %v3971
        %v4804 = vpop.f32.mrb[0].mxu0
        %v4805 = vadd.f32 %v4516, %v4804
        %v4806 = vpop.f32.mrb[0].mxu0
        %v4807 = vpop.f32.mrb[0].mxu0
        %v4808 = vadd.f32 %v4519, %v4807
        %v4809 = vpop.f32.mrb[0].mxu0
        %4810 = vmatprep.mubr.bf16.mxu0 %v3980
        %4811 = vmatmul.mubr.bf16.gmra.mrb[0].mxu0 %v3979
        %v4812 = vpop.f32.mrb[0].mxu0
        %v4813 = vadd.f32 %v4524, %v4812
        %v4814 = vpop.f32.mrb[0].mxu0
        %v4815 = vpop.f32.mrb[0].mxu0
        %v4816 = vadd.f32 %v4527, %v4815
        %v4817 = vpop.f32.mrb[0].mxu0
        %4818 = vmatprep.mubr.bf16.mxu0 %v3988
        %4819 = vmatmul.mubr.bf16.gmra.mrb[0].mxu0 %v3987
        %v4820 = vpop.f32.mrb[0].mxu0
        %v4821 = vadd.f32 %v4532, %v4820
        %v4822 = vpop.f32.mrb[0].mxu0
        %v4823 = vpop.f32.mrb[0].mxu0
        %v4824 = vadd.f32 %v4535, %v4823
        %v4825 = vpop.f32.mrb[0].mxu0
        %4826 = vmatprep.mubr.bf16.mxu0 %v3996
        %4827 = vmatmul.mubr.bf16.gmra.mrb[0].mxu0 %v3995
        %v4828 = vpop.f32.mrb[0].mxu0
        %v4829 = vadd.f32 %v4540, %v4828
        %v4830 = vpop.f32.mrb[0].mxu0
        %v4831 = vpop.f32.mrb[0].mxu0
        %v4832 = vadd.f32 %v4543, %v4831
        %v4833 = vpop.f32.mrb[0].mxu0
        %4834 = vmatprep.mubr.bf16.mxu0 %v4004
        %4835 = vmatmul.mubr.bf16.gmra.mrb[0].mxu0 %v4003
        %v4836 = vpop.f32.mrb[0].mxu0
        %v4837 = vadd.f32 %v4548, %v4836
        %v4838 = vpop.f32.mrb[0].mxu0
        %v4839 = vpop.f32.mrb[0].mxu0
        %v4840 = vadd.f32 %v4551, %v4839
        %v4841 = vpop.f32.mrb[0].mxu0
        %4842 = vmatprep.mubr.bf16.mxu0 %v4012
        %4843 = vmatmul.mubr.bf16.gmra.mrb[0].mxu0 %v4011
        %v4844 = vpop.f32.mrb[0].mxu0
        %v4845 = vadd.f32 %v4556, %v4844
        %v4846 = vpop.f32.mrb[0].mxu0
        %v4847 = vpop.f32.mrb[0].mxu0
        %v4848 = vadd.f32 %v4559, %v4847
        %v4849 = vpop.f32.mrb[0].mxu0
        %4850 = vmatprep.mubr.bf16.mxu0 %v4020
        %4851 = vmatmul.mubr.bf16.gmra.mrb[0].mxu0 %v4019
        %v4852 = vpop.f32.mrb[0].mxu0
        %v4853 = vadd.f32 %v4564, %v4852
        %v4854 = vpop.f32.mrb[0].mxu0
        %v4855 = vpop.f32.mrb[0].mxu0
        %v4856 = vadd.f32 %v4567, %v4855
        %v4857 = vpop.f32.mrb[0].mxu0
        %4858 = vmatprep.mubr.bf16.mxu0 %v4028
        %4859 = vmatmul.mubr.bf16.gmra.mrb[0].mxu0 %v4027
        %v4860 = vpop.f32.mrb[0].mxu0
        %v4861 = vadd.f32 %v4572, %v4860
        %v4862 = vpop.f32.mrb[0].mxu0
        %v4863 = vpop.f32.mrb[0].mxu0
        %v4864 = vadd.f32 %v4575, %v4863
        %v4865 = vpop.f32.mrb[0].mxu0
        %4866 = vmatprep.mubr.bf16.mxu0 %v4036
        %4867 = vmatmul.mubr.bf16.gmra.mrb[0].mxu0 %v4035
        %v4868 = vpop.f32.mrb[0].mxu0
        %v4869 = vadd.f32 %v4580, %v4868
        %v4870 = vpop.f32.mrb[0].mxu0
        %v4871 = vpop.f32.mrb[0].mxu0
        %v4872 = vadd.f32 %v4583, %v4871
        %v4873 = vpop.f32.mrb[0].mxu0
        %4874 = vmatprep.mubr.bf16.mxu0 %v4044
        %4875 = vmatmul.mubr.bf16.gmra.mrb[0].mxu0 %v4043
        %v4876 = vpop.f32.mrb[0].mxu0
        %v4877 = vadd.f32 %v4588, %v4876
        %v4878 = vpop.f32.mrb[0].mxu0
        %v4879 = vpop.f32.mrb[0].mxu0
        %v4880 = vadd.f32 %v4591, %v4879
        %v4881 = vpop.f32.mrb[0].mxu0
        %4882 = vmatprep.mubr.bf16.mxu0 %v4052
        %4883 = vmatmul.mubr.bf16.gmra.mrb[0].mxu0 %v4051
        %v4884 = vpop.f32.mrb[0].mxu0
        %v4885 = vadd.f32 %v4596, %v4884
        %v4886 = vpop.f32.mrb[0].mxu0
        %v4887 = vpop.f32.mrb[0].mxu0
        %v4888 = vadd.f32 %v4599, %v4887
        %v4889 = vpop.f32.mrb[0].mxu0
        %4890 = vmatprep.mubr.bf16.mxu0 %v4060
        %4891 = vmatmul.mubr.bf16.gmra.mrb[0].mxu0 %v4059
        %v4892 = vpop.f32.mrb[0].mxu0
        %v4893 = vadd.f32 %v4604, %v4892
        %v4894 = vpop.f32.mrb[0].mxu0
        %v4895 = vpop.f32.mrb[0].mxu0
        %v4896 = vadd.f32 %v4607, %v4895
        %v4897 = vpop.f32.mrb[0].mxu0
        %4898 = vmatprep.mubr.bf16.mxu0 %v4068
        %4899 = vmatmul.mubr.bf16.gmra.mrb[0].mxu0 %v4067
        %v4900 = vpop.f32.mrb[0].mxu0
        %v4901 = vadd.f32 %v4612, %v4900
        %v4902 = vpop.f32.mrb[0].mxu0
        %v4903 = vpop.f32.mrb[0].mxu0
        %v4904 = vadd.f32 %v4615, %v4903
        %v4905 = vpop.f32.mrb[0].mxu0
        %4906 = vmatprep.mubr.bf16.mxu0 %v4076
        %4907 = vmatmul.mubr.bf16.gmra.mrb[0].mxu0 %v4075
        %v4908 = vpop.f32.mrb[0].mxu0
        %v4909 = vadd.f32 %v4620, %v4908
        %v4910 = vpop.f32.mrb[0].mxu0
        %v4911 = vpop.f32.mrb[0].mxu0
        %v4912 = vadd.f32 %v4623, %v4911
        %v4913 = vpop.f32.mrb[0].mxu0
        %4914 = vmatprep.mubr.bf16.mxu0 %v4084
        %4915 = vmatmul.mubr.bf16.gmra.mrb[0].mxu0 %v4083
        %v4916 = vpop.f32.mrb[0].mxu0
        %v4917 = vadd.f32 %v4628, %v4916
        %v4918 = vpop.f32.mrb[0].mxu0
        %v4919 = vpop.f32.mrb[0].mxu0
        %v4920 = vadd.f32 %v4631, %v4919
        %v4921 = vpop.f32.mrb[0].mxu0
        %4922 = vmatprep.mubr.bf16.mxu0 %v4092
        %4923 = vmatmul.mubr.bf16.gmra.mrb[0].mxu0 %v4091
        %v4924 = vpop.f32.mrb[0].mxu0
        %v4925 = vadd.f32 %v4636, %v4924
        %v4926 = vpop.f32.mrb[0].mxu0
        %v4927 = vpop.f32.mrb[0].mxu0
        %v4928 = vadd.f32 %v4639, %v4927
        %v4929 = vpop.f32.mrb[0].mxu0
        %4930 = vmatprep.mubr.bf16.mxu0 %v4100
        %4931 = vmatmul.mubr.bf16.gmra.mrb[0].mxu0 %v4099
        %v4932 = vpop.f32.mrb[0].mxu0
        %v4933 = vadd.f32 %v4644, %v4932
        %v4934 = vpop.f32.mrb[0].mxu0
        %v4935 = vpop.f32.mrb[0].mxu0
        %v4936 = vadd.f32 %v4647, %v4935
        %v4937 = vpop.f32.mrb[0].mxu0
        %4938 = vmatprep.mubr.bf16.mxu0 %v4108
        %4939 = vmatmul.mubr.bf16.gmra.mrb[0].mxu0 %v4107
        %v4940 = vpop.f32.mrb[0].mxu0
        %v4941 = vadd.f32 %v4652, %v4940
        %v4942 = vpop.f32.mrb[0].mxu0
        %v4943 = vpop.f32.mrb[0].mxu0
        %v4944 = vadd.f32 %v4655, %v4943
        %v4945 = vpop.f32.mrb[0].mxu0
        %4946 = vmatprep.mubr.bf16.mxu0 %v4116
        %4947 = vmatmul.mubr.bf16.gmra.mrb[0].mxu0 %v4115
        %v4948 = vpop.f32.mrb[0].mxu0
        %v4949 = vadd.f32 %v4660, %v4948
        %v4950 = vpop.f32.mrb[0].mxu0
        %v4951 = vpop.f32.mrb[0].mxu0
        %v4952 = vadd.f32 %v4663, %v4951
        %v4953 = vpop.f32.mrb[0].mxu0
        %4954 = vmatprep.mubr.bf16.mxu0 %v4124
        %4955 = vmatmul.mubr.bf16.gmra.mrb[0].mxu0 %v4123
        %v4956 = vpop.f32.mrb[0].mxu0
        %v4957 = vadd.f32 %v4668, %v4956
        %v4958 = vpop.f32.mrb[0].mxu0
        %v4959 = vpop.f32.mrb[0].mxu0
        %v4960 = vadd.f32 %v4671, %v4959
        %v4961 = vpop.f32.mrb[0].mxu0
        %4962 = vmatprep.mubr.bf16.mxu0 %v4132
        %4963 = vmatmul.mubr.bf16.gmra.mrb[0].mxu0 %v4131
        %v4964 = vpop.f32.mrb[0].mxu0
        %v4965 = vadd.f32 %v4676, %v4964
        %v4966 = vpop.f32.mrb[0].mxu0
        %v4967 = vpop.f32.mrb[0].mxu0
        %v4968 = vadd.f32 %v4679, %v4967
        %v4969 = vpop.f32.mrb[0].mxu0
        %4970 = vmatprep.mubr.bf16.mxu0 %v4140
        %4971 = vmatmul.mubr.bf16.gmra.mrb[0].mxu0 %v4139
        %v4972 = vpop.f32.mrb[0].mxu0
        %v4973 = vadd.f32 %v4684, %v4972
        %v4974 = vpop.f32.mrb[0].mxu0
        %v4975 = vpop.f32.mrb[0].mxu0
        %v4976 = vadd.f32 %v4687, %v4975
        %v4977 = vpop.f32.mrb[0].mxu0
        %4978 = vdwg.mxu0
        %4979 = vmatprep.subr.bf16.mxu0 0
        %4980 = vmatpush1.bf16.msra.mxu0 %v2769
        %4981 = vmatprep.subr.bf16.mxu0 0
        %4982 = vmatpush1.bf16.msra.mxu0 %v2770
        %4983 = vmatprep.subr.bf16.mxu0 0
        %4984 = vmatpush1.bf16.msra.mxu0 %v2771
        %4985 = vmatprep.subr.bf16.mxu0 0
        %4986 = vmatpush1.bf16.msra.mxu0 %v2772
        %4987 = vmatprep.subr.bf16.mxu0 0
        %4988 = vmatpush1.bf16.msra.mxu0 %v2773
        %4989 = vmatprep.subr.bf16.mxu0 0
        %4990 = vmatpush1.bf16.msra.mxu0 %v2774
        %4991 = vmatprep.subr.bf16.mxu0 0
        %4992 = vmatpush1.bf16.msra.mxu0 %v2775
        %4993 = vmatprep.subr.bf16.mxu0 0
        %4994 = vmatpush1.bf16.msra.mxu0 %v2776
        %4995 = vmatprep.subr.bf16.mxu0 0
        %4996 = vmatpush1.bf16.msra.mxu0 %v2777
        %4997 = vmatprep.subr.bf16.mxu0 0
        %4998 = vmatpush1.bf16.msra.mxu0 %v2778
        %4999 = vmatprep.subr.bf16.mxu0 0
        %5000 = vmatpush1.bf16.msra.mxu0 %v2779
        %5001 = vmatprep.subr.bf16.mxu0 0
        %5002 = vmatpush1.bf16.msra.mxu0 %v2780
        %5003 = vmatprep.subr.bf16.mxu0 0
        %5004 = vmatpush1.bf16.msra.mxu0 %v2781
        %5005 = vmatprep.subr.bf16.mxu0 0
        %5006 = vmatpush1.bf16.msra.mxu0 %v2782
        %5007 = vmatprep.subr.bf16.mxu0 0
        %5008 = vmatpush1.bf16.msra.mxu0 %v2783
        %5009 = vmatprep.subr.bf16.mxu0 0
        %5010 = vmatpush1.bf16.msra.mxu0 %v2784
        %5011 = vmatprep.mubr.bf16.mxu0 %v3894
        %5012 = vmatmul.mubr.bf16.gmra.mrb[0].mxu0 %v3893
        %v5013 = vpop.f32.mrb[0].mxu0
        %v5014 = vadd.f32 %v4725, %v5013
        %v5015 = vpop.f32.mrb[0].mxu0
        %v5016 = vpop.f32.mrb[0].mxu0
        %v5017 = vadd.f32 %v4728, %v5016
        %v5018 = vpop.f32.mrb[0].mxu0
        %5019 = vmatprep.mubr.bf16.mxu0 %v3902
        %5020 = vmatmul.mubr.bf16.gmra.mrb[0].mxu0 %v3901
        %v5021 = vpop.f32.mrb[0].mxu0
        %v5022 = vadd.f32 %v4733, %v5021
        %v5023 = vpop.f32.mrb[0].mxu0
        %v5024 = vpop.f32.mrb[0].mxu0
        %v5025 = vadd.f32 %v4736, %v5024
        %v5026 = vpop.f32.mrb[0].mxu0
        %5027 = vmatprep.mubr.bf16.mxu0 %v3910
        %5028 = vmatmul.mubr.bf16.gmra.mrb[0].mxu0 %v3909
        %v5029 = vpop.f32.mrb[0].mxu0
        %v5030 = vadd.f32 %v4741, %v5029
        %v5031 = vpop.f32.mrb[0].mxu0
        %v5032 = vpop.f32.mrb[0].mxu0
        %v5033 = vadd.f32 %v4744, %v5032
        %v5034 = vpop.f32.mrb[0].mxu0
        %5035 = vmatprep.mubr.bf16.mxu0 %v3918
        %5036 = vmatmul.mubr.bf16.gmra.mrb[0].mxu0 %v3917
        %v5037 = vpop.f32.mrb[0].mxu0
        %v5038 = vadd.f32 %v4749, %v5037
        %v5039 = vpop.f32.mrb[0].mxu0
        %v5040 = vpop.f32.mrb[0].mxu0
        %v5041 = vadd.f32 %v4752, %v5040
        %v5042 = vpop.f32.mrb[0].mxu0
        %5043 = vmatprep.mubr.bf16.mxu0 %v3926
        %5044 = vmatmul.mubr.bf16.gmra.mrb[0].mxu0 %v3925
        %v5045 = vpop.f32.mrb[0].mxu0
        %v5046 = vadd.f32 %v4757, %v5045
        %v5047 = vpop.f32.mrb[0].mxu0
        %v5048 = vpop.f32.mrb[0].mxu0
        %v5049 = vadd.f32 %v4760, %v5048
        %v5050 = vpop.f32.mrb[0].mxu0
        %5051 = vmatprep.mubr.bf16.mxu0 %v3934
        %5052 = vmatmul.mubr.bf16.gmra.mrb[0].mxu0 %v3933
        %v5053 = vpop.f32.mrb[0].mxu0
        %v5054 = vadd.f32 %v4765, %v5053
        %v5055 = vpop.f32.mrb[0].mxu0
        %v5056 = vpop.f32.mrb[0].mxu0
        %v5057 = vadd.f32 %v4768, %v5056
        %v5058 = vpop.f32.mrb[0].mxu0
        %5059 = vmatprep.mubr.bf16.mxu0 %v3942
        %5060 = vmatmul.mubr.bf16.gmra.mrb[0].mxu0 %v3941
        %v5061 = vpop.f32.mrb[0].mxu0
        %v5062 = vadd.f32 %v4773, %v5061
        %v5063 = vpop.f32.mrb[0].mxu0
        %v5064 = vpop.f32.mrb[0].mxu0
        %v5065 = vadd.f32 %v4776, %v5064
        %v5066 = vpop.f32.mrb[0].mxu0
        %5067 = vmatprep.mubr.bf16.mxu0 %v3950
        %5068 = vmatmul.mubr.bf16.gmra.mrb[0].mxu0 %v3949
        %v5069 = vpop.f32.mrb[0].mxu0
        %v5070 = vadd.f32 %v4781, %v5069
        %v5071 = vpop.f32.mrb[0].mxu0
        %v5072 = vpop.f32.mrb[0].mxu0
        %v5073 = vadd.f32 %v4784, %v5072
        %v5074 = vpop.f32.mrb[0].mxu0
        %5075 = vmatprep.mubr.bf16.mxu0 %v3958
        %5076 = vmatmul.mubr.bf16.gmra.mrb[0].mxu0 %v3957
        %v5077 = vpop.f32.mrb[0].mxu0
        %v5078 = vadd.f32 %v4789, %v5077
        %v5079 = vpop.f32.mrb[0].mxu0
        %v5080 = vpop.f32.mrb[0].mxu0
        %v5081 = vadd.f32 %v4792, %v5080
        %v5082 = vpop.f32.mrb[0].mxu0
        %5083 = vmatprep.mubr.bf16.mxu0 %v3966
        %5084 = vmatmul.mubr.bf16.gmra.mrb[0].mxu0 %v3965
        %v5085 = vpop.f32.mrb[0].mxu0
        %v5086 = vadd.f32 %v4797, %v5085
        %v5087 = vpop.f32.mrb[0].mxu0
        %v5088 = vpop.f32.mrb[0].mxu0
        %v5089 = vadd.f32 %v4800, %v5088
        %v5090 = vpop.f32.mrb[0].mxu0
        %5091 = vmatprep.mubr.bf16.mxu0 %v3974
        %5092 = vmatmul.mubr.bf16.gmra.mrb[0].mxu0 %v3973
        %v5093 = vpop.f32.mrb[0].mxu0
        %v5094 = vadd.f32 %v4805, %v5093
        %v5095 = vpop.f32.mrb[0].mxu0
        %v5096 = vpop.f32.mrb[0].mxu0
        %v5097 = vadd.f32 %v4808, %v5096
        %v5098 = vpop.f32.mrb[0].mxu0
        %5099 = vmatprep.mubr.bf16.mxu0 %v3982
        %5100 = vmatmul.mubr.bf16.gmra.mrb[0].mxu0 %v3981
        %v5101 = vpop.f32.mrb[0].mxu0
        %v5102 = vadd.f32 %v4813, %v5101
        %v5103 = vpop.f32.mrb[0].mxu0
        %v5104 = vpop.f32.mrb[0].mxu0
        %v5105 = vadd.f32 %v4816, %v5104
        %v5106 = vpop.f32.mrb[0].mxu0
        %5107 = vmatprep.mubr.bf16.mxu0 %v3990
        %5108 = vmatmul.mubr.bf16.gmra.mrb[0].mxu0 %v3989
        %v5109 = vpop.f32.mrb[0].mxu0
        %v5110 = vadd.f32 %v4821, %v5109
        %v5111 = vpop.f32.mrb[0].mxu0
        %v5112 = vpop.f32.mrb[0].mxu0
        %v5113 = vadd.f32 %v4824, %v5112
        %v5114 = vpop.f32.mrb[0].mxu0
        %5115 = vmatprep.mubr.bf16.mxu0 %v3998
        %5116 = vmatmul.mubr.bf16.gmra.mrb[0].mxu0 %v3997
        %v5117 = vpop.f32.mrb[0].mxu0
        %v5118 = vadd.f32 %v4829, %v5117
        %v5119 = vpop.f32.mrb[0].mxu0
        %v5120 = vpop.f32.mrb[0].mxu0
        %v5121 = vadd.f32 %v4832, %v5120
        %v5122 = vpop.f32.mrb[0].mxu0
        %5123 = vmatprep.mubr.bf16.mxu0 %v4006
        %5124 = vmatmul.mubr.bf16.gmra.mrb[0].mxu0 %v4005
        %v5125 = vpop.f32.mrb[0].mxu0
        %v5126 = vadd.f32 %v4837, %v5125
        %v5127 = vpop.f32.mrb[0].mxu0
        %v5128 = vpop.f32.mrb[0].mxu0
        %v5129 = vadd.f32 %v4840, %v5128
        %v5130 = vpop.f32.mrb[0].mxu0
        %5131 = vmatprep.mubr.bf16.mxu0 %v4014
        %5132 = vmatmul.mubr.bf16.gmra.mrb[0].mxu0 %v4013
        %v5133 = vpop.f32.mrb[0].mxu0
        %v5134 = vadd.f32 %v4845, %v5133
        %v5135 = vpop.f32.mrb[0].mxu0
        %v5136 = vpop.f32.mrb[0].mxu0
        %v5137 = vadd.f32 %v4848, %v5136
        %v5138 = vpop.f32.mrb[0].mxu0
        %5139 = vmatprep.mubr.bf16.mxu0 %v4022
        %5140 = vmatmul.mubr.bf16.gmra.mrb[0].mxu0 %v4021
        %v5141 = vpop.f32.mrb[0].mxu0
        %v5142 = vadd.f32 %v4853, %v5141
        %v5143 = vpop.f32.mrb[0].mxu0
        %v5144 = vpop.f32.mrb[0].mxu0
        %v5145 = vadd.f32 %v4856, %v5144
        %v5146 = vpop.f32.mrb[0].mxu0
        %5147 = vmatprep.mubr.bf16.mxu0 %v4030
        %5148 = vmatmul.mubr.bf16.gmra.mrb[0].mxu0 %v4029
        %v5149 = vpop.f32.mrb[0].mxu0
        %v5150 = vadd.f32 %v4861, %v5149
        %v5151 = vpop.f32.mrb[0].mxu0
        %v5152 = vpop.f32.mrb[0].mxu0
        %v5153 = vadd.f32 %v4864, %v5152
        %v5154 = vpop.f32.mrb[0].mxu0
        %5155 = vmatprep.mubr.bf16.mxu0 %v4038
        %5156 = vmatmul.mubr.bf16.gmra.mrb[0].mxu0 %v4037
        %v5157 = vpop.f32.mrb[0].mxu0
        %v5158 = vadd.f32 %v4869, %v5157
        %v5159 = vpop.f32.mrb[0].mxu0
        %v5160 = vpop.f32.mrb[0].mxu0
        %v5161 = vadd.f32 %v4872, %v5160
        %v5162 = vpop.f32.mrb[0].mxu0
        %5163 = vmatprep.mubr.bf16.mxu0 %v4046
        %5164 = vmatmul.mubr.bf16.gmra.mrb[0].mxu0 %v4045
        %v5165 = vpop.f32.mrb[0].mxu0
        %v5166 = vadd.f32 %v4877, %v5165
        %v5167 = vpop.f32.mrb[0].mxu0
        %v5168 = vpop.f32.mrb[0].mxu0
        %v5169 = vadd.f32 %v4880, %v5168
        %v5170 = vpop.f32.mrb[0].mxu0
        %5171 = vmatprep.mubr.bf16.mxu0 %v4054
        %5172 = vmatmul.mubr.bf16.gmra.mrb[0].mxu0 %v4053
        %v5173 = vpop.f32.mrb[0].mxu0
        %v5174 = vadd.f32 %v4885, %v5173
        %v5175 = vpop.f32.mrb[0].mxu0
        %v5176 = vpop.f32.mrb[0].mxu0
        %v5177 = vadd.f32 %v4888, %v5176
        %v5178 = vpop.f32.mrb[0].mxu0
        %5179 = vmatprep.mubr.bf16.mxu0 %v4062
        %5180 = vmatmul.mubr.bf16.gmra.mrb[0].mxu0 %v4061
        %v5181 = vpop.f32.mrb[0].mxu0
        %v5182 = vadd.f32 %v4893, %v5181
        %v5183 = vpop.f32.mrb[0].mxu0
        %v5184 = vpop.f32.mrb[0].mxu0
        %v5185 = vadd.f32 %v4896, %v5184
        %v5186 = vpop.f32.mrb[0].mxu0
        %5187 = vmatprep.mubr.bf16.mxu0 %v4070
        %5188 = vmatmul.mubr.bf16.gmra.mrb[0].mxu0 %v4069
        %v5189 = vpop.f32.mrb[0].mxu0
        %v5190 = vadd.f32 %v4901, %v5189
        %v5191 = vpop.f32.mrb[0].mxu0
        %v5192 = vpop.f32.mrb[0].mxu0
        %v5193 = vadd.f32 %v4904, %v5192
        %v5194 = vpop.f32.mrb[0].mxu0
        %5195 = vmatprep.mubr.bf16.mxu0 %v4078
        %5196 = vmatmul.mubr.bf16.gmra.mrb[0].mxu0 %v4077
        %v5197 = vpop.f32.mrb[0].mxu0
        %v5198 = vadd.f32 %v4909, %v5197
        %v5199 = vpop.f32.mrb[0].mxu0
        %v5200 = vpop.f32.mrb[0].mxu0
        %v5201 = vadd.f32 %v4912, %v5200
        %v5202 = vpop.f32.mrb[0].mxu0
        %5203 = vmatprep.mubr.bf16.mxu0 %v4086
        %5204 = vmatmul.mubr.bf16.gmra.mrb[0].mxu0 %v4085
        %v5205 = vpop.f32.mrb[0].mxu0
        %v5206 = vadd.f32 %v4917, %v5205
        %v5207 = vpop.f32.mrb[0].mxu0
        %v5208 = vpop.f32.mrb[0].mxu0
        %v5209 = vadd.f32 %v4920, %v5208
        %v5210 = vpop.f32.mrb[0].mxu0
        %5211 = vmatprep.mubr.bf16.mxu0 %v4094
        %5212 = vmatmul.mubr.bf16.gmra.mrb[0].mxu0 %v4093
        %v5213 = vpop.f32.mrb[0].mxu0
        %v5214 = vadd.f32 %v4925, %v5213
        %v5215 = vpop.f32.mrb[0].mxu0
        %v5216 = vpop.f32.mrb[0].mxu0
        %v5217 = vadd.f32 %v4928, %v5216
        %v5218 = vpop.f32.mrb[0].mxu0
        %5219 = vmatprep.mubr.bf16.mxu0 %v4102
        %5220 = vmatmul.mubr.bf16.gmra.mrb[0].mxu0 %v4101
        %v5221 = vpop.f32.mrb[0].mxu0
        %v5222 = vadd.f32 %v4933, %v5221
        %v5223 = vpop.f32.mrb[0].mxu0
        %v5224 = vpop.f32.mrb[0].mxu0
        %v5225 = vadd.f32 %v4936, %v5224
        %v5226 = vpop.f32.mrb[0].mxu0
        %5227 = vmatprep.mubr.bf16.mxu0 %v4110
        %5228 = vmatmul.mubr.bf16.gmra.mrb[0].mxu0 %v4109
        %v5229 = vpop.f32.mrb[0].mxu0
        %v5230 = vadd.f32 %v4941, %v5229
        %v5231 = vpop.f32.mrb[0].mxu0
        %v5232 = vpop.f32.mrb[0].mxu0
        %v5233 = vadd.f32 %v4944, %v5232
        %v5234 = vpop.f32.mrb[0].mxu0
        %5235 = vmatprep.mubr.bf16.mxu0 %v4118
        %5236 = vmatmul.mubr.bf16.gmra.mrb[0].mxu0 %v4117
        %v5237 = vpop.f32.mrb[0].mxu0
        %v5238 = vadd.f32 %v4949, %v5237
        %v5239 = vpop.f32.mrb[0].mxu0
        %v5240 = vpop.f32.mrb[0].mxu0
        %v5241 = vadd.f32 %v4952, %v5240
        %v5242 = vpop.f32.mrb[0].mxu0
        %5243 = vmatprep.mubr.bf16.mxu0 %v4126
        %5244 = vmatmul.mubr.bf16.gmra.mrb[0].mxu0 %v4125
        %v5245 = vpop.f32.mrb[0].mxu0
        %v5246 = vadd.f32 %v4957, %v5245
        %v5247 = vpop.f32.mrb[0].mxu0
        %v5248 = vpop.f32.mrb[0].mxu0
        %v5249 = vadd.f32 %v4960, %v5248
        %v5250 = vpop.f32.mrb[0].mxu0
        %5251 = vmatprep.mubr.bf16.mxu0 %v4134
        %5252 = vmatmul.mubr.bf16.gmra.mrb[0].mxu0 %v4133
        %v5253 = vpop.f32.mrb[0].mxu0
        %v5254 = vadd.f32 %v4965, %v5253
        %v5255 = vpop.f32.mrb[0].mxu0
        %v5256 = vpop.f32.mrb[0].mxu0
        %v5257 = vadd.f32 %v4968, %v5256
        %v5258 = vpop.f32.mrb[0].mxu0
        %5259 = vmatprep.mubr.bf16.mxu0 %v4142
        %5260 = vmatmul.mubr.bf16.gmra.mrb[0].mxu0 %v4141
        %v5261 = vpop.f32.mrb[0].mxu0
        %v5262 = vadd.f32 %v4973, %v5261
        %v5263 = vpop.f32.mrb[0].mxu0
        %v5264 = vpop.f32.mrb[0].mxu0
        %v5265 = vadd.f32 %v4976, %v5264
        %v5266 = vpop.f32.mrb[0].mxu0
        %5267 = vdwg.mxu0
        %5268 = vmatprep.subr.bf16.mxu0 0
        %5269 = vmatpush1.bf16.msra.mxu0 %v2785
        %5270 = vmatprep.subr.bf16.mxu0 0
        %5271 = vmatpush1.bf16.msra.mxu0 %v2786
        %5272 = vmatprep.subr.bf16.mxu0 0
        %5273 = vmatpush1.bf16.msra.mxu0 %v2787
        %5274 = vmatprep.subr.bf16.mxu0 0
        %5275 = vmatpush1.bf16.msra.mxu0 %v2788
        %5276 = vmatprep.subr.bf16.mxu0 0
        %5277 = vmatpush1.bf16.msra.mxu0 %v2789
        %5278 = vmatprep.subr.bf16.mxu0 0
        %5279 = vmatpush1.bf16.msra.mxu0 %v2790
        %5280 = vmatprep.subr.bf16.mxu0 0
        %5281 = vmatpush1.bf16.msra.mxu0 %v2791
        %5282 = vmatprep.subr.bf16.mxu0 0
        %5283 = vmatpush1.bf16.msra.mxu0 %v2792
        %5284 = vmatprep.subr.bf16.mxu0 0
        %5285 = vmatpush1.bf16.msra.mxu0 %v2793
        %5286 = vmatprep.subr.bf16.mxu0 0
        %5287 = vmatpush1.bf16.msra.mxu0 %v2794
        %5288 = vmatprep.subr.bf16.mxu0 0
        %5289 = vmatpush1.bf16.msra.mxu0 %v2795
        %5290 = vmatprep.subr.bf16.mxu0 0
        %5291 = vmatpush1.bf16.msra.mxu0 %v2796
        %5292 = vmatprep.subr.bf16.mxu0 0
        %5293 = vmatpush1.bf16.msra.mxu0 %v2797
        %5294 = vmatprep.subr.bf16.mxu0 0
        %5295 = vmatpush1.bf16.msra.mxu0 %v2798
        %5296 = vmatprep.subr.bf16.mxu0 0
        %5297 = vmatpush1.bf16.msra.mxu0 %v2799
        %5298 = vmatprep.subr.bf16.mxu0 0
        %5299 = vmatpush1.bf16.msra.mxu0 %v2800
        %5300 = vmatprep.mubr.bf16.mxu0 %v3896
        %5301 = vmatmul.mubr.bf16.gmra.mrb[0].mxu0 %v3895
        %v5302 = vpop.f32.mrb[0].mxu0
        %v5303 = vadd.f32 %v5014, %v5302
        %v5304 = vpop.f32.mrb[0].mxu0
        %v5305 = vpop.f32.mrb[0].mxu0
        %v5306 = vadd.f32 %v5017, %v5305
        %v5307 = vpop.f32.mrb[0].mxu0
        %5308 = vmatprep.mubr.bf16.mxu0 %v3904
        %5309 = vmatmul.mubr.bf16.gmra.mrb[0].mxu0 %v3903
        %v5310 = vpop.f32.mrb[0].mxu0
        %v5311 = vadd.f32 %v5022, %v5310
        %v5312 = vpop.f32.mrb[0].mxu0
        %v5313 = vpop.f32.mrb[0].mxu0
        %v5314 = vadd.f32 %v5025, %v5313
        %v5315 = vpop.f32.mrb[0].mxu0
        %5316 = vmatprep.mubr.bf16.mxu0 %v3912
        %5317 = vmatmul.mubr.bf16.gmra.mrb[0].mxu0 %v3911
        %v5318 = vpop.f32.mrb[0].mxu0
        %v5319 = vadd.f32 %v5030, %v5318
        %v5320 = vpop.f32.mrb[0].mxu0
        %v5321 = vpop.f32.mrb[0].mxu0
        %v5322 = vadd.f32 %v5033, %v5321
        %v5323 = vpop.f32.mrb[0].mxu0
        %5324 = vmatprep.mubr.bf16.mxu0 %v3920
        %5325 = vmatmul.mubr.bf16.gmra.mrb[0].mxu0 %v3919
        %v5326 = vpop.f32.mrb[0].mxu0
        %v5327 = vadd.f32 %v5038, %v5326
        %v5328 = vpop.f32.mrb[0].mxu0
        %v5329 = vpop.f32.mrb[0].mxu0
        %v5330 = vadd.f32 %v5041, %v5329
        %v5331 = vpop.f32.mrb[0].mxu0
        %5332 = vmatprep.mubr.bf16.mxu0 %v3928
        %5333 = vmatmul.mubr.bf16.gmra.mrb[0].mxu0 %v3927
        %v5334 = vpop.f32.mrb[0].mxu0
        %v5335 = vadd.f32 %v5046, %v5334
        %v5336 = vpop.f32.mrb[0].mxu0
        %v5337 = vpop.f32.mrb[0].mxu0
        %v5338 = vadd.f32 %v5049, %v5337
        %v5339 = vpop.f32.mrb[0].mxu0
        %5340 = vmatprep.mubr.bf16.mxu0 %v3936
        %5341 = vmatmul.mubr.bf16.gmra.mrb[0].mxu0 %v3935
        %v5342 = vpop.f32.mrb[0].mxu0
        %v5343 = vadd.f32 %v5054, %v5342
        %v5344 = vpop.f32.mrb[0].mxu0
        %v5345 = vpop.f32.mrb[0].mxu0
        %v5346 = vadd.f32 %v5057, %v5345
        %v5347 = vpop.f32.mrb[0].mxu0
        %5348 = vmatprep.mubr.bf16.mxu0 %v3944
        %5349 = vmatmul.mubr.bf16.gmra.mrb[0].mxu0 %v3943
        %v5350 = vpop.f32.mrb[0].mxu0
        %v5351 = vadd.f32 %v5062, %v5350
        %v5352 = vpop.f32.mrb[0].mxu0
        %v5353 = vpop.f32.mrb[0].mxu0
        %v5354 = vadd.f32 %v5065, %v5353
        %v5355 = vpop.f32.mrb[0].mxu0
        %5356 = vmatprep.mubr.bf16.mxu0 %v3952
        %5357 = vmatmul.mubr.bf16.gmra.mrb[0].mxu0 %v3951
        %v5358 = vpop.f32.mrb[0].mxu0
        %v5359 = vadd.f32 %v5070, %v5358
        %v5360 = vpop.f32.mrb[0].mxu0
        %v5361 = vpop.f32.mrb[0].mxu0
        %v5362 = vadd.f32 %v5073, %v5361
        %v5363 = vpop.f32.mrb[0].mxu0
        %5364 = vmatprep.mubr.bf16.mxu0 %v3960
        %5365 = vmatmul.mubr.bf16.gmra.mrb[0].mxu0 %v3959
        %v5366 = vpop.f32.mrb[0].mxu0
        %v5367 = vadd.f32 %v5078, %v5366
        %v5368 = vpop.f32.mrb[0].mxu0
        %v5369 = vpop.f32.mrb[0].mxu0
        %v5370 = vadd.f32 %v5081, %v5369
        %v5371 = vpop.f32.mrb[0].mxu0
        %5372 = vmatprep.mubr.bf16.mxu0 %v3968
        %5373 = vmatmul.mubr.bf16.gmra.mrb[0].mxu0 %v3967
        %v5374 = vpop.f32.mrb[0].mxu0
        %v5375 = vadd.f32 %v5086, %v5374
        %v5376 = vpop.f32.mrb[0].mxu0
        %v5377 = vpop.f32.mrb[0].mxu0
        %v5378 = vadd.f32 %v5089, %v5377
        %v5379 = vpop.f32.mrb[0].mxu0
        %5380 = vmatprep.mubr.bf16.mxu0 %v3976
        %5381 = vmatmul.mubr.bf16.gmra.mrb[0].mxu0 %v3975
        %v5382 = vpop.f32.mrb[0].mxu0
        %v5383 = vadd.f32 %v5094, %v5382
        %v5384 = vpop.f32.mrb[0].mxu0
        %v5385 = vpop.f32.mrb[0].mxu0
        %v5386 = vadd.f32 %v5097, %v5385
        %v5387 = vpop.f32.mrb[0].mxu0
        %5388 = vmatprep.mubr.bf16.mxu0 %v3984
        %5389 = vmatmul.mubr.bf16.gmra.mrb[0].mxu0 %v3983
        %v5390 = vpop.f32.mrb[0].mxu0
        %v5391 = vadd.f32 %v5102, %v5390
        %v5392 = vpop.f32.mrb[0].mxu0
        %v5393 = vpop.f32.mrb[0].mxu0
        %v5394 = vadd.f32 %v5105, %v5393
        %v5395 = vpop.f32.mrb[0].mxu0
        %5396 = vmatprep.mubr.bf16.mxu0 %v3992
        %5397 = vmatmul.mubr.bf16.gmra.mrb[0].mxu0 %v3991
        %v5398 = vpop.f32.mrb[0].mxu0
        %v5399 = vadd.f32 %v5110, %v5398
        %v5400 = vpop.f32.mrb[0].mxu0
        %v5401 = vpop.f32.mrb[0].mxu0
        %v5402 = vadd.f32 %v5113, %v5401
        %v5403 = vpop.f32.mrb[0].mxu0
        %5404 = vmatprep.mubr.bf16.mxu0 %v4000
        %5405 = vmatmul.mubr.bf16.gmra.mrb[0].mxu0 %v3999
        %v5406 = vpop.f32.mrb[0].mxu0
        %v5407 = vadd.f32 %v5118, %v5406
        %v5408 = vpop.f32.mrb[0].mxu0
        %v5409 = vpop.f32.mrb[0].mxu0
        %v5410 = vadd.f32 %v5121, %v5409
        %v5411 = vpop.f32.mrb[0].mxu0
        %5412 = vmatprep.mubr.bf16.mxu0 %v4008
        %5413 = vmatmul.mubr.bf16.gmra.mrb[0].mxu0 %v4007
        %v5414 = vpop.f32.mrb[0].mxu0
        %v5415 = vadd.f32 %v5126, %v5414
        %v5416 = vpop.f32.mrb[0].mxu0
        %v5417 = vpop.f32.mrb[0].mxu0
        %v5418 = vadd.f32 %v5129, %v5417
        %v5419 = vpop.f32.mrb[0].mxu0
        %5420 = vmatprep.mubr.bf16.mxu0 %v4016
        %5421 = vmatmul.mubr.bf16.gmra.mrb[0].mxu0 %v4015
        %v5422 = vpop.f32.mrb[0].mxu0
        %v5423 = vadd.f32 %v5134, %v5422
        %v5424 = vpop.f32.mrb[0].mxu0
        %v5425 = vpop.f32.mrb[0].mxu0
        %v5426 = vadd.f32 %v5137, %v5425
        %v5427 = vpop.f32.mrb[0].mxu0
        %5428 = vmatprep.mubr.bf16.mxu0 %v4024
        %5429 = vmatmul.mubr.bf16.gmra.mrb[0].mxu0 %v4023
        %v5430 = vpop.f32.mrb[0].mxu0
        %v5431 = vadd.f32 %v5142, %v5430
        %v5432 = vpop.f32.mrb[0].mxu0
        %v5433 = vpop.f32.mrb[0].mxu0
        %v5434 = vadd.f32 %v5145, %v5433
        %v5435 = vpop.f32.mrb[0].mxu0
        %5436 = vmatprep.mubr.bf16.mxu0 %v4032
        %5437 = vmatmul.mubr.bf16.gmra.mrb[0].mxu0 %v4031
        %v5438 = vpop.f32.mrb[0].mxu0
        %v5439 = vadd.f32 %v5150, %v5438
        %v5440 = vpop.f32.mrb[0].mxu0
        %v5441 = vpop.f32.mrb[0].mxu0
        %v5442 = vadd.f32 %v5153, %v5441
        %v5443 = vpop.f32.mrb[0].mxu0
        %5444 = vmatprep.mubr.bf16.mxu0 %v4040
        %5445 = vmatmul.mubr.bf16.gmra.mrb[0].mxu0 %v4039
        %v5446 = vpop.f32.mrb[0].mxu0
        %v5447 = vadd.f32 %v5158, %v5446
        %v5448 = vpop.f32.mrb[0].mxu0
        %v5449 = vpop.f32.mrb[0].mxu0
        %v5450 = vadd.f32 %v5161, %v5449
        %v5451 = vpop.f32.mrb[0].mxu0
        %5452 = vmatprep.mubr.bf16.mxu0 %v4048
        %5453 = vmatmul.mubr.bf16.gmra.mrb[0].mxu0 %v4047
        %v5454 = vpop.f32.mrb[0].mxu0
        %v5455 = vadd.f32 %v5166, %v5454
        %v5456 = vpop.f32.mrb[0].mxu0
        %v5457 = vpop.f32.mrb[0].mxu0
        %v5458 = vadd.f32 %v5169, %v5457
        %v5459 = vpop.f32.mrb[0].mxu0
        %5460 = vmatprep.mubr.bf16.mxu0 %v4056
        %5461 = vmatmul.mubr.bf16.gmra.mrb[0].mxu0 %v4055
        %v5462 = vpop.f32.mrb[0].mxu0
        %v5463 = vadd.f32 %v5174, %v5462
        %v5464 = vpop.f32.mrb[0].mxu0
        %v5465 = vpop.f32.mrb[0].mxu0
        %v5466 = vadd.f32 %v5177, %v5465
        %v5467 = vpop.f32.mrb[0].mxu0
        %5468 = vmatprep.mubr.bf16.mxu0 %v4064
        %5469 = vmatmul.mubr.bf16.gmra.mrb[0].mxu0 %v4063
        %v5470 = vpop.f32.mrb[0].mxu0
        %v5471 = vadd.f32 %v5182, %v5470
        %v5472 = vpop.f32.mrb[0].mxu0
        %v5473 = vpop.f32.mrb[0].mxu0
        %v5474 = vadd.f32 %v5185, %v5473
        %v5475 = vpop.f32.mrb[0].mxu0
        %5476 = vmatprep.mubr.bf16.mxu0 %v4072
        %5477 = vmatmul.mubr.bf16.gmra.mrb[0].mxu0 %v4071
        %v5478 = vpop.f32.mrb[0].mxu0
        %v5479 = vadd.f32 %v5190, %v5478
        %v5480 = vpop.f32.mrb[0].mxu0
        %v5481 = vpop.f32.mrb[0].mxu0
        %v5482 = vadd.f32 %v5193, %v5481
        %v5483 = vpop.f32.mrb[0].mxu0
        %5484 = vmatprep.mubr.bf16.mxu0 %v4080
        %5485 = vmatmul.mubr.bf16.gmra.mrb[0].mxu0 %v4079
        %v5486 = vpop.f32.mrb[0].mxu0
        %v5487 = vadd.f32 %v5198, %v5486
        %v5488 = vpop.f32.mrb[0].mxu0
        %v5489 = vpop.f32.mrb[0].mxu0
        %v5490 = vadd.f32 %v5201, %v5489
        %v5491 = vpop.f32.mrb[0].mxu0
        %5492 = vmatprep.mubr.bf16.mxu0 %v4088
        %5493 = vmatmul.mubr.bf16.gmra.mrb[0].mxu0 %v4087
        %v5494 = vpop.f32.mrb[0].mxu0
        %v5495 = vadd.f32 %v5206, %v5494
        %v5496 = vpop.f32.mrb[0].mxu0
        %v5497 = vpop.f32.mrb[0].mxu0
        %v5498 = vadd.f32 %v5209, %v5497
        %v5499 = vpop.f32.mrb[0].mxu0
        %5500 = vmatprep.mubr.bf16.mxu0 %v4096
        %5501 = vmatmul.mubr.bf16.gmra.mrb[0].mxu0 %v4095
        %v5502 = vpop.f32.mrb[0].mxu0
        %v5503 = vadd.f32 %v5214, %v5502
        %v5504 = vpop.f32.mrb[0].mxu0
        %v5505 = vpop.f32.mrb[0].mxu0
        %v5506 = vadd.f32 %v5217, %v5505
        %v5507 = vpop.f32.mrb[0].mxu0
        %5508 = vmatprep.mubr.bf16.mxu0 %v4104
        %5509 = vmatmul.mubr.bf16.gmra.mrb[0].mxu0 %v4103
        %v5510 = vpop.f32.mrb[0].mxu0
        %v5511 = vadd.f32 %v5222, %v5510
        %v5512 = vpop.f32.mrb[0].mxu0
        %v5513 = vpop.f32.mrb[0].mxu0
        %v5514 = vadd.f32 %v5225, %v5513
        %v5515 = vpop.f32.mrb[0].mxu0
        %5516 = vmatprep.mubr.bf16.mxu0 %v4112
        %5517 = vmatmul.mubr.bf16.gmra.mrb[0].mxu0 %v4111
        %v5518 = vpop.f32.mrb[0].mxu0
        %v5519 = vadd.f32 %v5230, %v5518
        %v5520 = vpop.f32.mrb[0].mxu0
        %v5521 = vpop.f32.mrb[0].mxu0
        %v5522 = vadd.f32 %v5233, %v5521
        %v5523 = vpop.f32.mrb[0].mxu0
        %5524 = vmatprep.mubr.bf16.mxu0 %v4120
        %5525 = vmatmul.mubr.bf16.gmra.mrb[0].mxu0 %v4119
        %v5526 = vpop.f32.mrb[0].mxu0
        %v5527 = vadd.f32 %v5238, %v5526
        %v5528 = vpop.f32.mrb[0].mxu0
        %v5529 = vpop.f32.mrb[0].mxu0
        %v5530 = vadd.f32 %v5241, %v5529
        %v5531 = vpop.f32.mrb[0].mxu0
        %5532 = vmatprep.mubr.bf16.mxu0 %v4128
        %5533 = vmatmul.mubr.bf16.gmra.mrb[0].mxu0 %v4127
        %v5534 = vpop.f32.mrb[0].mxu0
        %v5535 = vadd.f32 %v5246, %v5534
        %v5536 = vpop.f32.mrb[0].mxu0
        %v5537 = vpop.f32.mrb[0].mxu0
        %v5538 = vadd.f32 %v5249, %v5537
        %v5539 = vpop.f32.mrb[0].mxu0
        %5540 = vmatprep.mubr.bf16.mxu0 %v4136
        %5541 = vmatmul.mubr.bf16.gmra.mrb[0].mxu0 %v4135
        %v5542 = vpop.f32.mrb[0].mxu0
        %v5543 = vadd.f32 %v5254, %v5542
        %v5544 = vpop.f32.mrb[0].mxu0
        %v5545 = vpop.f32.mrb[0].mxu0
        %v5546 = vadd.f32 %v5257, %v5545
        %v5547 = vpop.f32.mrb[0].mxu0
        %5548 = vmatprep.mubr.bf16.mxu0 %v4144
        %5549 = vmatmul.mubr.bf16.gmra.mrb[0].mxu0 %v4143
        %v5550 = vpop.f32.mrb[0].mxu0
        %v5551 = vadd.f32 %v5262, %v5550
        %v5552 = vpop.f32.mrb[0].mxu0
        %v5553 = vpop.f32.mrb[0].mxu0
        %v5554 = vadd.f32 %v5265, %v5553
        %v5555 = vpop.f32.mrb[0].mxu0
        %5556 = vdwg.mxu0
        %v5557 = vmax.f32 %v5303, 0.0
        %v5558 = vmax.f32 %v5306, 0.0
        %v5559 = vmax.f32 %v5311, 0.0
        %v5560 = vmax.f32 %v5314, 0.0
        %v5561 = vmax.f32 %v5319, 0.0
        %v5562 = vmax.f32 %v5322, 0.0
        %v5563 = vmax.f32 %v5327, 0.0
        %v5564 = vmax.f32 %v5330, 0.0
        %v5565 = vmax.f32 %v5335, 0.0
        %v5566 = vmax.f32 %v5338, 0.0
        %v5567 = vmax.f32 %v5343, 0.0
        %v5568 = vmax.f32 %v5346, 0.0
        %v5569 = vmax.f32 %v5351, 0.0
        %v5570 = vmax.f32 %v5354, 0.0
        %v5571 = vmax.f32 %v5359, 0.0
        %v5572 = vmax.f32 %v5362, 0.0
        %v5573 = vmax.f32 %v5367, 0.0
        %v5574 = vmax.f32 %v5370, 0.0
        %v5575 = vmax.f32 %v5375, 0.0
        %v5576 = vmax.f32 %v5378, 0.0
        %v5577 = vmax.f32 %v5383, 0.0
        %v5578 = vmax.f32 %v5386, 0.0
        %v5579 = vmax.f32 %v5391, 0.0
        %v5580 = vmax.f32 %v5394, 0.0
        %v5581 = vmax.f32 %v5399, 0.0
        %v5582 = vmax.f32 %v5402, 0.0
        %v5583 = vmax.f32 %v5407, 0.0
        %v5584 = vmax.f32 %v5410, 0.0
        %v5585 = vmax.f32 %v5415, 0.0
        %v5586 = vmax.f32 %v5418, 0.0
        %v5587 = vmax.f32 %v5423, 0.0
        %v5588 = vmax.f32 %v5426, 0.0
        %v5589 = vmax.f32 %v5431, 0.0
        %v5590 = vmax.f32 %v5434, 0.0
        %v5591 = vmax.f32 %v5439, 0.0
        %v5592 = vmax.f32 %v5442, 0.0
        %v5593 = vmax.f32 %v5447, 0.0
        %v5594 = vmax.f32 %v5450, 0.0
        %v5595 = vmax.f32 %v5455, 0.0
        %v5596 = vmax.f32 %v5458, 0.0
        %v5597 = vmax.f32 %v5463, 0.0
        %v5598 = vmax.f32 %v5466, 0.0
        %v5599 = vmax.f32 %v5471, 0.0
        %v5600 = vmax.f32 %v5474, 0.0
        %v5601 = vmax.f32 %v5479, 0.0
        %v5602 = vmax.f32 %v5482, 0.0
        %v5603 = vmax.f32 %v5487, 0.0
        %v5604 = vmax.f32 %v5490, 0.0
        %v5605 = vmax.f32 %v5495, 0.0
        %v5606 = vmax.f32 %v5498, 0.0
        %v5607 = vmax.f32 %v5503, 0.0
        %v5608 = vmax.f32 %v5506, 0.0
        %v5609 = vmax.f32 %v5511, 0.0
        %v5610 = vmax.f32 %v5514, 0.0
        %v5611 = vmax.f32 %v5519, 0.0
        %v5612 = vmax.f32 %v5522, 0.0
        %v5613 = vmax.f32 %v5527, 0.0
        %v5614 = vmax.f32 %v5530, 0.0
        %v5615 = vmax.f32 %v5535, 0.0
        %v5616 = vmax.f32 %v5538, 0.0
        %v5617 = vmax.f32 %v5543, 0.0
        %v5618 = vmax.f32 %v5546, 0.0
        %v5619 = vmax.f32 %v5551, 0.0
        %v5620 = vmax.f32 %v5554, 0.0
        %v5621 = vld [vmem:[%s4] sm:$0xff]
        %v5622 = vld [vmem:[%s4 + $0x8] sm:$0xff]
        %v5623 = vld [vmem:[%s4 + $0x10] sm:$0xff]
        %v5624 = vld [vmem:[%s4 + $0x18] sm:$0xff]
        %v5625 = vld [vmem:[%s4 + $0x20] sm:$0xff]
        %v5626 = vld [vmem:[%s4 + $0x28] sm:$0xff]
        %v5627 = vld [vmem:[%s4 + $0x30] sm:$0xff]
        %v5628 = vld [vmem:[%s4 + $0x38] sm:$0xff]
        %v5629 = vld [vmem:[%s4 + $0x40] sm:$0xff]
        %v5630 = vld [vmem:[%s4 + $0x48] sm:$0xff]
        %v5631 = vld [vmem:[%s4 + $0x50] sm:$0xff]
        %v5632 = vld [vmem:[%s4 + $0x58] sm:$0xff]
        %v5633 = vld [vmem:[%s4 + $0x60] sm:$0xff]
        %v5634 = vld [vmem:[%s4 + $0x68] sm:$0xff]
        %v5635 = vld [vmem:[%s4 + $0x70] sm:$0xff]
        %v5636 = vld [vmem:[%s4 + $0x78] sm:$0xff]
        %v5637 = vld [vmem:[%s4 + $0x80] sm:$0xff]
        %v5638 = vld [vmem:[%s4 + $0x88] sm:$0xff]
        %v5639 = vld [vmem:[%s4 + $0x90] sm:$0xff]
        %v5640 = vld [vmem:[%s4 + $0x98] sm:$0xff]
        %v5641 = vld [vmem:[%s4 + $0xa0] sm:$0xff]
        %v5642 = vld [vmem:[%s4 + $0xa8] sm:$0xff]
        %v5643 = vld [vmem:[%s4 + $0xb0] sm:$0xff]
        %v5644 = vld [vmem:[%s4 + $0xb8] sm:$0xff]
        %v5645 = vld [vmem:[%s4 + $0xc0] sm:$0xff]
        %v5646 = vld [vmem:[%s4 + $0xc8] sm:$0xff]
        %v5647 = vld [vmem:[%s4 + $0xd0] sm:$0xff]
        %v5648 = vld [vmem:[%s4 + $0xd8] sm:$0xff]
        %v5649 = vld [vmem:[%s4 + $0xe0] sm:$0xff]
        %v5650 = vld [vmem:[%s4 + $0xe8] sm:$0xff]
        %v5651 = vld [vmem:[%s4 + $0xf0] sm:$0xff]
        %v5652 = vld [vmem:[%s4 + $0xf8] sm:$0xff]
        %v5653 = vld [vmem:[%s4 + $0x100] sm:$0xff]
        %v5654 = vld [vmem:[%s4 + $0x108] sm:$0xff]
        %v5655 = vld [vmem:[%s4 + $0x110] sm:$0xff]
        %v5656 = vld [vmem:[%s4 + $0x118] sm:$0xff]
        %v5657 = vld [vmem:[%s4 + $0x120] sm:$0xff]
        %v5658 = vld [vmem:[%s4 + $0x128] sm:$0xff]
        %v5659 = vld [vmem:[%s4 + $0x130] sm:$0xff]
        %v5660 = vld [vmem:[%s4 + $0x138] sm:$0xff]
        %v5661 = vld [vmem:[%s4 + $0x140] sm:$0xff]
        %v5662 = vld [vmem:[%s4 + $0x148] sm:$0xff]
        %v5663 = vld [vmem:[%s4 + $0x150] sm:$0xff]
        %v5664 = vld [vmem:[%s4 + $0x158] sm:$0xff]
        %v5665 = vld [vmem:[%s4 + $0x160] sm:$0xff]
        %v5666 = vld [vmem:[%s4 + $0x168] sm:$0xff]
        %v5667 = vld [vmem:[%s4 + $0x170] sm:$0xff]
        %v5668 = vld [vmem:[%s4 + $0x178] sm:$0xff]
        %v5669 = vld [vmem:[%s4 + $0x180] sm:$0xff]
        %v5670 = vld [vmem:[%s4 + $0x188] sm:$0xff]
        %v5671 = vld [vmem:[%s4 + $0x190] sm:$0xff]
        %v5672 = vld [vmem:[%s4 + $0x198] sm:$0xff]
        %v5673 = vld [vmem:[%s4 + $0x1a0] sm:$0xff]
        %v5674 = vld [vmem:[%s4 + $0x1a8] sm:$0xff]
        %v5675 = vld [vmem:[%s4 + $0x1b0] sm:$0xff]
        %v5676 = vld [vmem:[%s4 + $0x1b8] sm:$0xff]
        %v5677 = vld [vmem:[%s4 + $0x1c0] sm:$0xff]
        %v5678 = vld [vmem:[%s4 + $0x1c8] sm:$0xff]
        %v5679 = vld [vmem:[%s4 + $0x1d0] sm:$0xff]
        %v5680 = vld [vmem:[%s4 + $0x1d8] sm:$0xff]
        %v5681 = vld [vmem:[%s4 + $0x1e0] sm:$0xff]
        %v5682 = vld [vmem:[%s4 + $0x1e8] sm:$0xff]
        %v5683 = vld [vmem:[%s4 + $0x1f0] sm:$0xff]
        %v5684 = vld [vmem:[%s4 + $0x1f8] sm:$0xff]
        %5686 = vset.pattern.permute.xlu0 0
        %5687 = vperm.xlu0 %5686, %v5621
        %v5688 = vpop.permute.xlu0 %5687
        %5691 = vset.pattern.permute.xlu0 0
        %5692 = vperm.xlu0 %5691, %v5622
        %v5693 = vpop.permute.xlu0 %5692
        %5696 = vset.pattern.permute.xlu0 0
        %5697 = vperm.xlu0 %5696, %v5623
        %v5698 = vpop.permute.xlu0 %5697
        %5701 = vset.pattern.permute.xlu0 0
        %5702 = vperm.xlu0 %5701, %v5624
        %v5703 = vpop.permute.xlu0 %5702
        %5706 = vset.pattern.permute.xlu0 0
        %5707 = vperm.xlu0 %5706, %v5625
        %v5708 = vpop.permute.xlu0 %5707
        %5711 = vset.pattern.permute.xlu0 0
        %5712 = vperm.xlu0 %5711, %v5626
        %v5713 = vpop.permute.xlu0 %5712
        %5716 = vset.pattern.permute.xlu0 0
        %5717 = vperm.xlu0 %5716, %v5627
        %v5718 = vpop.permute.xlu0 %5717
        %5721 = vset.pattern.permute.xlu0 0
        %5722 = vperm.xlu0 %5721, %v5628
        %v5723 = vpop.permute.xlu0 %5722
        %5726 = vset.pattern.permute.xlu0 0
        %5727 = vperm.xlu0 %5726, %v5629
        %v5728 = vpop.permute.xlu0 %5727
        %5731 = vset.pattern.permute.xlu0 0
        %5732 = vperm.xlu0 %5731, %v5630
        %v5733 = vpop.permute.xlu0 %5732
        %5736 = vset.pattern.permute.xlu0 0
        %5737 = vperm.xlu0 %5736, %v5631
        %v5738 = vpop.permute.xlu0 %5737
        %5741 = vset.pattern.permute.xlu0 0
        %5742 = vperm.xlu0 %5741, %v5632
        %v5743 = vpop.permute.xlu0 %5742
        %5746 = vset.pattern.permute.xlu0 0
        %5747 = vperm.xlu0 %5746, %v5633
        %v5748 = vpop.permute.xlu0 %5747
        %5751 = vset.pattern.permute.xlu0 0
        %5752 = vperm.xlu0 %5751, %v5634
        %v5753 = vpop.permute.xlu0 %5752
        %5756 = vset.pattern.permute.xlu0 0
        %5757 = vperm.xlu0 %5756, %v5635
        %v5758 = vpop.permute.xlu0 %5757
        %5761 = vset.pattern.permute.xlu0 0
        %5762 = vperm.xlu0 %5761, %v5636
        %v5763 = vpop.permute.xlu0 %5762
        %5766 = vset.pattern.permute.xlu0 0
        %5767 = vperm.xlu0 %5766, %v5637
        %v5768 = vpop.permute.xlu0 %5767
        %5771 = vset.pattern.permute.xlu0 0
        %5772 = vperm.xlu0 %5771, %v5638
        %v5773 = vpop.permute.xlu0 %5772
        %5776 = vset.pattern.permute.xlu0 0
        %5777 = vperm.xlu0 %5776, %v5639
        %v5778 = vpop.permute.xlu0 %5777
        %5781 = vset.pattern.permute.xlu0 0
        %5782 = vperm.xlu0 %5781, %v5640
        %v5783 = vpop.permute.xlu0 %5782
        %5786 = vset.pattern.permute.xlu0 0
        %5787 = vperm.xlu0 %5786, %v5641
        %v5788 = vpop.permute.xlu0 %5787
        %5791 = vset.pattern.permute.xlu0 0
        %5792 = vperm.xlu0 %5791, %v5642
        %v5793 = vpop.permute.xlu0 %5792
        %5796 = vset.pattern.permute.xlu0 0
        %5797 = vperm.xlu0 %5796, %v5643
        %v5798 = vpop.permute.xlu0 %5797
        %5801 = vset.pattern.permute.xlu0 0
        %5802 = vperm.xlu0 %5801, %v5644
        %v5803 = vpop.permute.xlu0 %5802
        %5806 = vset.pattern.permute.xlu0 0
        %5807 = vperm.xlu0 %5806, %v5645
        %v5808 = vpop.permute.xlu0 %5807
        %5811 = vset.pattern.permute.xlu0 0
        %5812 = vperm.xlu0 %5811, %v5646
        %v5813 = vpop.permute.xlu0 %5812
        %5816 = vset.pattern.permute.xlu0 0
        %5817 = vperm.xlu0 %5816, %v5647
        %v5818 = vpop.permute.xlu0 %5817
        %5821 = vset.pattern.permute.xlu0 0
        %5822 = vperm.xlu0 %5821, %v5648
        %v5823 = vpop.permute.xlu0 %5822
        %5826 = vset.pattern.permute.xlu0 0
        %5827 = vperm.xlu0 %5826, %v5649
        %v5828 = vpop.permute.xlu0 %5827
        %5831 = vset.pattern.permute.xlu0 0
        %5832 = vperm.xlu0 %5831, %v5650
        %v5833 = vpop.permute.xlu0 %5832
        %5836 = vset.pattern.permute.xlu0 0
        %5837 = vperm.xlu0 %5836, %v5651
        %v5838 = vpop.permute.xlu0 %5837
        %5841 = vset.pattern.permute.xlu0 0
        %5842 = vperm.xlu0 %5841, %v5652
        %v5843 = vpop.permute.xlu0 %5842
        %5846 = vset.pattern.permute.xlu0 0
        %5847 = vperm.xlu0 %5846, %v5653
        %v5848 = vpop.permute.xlu0 %5847
        %5851 = vset.pattern.permute.xlu0 0
        %5852 = vperm.xlu0 %5851, %v5654
        %v5853 = vpop.permute.xlu0 %5852
        %5856 = vset.pattern.permute.xlu0 0
        %5857 = vperm.xlu0 %5856, %v5655
        %v5858 = vpop.permute.xlu0 %5857
        %5861 = vset.pattern.permute.xlu0 0
        %5862 = vperm.xlu0 %5861, %v5656
        %v5863 = vpop.permute.xlu0 %5862
        %5866 = vset.pattern.permute.xlu0 0
        %5867 = vperm.xlu0 %5866, %v5657
        %v5868 = vpop.permute.xlu0 %5867
        %5871 = vset.pattern.permute.xlu0 0
        %5872 = vperm.xlu0 %5871, %v5658
        %v5873 = vpop.permute.xlu0 %5872
        %5876 = vset.pattern.permute.xlu0 0
        %5877 = vperm.xlu0 %5876, %v5659
        %v5878 = vpop.permute.xlu0 %5877
        %5881 = vset.pattern.permute.xlu0 0
        %5882 = vperm.xlu0 %5881, %v5660
        %v5883 = vpop.permute.xlu0 %5882
        %5886 = vset.pattern.permute.xlu0 0
        %5887 = vperm.xlu0 %5886, %v5661
        %v5888 = vpop.permute.xlu0 %5887
        %5891 = vset.pattern.permute.xlu0 0
        %5892 = vperm.xlu0 %5891, %v5662
        %v5893 = vpop.permute.xlu0 %5892
        %5896 = vset.pattern.permute.xlu0 0
        %5897 = vperm.xlu0 %5896, %v5663
        %v5898 = vpop.permute.xlu0 %5897
        %5901 = vset.pattern.permute.xlu0 0
        %5902 = vperm.xlu0 %5901, %v5664
        %v5903 = vpop.permute.xlu0 %5902
        %5906 = vset.pattern.permute.xlu0 0
        %5907 = vperm.xlu0 %5906, %v5665
        %v5908 = vpop.permute.xlu0 %5907
        %5911 = vset.pattern.permute.xlu0 0
        %5912 = vperm.xlu0 %5911, %v5666
        %v5913 = vpop.permute.xlu0 %5912
        %5916 = vset.pattern.permute.xlu0 0
        %5917 = vperm.xlu0 %5916, %v5667
        %v5918 = vpop.permute.xlu0 %5917
        %5921 = vset.pattern.permute.xlu0 0
        %5922 = vperm.xlu0 %5921, %v5668
        %v5923 = vpop.permute.xlu0 %5922
        %5926 = vset.pattern.permute.xlu0 0
        %5927 = vperm.xlu0 %5926, %v5669
        %v5928 = vpop.permute.xlu0 %5927
        %5931 = vset.pattern.permute.xlu0 0
        %5932 = vperm.xlu0 %5931, %v5670
        %v5933 = vpop.permute.xlu0 %5932
        %5936 = vset.pattern.permute.xlu0 0
        %5937 = vperm.xlu0 %5936, %v5671
        %v5938 = vpop.permute.xlu0 %5937
        %5941 = vset.pattern.permute.xlu0 0
        %5942 = vperm.xlu0 %5941, %v5672
        %v5943 = vpop.permute.xlu0 %5942
        %5946 = vset.pattern.permute.xlu0 0
        %5947 = vperm.xlu0 %5946, %v5673
        %v5948 = vpop.permute.xlu0 %5947
        %5951 = vset.pattern.permute.xlu0 0
        %5952 = vperm.xlu0 %5951, %v5674
        %v5953 = vpop.permute.xlu0 %5952
        %5956 = vset.pattern.permute.xlu0 0
        %5957 = vperm.xlu0 %5956, %v5675
        %v5958 = vpop.permute.xlu0 %5957
        %5961 = vset.pattern.permute.xlu0 0
        %5962 = vperm.xlu0 %5961, %v5676
        %v5963 = vpop.permute.xlu0 %5962
        %5966 = vset.pattern.permute.xlu0 0
        %5967 = vperm.xlu0 %5966, %v5677
        %v5968 = vpop.permute.xlu0 %5967
        %5971 = vset.pattern.permute.xlu0 0
        %5972 = vperm.xlu0 %5971, %v5678
        %v5973 = vpop.permute.xlu0 %5972
        %5976 = vset.pattern.permute.xlu0 0
        %5977 = vperm.xlu0 %5976, %v5679
        %v5978 = vpop.permute.xlu0 %5977
        %5981 = vset.pattern.permute.xlu0 0
        %5982 = vperm.xlu0 %5981, %v5680
        %v5983 = vpop.permute.xlu0 %5982
        %5986 = vset.pattern.permute.xlu0 0
        %5987 = vperm.xlu0 %5986, %v5681
        %v5988 = vpop.permute.xlu0 %5987
        %5991 = vset.pattern.permute.xlu0 0
        %5992 = vperm.xlu0 %5991, %v5682
        %v5993 = vpop.permute.xlu0 %5992
        %5996 = vset.pattern.permute.xlu0 0
        %5997 = vperm.xlu0 %5996, %v5683
        %v5998 = vpop.permute.xlu0 %5997
        %6001 = vset.pattern.permute.xlu0 0
        %6002 = vperm.xlu0 %6001, %v5684
        %v6003 = vpop.permute.xlu0 %6002
        %v6005 = vmul.f32 %v5557, %v5688
        %v6006 = vmul.f32 %v5558, %v5693
        %v6007 = vmul.f32 %v5559, %v5698
        %v6008 = vmul.f32 %v5560, %v5703
        %v6009 = vmul.f32 %v5561, %v5708
        %v6010 = vmul.f32 %v5562, %v5713
        %v6011 = vmul.f32 %v5563, %v5718
        %v6012 = vmul.f32 %v5564, %v5723
        %v6013 = vmul.f32 %v5565, %v5728
        %v6014 = vmul.f32 %v5566, %v5733
        %v6015 = vmul.f32 %v5567, %v5738
        %v6016 = vmul.f32 %v5568, %v5743
        %v6017 = vmul.f32 %v5569, %v5748
        %v6018 = vmul.f32 %v5570, %v5753
        %v6019 = vmul.f32 %v5571, %v5758
        %v6020 = vmul.f32 %v5572, %v5763
        %v6021 = vmul.f32 %v5573, %v5768
        %v6022 = vmul.f32 %v5574, %v5773
        %v6023 = vmul.f32 %v5575, %v5778
        %v6024 = vmul.f32 %v5576, %v5783
        %v6025 = vmul.f32 %v5577, %v5788
        %v6026 = vmul.f32 %v5578, %v5793
        %v6027 = vmul.f32 %v5579, %v5798
        %v6028 = vmul.f32 %v5580, %v5803
        %v6029 = vmul.f32 %v5581, %v5808
        %v6030 = vmul.f32 %v5582, %v5813
        %v6031 = vmul.f32 %v5583, %v5818
        %v6032 = vmul.f32 %v5584, %v5823
        %v6033 = vmul.f32 %v5585, %v5828
        %v6034 = vmul.f32 %v5586, %v5833
        %v6035 = vmul.f32 %v5587, %v5838
        %v6036 = vmul.f32 %v5588, %v5843
        %v6037 = vmul.f32 %v5589, %v5848
        %v6038 = vmul.f32 %v5590, %v5853
        %v6039 = vmul.f32 %v5591, %v5858
        %v6040 = vmul.f32 %v5592, %v5863
        %v6041 = vmul.f32 %v5593, %v5868
        %v6042 = vmul.f32 %v5594, %v5873
        %v6043 = vmul.f32 %v5595, %v5878
        %v6044 = vmul.f32 %v5596, %v5883
        %v6045 = vmul.f32 %v5597, %v5888
        %v6046 = vmul.f32 %v5598, %v5893
        %v6047 = vmul.f32 %v5599, %v5898
        %v6048 = vmul.f32 %v5600, %v5903
        %v6049 = vmul.f32 %v5601, %v5908
        %v6050 = vmul.f32 %v5602, %v5913
        %v6051 = vmul.f32 %v5603, %v5918
        %v6052 = vmul.f32 %v5604, %v5923
        %v6053 = vmul.f32 %v5605, %v5928
        %v6054 = vmul.f32 %v5606, %v5933
        %v6055 = vmul.f32 %v5607, %v5938
        %v6056 = vmul.f32 %v5608, %v5943
        %v6057 = vmul.f32 %v5609, %v5948
        %v6058 = vmul.f32 %v5610, %v5953
        %v6059 = vmul.f32 %v5611, %v5958
        %v6060 = vmul.f32 %v5612, %v5963
        %v6061 = vmul.f32 %v5613, %v5968
        %v6062 = vmul.f32 %v5614, %v5973
        %v6063 = vmul.f32 %v5615, %v5978
        %v6064 = vmul.f32 %v5616, %v5983
        %v6065 = vmul.f32 %v5617, %v5988
        %v6066 = vmul.f32 %v5618, %v5993
        %v6067 = vmul.f32 %v5619, %v5998
        %v6068 = vmul.f32 %v5620, %v6003
        %v6069 = vadd.f32 %v6005, %v6006
        %v6070 = vadd.f32 %v6069, %v6007
        %v6071 = vadd.f32 %v6070, %v6008
        %v6072 = vadd.f32 %v6071, %v6009
        %v6073 = vadd.f32 %v6072, %v6010
        %v6074 = vadd.f32 %v6073, %v6011
        %v6075 = vadd.f32 %v6074, %v6012
        %v6076 = vadd.f32 %v6075, %v6013
        %v6077 = vadd.f32 %v6076, %v6014
        %v6078 = vadd.f32 %v6077, %v6015
        %v6079 = vadd.f32 %v6078, %v6016
        %v6080 = vadd.f32 %v6079, %v6017
        %v6081 = vadd.f32 %v6080, %v6018
        %v6082 = vadd.f32 %v6081, %v6019
        %v6083 = vadd.f32 %v6082, %v6020
        %v6084 = vadd.f32 %v6083, %v6021
        %v6085 = vadd.f32 %v6084, %v6022
        %v6086 = vadd.f32 %v6085, %v6023
        %v6087 = vadd.f32 %v6086, %v6024
        %v6088 = vadd.f32 %v6087, %v6025
        %v6089 = vadd.f32 %v6088, %v6026
        %v6090 = vadd.f32 %v6089, %v6027
        %v6091 = vadd.f32 %v6090, %v6028
        %v6092 = vadd.f32 %v6091, %v6029
        %v6093 = vadd.f32 %v6092, %v6030
        %v6094 = vadd.f32 %v6093, %v6031
        %v6095 = vadd.f32 %v6094, %v6032
        %v6096 = vadd.f32 %v6095, %v6033
        %v6097 = vadd.f32 %v6096, %v6034
        %v6098 = vadd.f32 %v6097, %v6035
        %v6099 = vadd.f32 %v6098, %v6036
        %v6100 = vadd.f32 %v6099, %v6037
        %v6101 = vadd.f32 %v6100, %v6038
        %v6102 = vadd.f32 %v6101, %v6039
        %v6103 = vadd.f32 %v6102, %v6040
        %v6104 = vadd.f32 %v6103, %v6041
        %v6105 = vadd.f32 %v6104, %v6042
        %v6106 = vadd.f32 %v6105, %v6043
        %v6107 = vadd.f32 %v6106, %v6044
        %v6108 = vadd.f32 %v6107, %v6045
        %v6109 = vadd.f32 %v6108, %v6046
        %v6110 = vadd.f32 %v6109, %v6047
        %v6111 = vadd.f32 %v6110, %v6048
        %v6112 = vadd.f32 %v6111, %v6049
        %v6113 = vadd.f32 %v6112, %v6050
        %v6114 = vadd.f32 %v6113, %v6051
        %v6115 = vadd.f32 %v6114, %v6052
        %v6116 = vadd.f32 %v6115, %v6053
        %v6117 = vadd.f32 %v6116, %v6054
        %v6118 = vadd.f32 %v6117, %v6055
        %v6119 = vadd.f32 %v6118, %v6056
        %v6120 = vadd.f32 %v6119, %v6057
        %v6121 = vadd.f32 %v6120, %v6058
        %v6122 = vadd.f32 %v6121, %v6059
        %v6123 = vadd.f32 %v6122, %v6060
        %v6124 = vadd.f32 %v6123, %v6061
        %v6125 = vadd.f32 %v6124, %v6062
        %v6126 = vadd.f32 %v6125, %v6063
        %v6127 = vadd.f32 %v6126, %v6064
        %v6128 = vadd.f32 %v6127, %v6065
        %v6129 = vadd.f32 %v6128, %v6066
        %v6130 = vadd.f32 %v6129, %v6067
        %v6131 = vadd.f32 %v6130, %v6068
        %v6132 = vrot.slane %v6131, 4
        %v6133 = vadd.f32 %v6131, %v6132
        %v6134 = vrot.slane %v6133, 2
        %v6135 = vadd.f32 %v6133, %v6134
        %v6136 = vrot.slane %v6135, 1
        %v6137 = vadd.f32 %v6135, %v6136
        %s6138 = sld [smem:[#allocation2]]
        %v6139 = vstv %s6138
        %v6140 = vadd.f32 %v6137, %v6139
        %6141 = vst [vmem:[%s311] sm:$0x1] %v6140
        %s6142 = sand.u32 %s160, 1
        %s6143 = scalar_lea.sflag [#allocation5], %s6142
        %s6144 = sand.u32 %s160, 1
        %s6145 = scalar_lea.vmem [#allocation4], %s6144
        // Predicated region
        $region83: #{tpu_custom_call.1} parent=77 // pred_check
          %p6146 = pneg %p170
        $region84: #{tpu_custom_call.1} parent=77 // pred_check_branch
          %6148 = sbr.rel (%p6146) target = $region86
        $region85: #{tpu_custom_call.1} parent=77 // pred_region
          %s6150 = ssub.s32 16, 16
          %6151 = vsyncadd %s6143, %s6150
          %s6152 = smul.addr %s21, 16
          %s6153 = scalar_lea.hbm %s6, %s6152
          %s6155 = sshll.u32 %s6145, 4
          %s6156 = int_to_ptr.vmem [resolvable:$true] %s6155
          %6158 = dma.vmem_to_hbm [thread:$0]  %s6156, 16, %s6153, %s6143
        $region86: #{tpu_custom_call.1} parent=77 // pred_fallthru
          _
      $region78: #{tpu_custom_call.1} parent=5 // pred_fallthru
        _
      %p6159 = scmp.le.s32.totalorder 2, %s16
      // Predicated region
      $region87: #{tpu_custom_call.1} parent=5 // pred_check
        %p6160 = pneg %p6159
      $region88: #{tpu_custom_call.1} parent=5 // pred_check_branch
        %6162 = sbr.rel (%p6160) target = $region90
      $region89: #{tpu_custom_call.1} parent=5 // pred_region
        %s6163 = ssub.s32 %s16, 2
        // Predicated region
        $region91: #{tpu_custom_call.1} parent=89 // pred_check
          %p6164 = pneg %p176
        $region92: #{tpu_custom_call.1} parent=89 // pred_check_branch
          %6166 = sbr.rel (%p6164) target = $region94
        $region93: #{tpu_custom_call.1} parent=89 // pred_region
          %s6167 = sand.u32 %s161, 1
          %s6168 = scalar_lea.sflag [#allocation5], %s6167
          %s6169 = sand.u32 %s161, 1
          %s6170 = scalar_lea.vmem [#allocation4], %s6169
          %6171 = dma.done %s6168, 16
        $region94: #{tpu_custom_call.1} parent=89 // pred_fallthru
          _
      $region90: #{tpu_custom_call.1} parent=5 // pred_fallthru
        _
    $region6: #{tpu_custom_call.1} parent=1 // loop_footer
      %s20 = sadd.s32 1, %s16
    $region7: #{tpu_custom_call.1} parent=1 // loop_footer_branch
      %15 = sbr.rel target = $region3
    $region8: #{tpu_custom_call.1} parent=1 // loop_exit
      _
    %6172 = vsyncpa [#allocation5], 1
    %s6173 = scalar_lea.sflag [#allocation5], 1
    %6174 = vsyncpa %s6173, 1

</llo_original>
